<compile_context>
chip_gen: v6e
topology: v6e:2x2x1
jax: 0.10.0
libtpu: 0.0.40
codegen_flags: <defaults>
</compile_context>

<pallas_src>
import jax
import jax.numpy as jnp
from jax import lax
from jax.experimental import pallas as pl
from jax.experimental.pallas import tpu as pltpu

# ----------------------------- synthetic sizes ------------------------------
N_VIEWS = 4
H = 16
W = 16
HW = H * W
PT = 128                 # points per grid step (one full vreg lane row)
C_FEAT = 13              # stand-in feature-map encoder output channels
C_FEAT_PAD = 16          # padded to a 16-sublane group
RGB_PAD = 8              # rgb channels padded to an 8-sublane group
F_XYZ = 16               # xyz_feature dim
D_IN = 3 + C_FEAT + F_XYZ  # logical weights-MLP input dim (32)
H_WMLP = 32              # weights-MLP hidden
SH_DEG = 2
N_SH = (SH_DEG + 1) ** 2  # 9 SH coefficients per channel
N_SH_PAD = 16            # padded per-channel group
H_SH = 32                # SH-MLP hidden

# spherical-harmonic constants (standard eval_sh, degree 2)
C0 = 0.28209479177387814
C1 = 0.4886025119029199
C2 = (1.0925484305920792, -1.0925484305920792, 0.31539156525252005,
      -1.0925484305920792, 0.5462742152960396)


def _dot(a, b):
    return jnp.dot(a, b, preferred_element_type=jnp.float32)


# --------------------------- single fused kernel -----------------------------
def _ibrnet_kernel(proja_ref, projb_ref, rgb_ref,
                   xyz_ref, dir_ref, xyzf_ref,
                   ew1_ref, eb1_ref, ew2_ref, eb2_ref,
                   w1a_ref, w1b_ref, w1c_ref, b1_ref, w2_ref, b2_ref,
                   sw1_ref, sb1_ref, sw2_ref, sb2_ref, shsel_ref,
                   oc_ref, od_ref, os_ref):
    f32 = jnp.float32

    # ---- feature-map encoder over all views (per-pixel stand-in MLP) --------
    # TODO(synk): original ResUNet architecture not provided; 2-layer per-pixel
    # MLP stand-in.  It is point-independent, so at production scale it moves
    # to its own grid phase instead of being recomputed per point block.
    rgb_all = rgb_ref[...]                                   # (8, V*HW), rows 3..7 zero
    h_enc = jnp.maximum(_dot(ew1_ref[...], rgb_all) + eb1_ref[...], 0.0)
    feat_all = _dot(ew2_ref[...], h_enc) + eb2_ref[...]      # (16, V*HW), rows 13..15 zero
    rgb_bf = rgb_all.astype(jnp.bfloat16)                    # bf16 MXU operands for gather
    feat_bf = feat_all.astype(jnp.bfloat16)

    # ---- project this point block into every view with one MXU matmul -------
    # proja rows are grouped [u(views)+pad | v+pad | w+pad]; 1/scale is folded
    # into the u/v rows by the wrapper, so x,y below are already pixel coords
    # (grid_sample align_corners=True normalize/denormalize cancels exactly).
    uvw = _dot(proja_ref[...], xyz_ref[...]) + projb_ref[...]   # (24, PT)
    inv_w = 1.0 / (uvw[16:24, :] + 1e-6)                     # exact divide (sub-pixel accuracy)
    x_all = uvw[0:8, :] * inv_w                               # rows 0..N_VIEWS-1 valid
    y_all = uvw[8:16, :] * inv_w

    col_w = lax.broadcasted_iota(jnp.int32, (W, 1), 0).astype(f32)
    row_h = lax.broadcasted_iota(jnp.int32, (H, 1), 0).astype(f32)

    xyzf = xyzf_ref[...]                                      # (F_XYZ, PT)
    # view-independent part of the weights-MLP first layer
    base = _dot(w1c_ref[...], xyzf) + b1_ref[...]             # (H_WMLP, PT)

    logits, rgb_samp = [], []
    for v in range(N_VIEWS):     # static unroll; per-view live state is small now
        x = x_all[v:v + 1, :]                                 # (1, PT)
        y = y_all[v:v + 1, :]
        # bilinear "tent" factors, built at O((H+W)*PT) instead of O(HW*PT)
        tx = jnp.maximum(1.0 - jnp.abs(x - col_w), 0.0)       # (W, PT)
        ty = jnp.maximum(1.0 - jnp.abs(y - row_h), 0.0)       # (H, PT)
        # Khatri-Rao assembly: wbil[h*W+w, p] = ty[h,p] * tx[w,p]
        # == F.grid_sample(align_corners=True, padding_mode='zeros') weights.
        wbil = (ty[:, None, :] * tx[None, :, :]).reshape(HW, PT).astype(jnp.bfloat16)
        # TODO(synk): at production H*W this dense gather must be tiled over HW
        # or replaced by a 4-corner DMA gather (scalar-prefetched indices).
        img_lo, img_hi = v * HW, (v + 1) * HW
        rgb_g = _dot(rgb_bf[:, img_lo:img_hi], wbil)          # (8, PT)  f32 acc
        feat_g = _dot(feat_bf[:, img_lo:img_hi], wbil)        # (16, PT) f32 acc
        # weights MLP; split matmuls avoid any sublane concat
        # TODO(synk): original weights-MLP architecture not provided; 2-layer ReLU stand-in.
        h_v = jnp.maximum(_dot(w1a_ref[...], rgb_g)
                          + _dot(w1b_ref[...], feat_g) + base, 0.0)
        lgt = jnp.sum(w2_ref[...] * h_v, axis=0, keepdims=True) + b2_ref[...]
        logits.append(lgt)                                    # (1, PT)
        rgb_samp.append(rgb_g[0:3, :])                        # (3, PT)

    # ---- softmax over views + weighted compose (exact arithmetic) -----------
    m = logits[0]
    for v in range(1, N_VIEWS):
        m = jnp.maximum(m, logits[v])
    ev = [jnp.exp(l - m) for l in logits]
    denom = ev[0]
    for v in range(1, N_VIEWS):
        denom = denom + ev[v]
    inv_denom = 1.0 / denom                                   # exact: weights sum to 1
    rgb_d = rgb_samp[0] * (ev[0] * inv_denom)
    for v in range(1, N_VIEWS):
        rgb_d = rgb_d + rgb_samp[v] * (ev[v] * inv_denom)
    od_ref[...] = rgb_d

    # ---- SH MLP + eval_sh (degree 2) -----------------------------------------
    # TODO(synk): original SH_MLP architecture not provided; 2-layer ReLU stand-in.
    hs = jnp.maximum(_dot(sw1_ref[...], xyzf) + sb1_ref[...], 0.0)
    shs = _dot(sw2_ref[...], hs) + sb2_ref[...]               # (48, PT): rows c*16+k, k<9 valid

    dx = dir_ref[0:1, :]
    dy = dir_ref[1:2, :]
    dz = dir_ref[2:3, :]
    xx, yy, zz = dx * dx, dy * dy, dz * dz
    basis = jnp.concatenate([
        jnp.full((1, PT), C0, f32),
        -C1 * dy, C1 * dz, -C1 * dx,
        C2[0] * dx * dy, C2[1] * dy * dz, C2[2] * (2.0 * zz - xx - yy),
        C2[3] * dx * dz, C2[4] * (xx - yy),
        jnp.zeros((N_SH_PAD - N_SH, PT), f32),
    ], axis=0)                                                # (16, PT)
    basis3 = jnp.concatenate([basis, basis, basis], axis=0)   # (48, PT)
    # grouped per-channel reduction done on the MXU via a constant selector
    rgb_sh = _dot(shsel_ref[...], shs * basis3)               # (3, PT)
    rgb_sh = jnp.maximum(jnp.tanh(rgb_sh) * 0.25, 0.0)
    os_ref[...] = rgb_sh
    oc_ref[...] = jnp.clip(rgb_d + rgb_sh, 0.0, 1.0)


# --------------------------------- wrapper ----------------------------------
def _rep_spec(a):
    nd = a.ndim
    return pl.BlockSpec(a.shape, lambda i, nd=nd: (0,) * nd)


def ibrnet_forward(params, rgbs, xyz, projection, direction, xyz_feature,
                   Ks, RTs, scale):
    del Ks, RTs  # reference only splits them into Rs/Ts and never uses them
    V = rgbs.shape[0]
    assert V == N_VIEWS

    # image: NCHW -> (3, V*HW), channels padded to an 8-sublane group
    rgb3 = jnp.transpose(rgbs.astype(jnp.float32).reshape(V, 3, HW),
                         (1, 0, 2)).reshape(3, V * HW)
    rgb8 = jnp.pad(rgb3, ((0, RGB_PAD - 3), (0, 0)))

    # projection: (1,V,3,4) -> (24,3)+(24,1) grouped [u|v|w] rows per view;
    # reference divides u by scale[...,1] and v by scale[...,0] (flip), folded here.
    proj = projection.astype(jnp.float32).reshape(V, 3, 4)
    scl = scale.astype(jnp.float32).reshape(V, 2)
    sx, sy = scl[:, 1], scl[:, 0]
    pad_r = jnp.zeros((8 - V, 3), jnp.float32)
    pad_t = jnp.zeros((8 - V,), jnp.float32)
    proja = jnp.concatenate([proj[:, 0, :3] / sx[:, None], pad_r,
                             proj[:, 1, :3] / sy[:, None], pad_r,
                             proj[:, 2, :3], pad_r], axis=0)             # (24, 3)
    projb = jnp.concatenate([proj[:, 0, 3] / sx, pad_t,
                             proj[:, 1, 3] / sy, pad_t,
                             proj[:, 2, 3], pad_t], axis=0)[:, None]     # (24, 1)

    # points: point-major -> channels-on-sublanes, points on lanes; pad to 128
    xyz_cf = jnp.transpose(xyz.reshape(-1, 3).astype(jnp.float32))       # (3, N)
    dir_cf = jnp.transpose(direction.reshape(-1, 3).astype(jnp.float32))
    xyzf_cf = jnp.transpose(xyz_feature.astype(jnp.float32))             # (F_XYZ, N)
    n_pts = xyz_cf.shape[1]
    n_blocks = pl.cdiv(n_pts, PT)
    n_pad = n_blocks * PT - n_pts
    if n_pad:
        xyz_cf = jnp.pad(xyz_cf, ((0, 0), (0, n_pad)))
        dir_cf = jnp.pad(dir_cf, ((0, 0), (0, n_pad)))
        xyzf_cf = jnp.pad(xyzf_cf, ((0, 0), (0, n_pad)))

    # weights in the padded / split layouts the kernel expects
    ew1 = jnp.pad(params["enc_w1"], ((0, 0), (0, RGB_PAD - 3)))          # (8, 8)
    ew2 = jnp.pad(params["enc_w2"], ((0, C_FEAT_PAD - C_FEAT), (0, 0)))  # (16, 8)
    eb2 = jnp.pad(params["enc_b2"], ((0, C_FEAT_PAD - C_FEAT), (0, 0)))  # (16, 1)
    w1 = params["w1"]
    w1a = jnp.pad(w1[:, :3], ((0, 0), (0, RGB_PAD - 3)))                 # (H_WMLP, 8)
    w1b = jnp.pad(w1[:, 3:3 + C_FEAT],
                  ((0, 0), (0, C_FEAT_PAD - C_FEAT)))                    # (H_WMLP, 16)
    w1c = w1[:, 3 + C_FEAT:]                                             # (H_WMLP, 16)
    sw2 = jnp.pad(params["sh_w2"].reshape(3, N_SH, H_SH),
                  ((0, 0), (0, N_SH_PAD - N_SH), (0, 0))).reshape(3 * N_SH_PAD, H_SH)
    sb2 = jnp.pad(params["sh_b2"].reshape(3, N_SH, 1),
                  ((0, 0), (0, N_SH_PAD - N_SH), (0, 0))).reshape(3 * N_SH_PAD, 1)
    shsel = jnp.repeat(jnp.eye(3, dtype=jnp.float32), N_SH_PAD, axis=1)  # (3, 48)

    args = (proja, projb, rgb8, xyz_cf, dir_cf, xyzf_cf,
            ew1, params["enc_b1"], ew2, eb2,
            w1a, w1b, w1c, params["b1"], params["w2"], params["b2"],
            params["sh_w1"], params["sh_b1"], sw2, sb2, shsel)

    blocked = lambda r: pl.BlockSpec((r, PT), lambda i: (0, i))
    in_specs = [
        _rep_spec(proja), _rep_spec(projb), _rep_spec(rgb8),
        blocked(3), blocked(3), blocked(F_XYZ),
        _rep_spec(ew1), _rep_spec(params["enc_b1"]), _rep_spec(ew2), _rep_spec(eb2),
        _rep_spec(w1a), _rep_spec(w1b), _rep_spec(w1c),
        _rep_spec(params["b1"]), _rep_spec(params["w2"]), _rep_spec(params["b2"]),
        _rep_spec(params["sh_w1"]), _rep_spec(params["sh_b1"]),
        _rep_spec(sw2), _rep_spec(sb2), _rep_spec(shsel),
    ]

    n_total = n_blocks * PT
    out_shape = tuple(jax.ShapeDtypeStruct((3, n_total), jnp.float32) for _ in range(3))
    out_specs = tuple(pl.BlockSpec((3, PT), lambda i: (0, i)) for _ in range(3))

    oc, od, osh = pl.pallas_call(
        _ibrnet_kernel,
        out_shape=out_shape,
        grid=(n_blocks,),
        in_specs=in_specs,
        out_specs=out_specs,
        compiler_params=pltpu.CompilerParams(
            dimension_semantics=("parallel",)),
    )(*args)

    # back to the reference's (N_points, 3) point-major convention
    return oc[:, :n_pts].T, od[:, :n_pts].T, osh[:, :n_pts].T


def init_params(key):
    ks = jax.random.split(key, 12)

    def init(k, shape, s=0.2):
        return jax.random.normal(k, shape, jnp.float32) * s

    # weights stored as (out_dim, in_dim), biases as (out_dim, 1) to match the
    # channels-on-sublanes kernel layout.
    return dict(
        enc_w1=init(ks[0], (8, 3)), enc_b1=init(ks[1], (8, 1)),
        enc_w2=init(ks[2], (C_FEAT, 8)), enc_b2=init(ks[3], (C_FEAT, 1)),
        w1=init(ks[4], (H_WMLP, D_IN)), b1=init(ks[5], (H_WMLP, 1)),
        w2=init(ks[6], (H_WMLP, 1)), b2=init(ks[7], (1, 1)),
        sh_w1=init(ks[8], (H_SH, F_XYZ)), sh_b1=init(ks[9], (H_SH, 1)),
        sh_w2=init(ks[10], (3 * N_SH, H_SH)), sh_b2=init(ks[11], (3 * N_SH, 1)),
    )


if __name__ == "__main__":
    key = jax.random.PRNGKey(0)
    kp, k1, k2, k3, k4, k5 = jax.random.split(key, 6)
    params = init_params(kp)

    N_POINTS = 512
    rgbs = jax.random.uniform(k1, (N_VIEWS, 3, H, W), jnp.float32)
    xyz = jax.random.uniform(k2, (N_POINTS, 3), jnp.float32)
    # projections that keep most points on-screen
    base = jnp.array([[W * 0.5, 0.0, 0.0, W * 0.25],
                      [0.0, H * 0.5, 0.0, H * 0.25],
                      [0.0, 0.0, 0.2, 1.0]], jnp.float32)
    noise = jax.random.normal(k3, (N_VIEWS, 3, 4), jnp.float32) * 0.05
    projection = (base[None] + noise)[None]                   # (1, V, 3, 4)
    direction = jax.random.normal(k4, (N_POINTS, 3), jnp.float32)
    direction = direction / jnp.linalg.norm(direction, axis=-1, keepdims=True)
    xyz_feature = jax.random.normal(k5, (N_POINTS, F_XYZ), jnp.float32)
    Ks = jnp.tile(jnp.eye(3, dtype=jnp.float32)[None], (N_VIEWS, 1, 1))
    RTs = jnp.tile(jnp.eye(3, 4, dtype=jnp.float32)[None], (N_VIEWS, 1, 1))
    scale = jnp.ones((1, N_VIEWS, 2), jnp.float32)

    fwd = jax.jit(ibrnet_forward)
    rgb_compose, rgb_discrete, rgb_shs = fwd(
        params, rgbs, xyz, projection, direction, xyz_feature, Ks, RTs, scale)
    jax.block_until_ready((rgb_compose, rgb_discrete, rgb_shs))
    assert rgb_compose.shape == (N_POINTS, 3)
    assert rgb_discrete.shape == (N_POINTS, 3)
    assert rgb_shs.shape == (N_POINTS, 3)
    print("KERNEL_OK")
</pallas_src>

<mosaic_0001>
module attributes {stable_mosaic.version = 11 : i64} {
  func.func @_ibrnet_kernel(%arg0: i32, %arg1: memref<24x3xf32, #tpu.memory_space<vmem>>, %arg2: memref<24x1xf32, #tpu.memory_space<vmem>>, %arg3: memref<8x1024xf32, #tpu.memory_space<vmem>>, %arg4: memref<3x128xf32, #tpu.memory_space<vmem>>, %arg5: memref<3x128xf32, #tpu.memory_space<vmem>>, %arg6: memref<16x128xf32, #tpu.memory_space<vmem>>, %arg7: memref<8x8xf32, #tpu.memory_space<vmem>>, %arg8: memref<8x1xf32, #tpu.memory_space<vmem>>, %arg9: memref<16x8xf32, #tpu.memory_space<vmem>>, %arg10: memref<16x1xf32, #tpu.memory_space<vmem>>, %arg11: memref<32x8xf32, #tpu.memory_space<vmem>>, %arg12: memref<32x16xf32, #tpu.memory_space<vmem>>, %arg13: memref<32x16xf32, #tpu.memory_space<vmem>>, %arg14: memref<32x1xf32, #tpu.memory_space<vmem>>, %arg15: memref<32x1xf32, #tpu.memory_space<vmem>>, %arg16: memref<1x1xf32, #tpu.memory_space<vmem>>, %arg17: memref<32x16xf32, #tpu.memory_space<vmem>>, %arg18: memref<32x1xf32, #tpu.memory_space<vmem>>, %arg19: memref<48x32xf32, #tpu.memory_space<vmem>>, %arg20: memref<48x1xf32, #tpu.memory_space<vmem>>, %arg21: memref<3x48xf32, #tpu.memory_space<vmem>>, %arg22: memref<3x128xf32, #tpu.memory_space<vmem>>, %arg23: memref<3x128xf32, #tpu.memory_space<vmem>>, %arg24: memref<3x128xf32, #tpu.memory_space<vmem>>) attributes {dimension_semantics = [#tpu.dimension_semantics<parallel>], iteration_bounds = array<i64: 4>, scalar_prefetch = 0 : i64, scratch_operands = 0 : i64, tpu.core_type = #tpu.core_type<tc>, window_params = [{pipeline_mode = #tpu.pipeline_mode<synchronous>, transform_indices = @transform_0, window_bounds = array<i64: 24, 3>}, {pipeline_mode = #tpu.pipeline_mode<synchronous>, transform_indices = @transform_1, window_bounds = array<i64: 24, 1>}, {pipeline_mode = #tpu.pipeline_mode<synchronous>, transform_indices = @transform_2, window_bounds = array<i64: 8, 1024>}, {transform_indices = @transform_3, window_bounds = array<i64: 3, 128>}, {transform_indices = @transform_4, window_bounds = array<i64: 3, 128>}, {transform_indices = @transform_5, window_bounds = array<i64: 16, 128>}, {pipeline_mode = #tpu.pipeline_mode<synchronous>, transform_indices = @transform_6, window_bounds = array<i64: 8, 8>}, {pipeline_mode = #tpu.pipeline_mode<synchronous>, transform_indices = @transform_7, window_bounds = array<i64: 8, 1>}, {pipeline_mode = #tpu.pipeline_mode<synchronous>, transform_indices = @transform_8, window_bounds = array<i64: 16, 8>}, {pipeline_mode = #tpu.pipeline_mode<synchronous>, transform_indices = @transform_9, window_bounds = array<i64: 16, 1>}, {pipeline_mode = #tpu.pipeline_mode<synchronous>, transform_indices = @transform_10, window_bounds = array<i64: 32, 8>}, {pipeline_mode = #tpu.pipeline_mode<synchronous>, transform_indices = @transform_11, window_bounds = array<i64: 32, 16>}, {pipeline_mode = #tpu.pipeline_mode<synchronous>, transform_indices = @transform_12, window_bounds = array<i64: 32, 16>}, {pipeline_mode = #tpu.pipeline_mode<synchronous>, transform_indices = @transform_13, window_bounds = array<i64: 32, 1>}, {pipeline_mode = #tpu.pipeline_mode<synchronous>, transform_indices = @transform_14, window_bounds = array<i64: 32, 1>}, {pipeline_mode = #tpu.pipeline_mode<synchronous>, transform_indices = @transform_15, window_bounds = array<i64: 1, 1>}, {pipeline_mode = #tpu.pipeline_mode<synchronous>, transform_indices = @transform_16, window_bounds = array<i64: 32, 16>}, {pipeline_mode = #tpu.pipeline_mode<synchronous>, transform_indices = @transform_17, window_bounds = array<i64: 32, 1>}, {pipeline_mode = #tpu.pipeline_mode<synchronous>, transform_indices = @transform_18, window_bounds = array<i64: 48, 32>}, {pipeline_mode = #tpu.pipeline_mode<synchronous>, transform_indices = @transform_19, window_bounds = array<i64: 48, 1>}, {pipeline_mode = #tpu.pipeline_mode<synchronous>, transform_indices = @transform_20, window_bounds = array<i64: 3, 48>}, {transform_indices = @transform_21, window_bounds = array<i64: 3, 128>}, {transform_indices = @transform_22, window_bounds = array<i64: 3, 128>}, {transform_indices = @transform_23, window_bounds = array<i64: 3, 128>}]} {
    %c0 = arith.constant 0 : index
    %c0_0 = arith.constant 0 : index
    %0 = vector.load %arg3[%c0, %c0_0] : memref<8x1024xf32, #tpu.memory_space<vmem>>, vector<8x1024xf32>
    %c0_1 = arith.constant 0 : index
    %c0_2 = arith.constant 0 : index
    %1 = vector.load %arg7[%c0_1, %c0_2] : memref<8x8xf32, #tpu.memory_space<vmem>>, vector<8x8xf32>
    %cst = arith.constant dense<0.000000e+00> : vector<8x1024xf32>
    %2 = tpu.matmul %1, %0, %cst {dimension_numbers = #tpu.dot_dimension_numbers<[1], [0], [0], [1], [0, 0, 1, 1], [], []>} : vector<8x8xf32>, vector<8x1024xf32>, vector<8x1024xf32> -> vector<8x1024xf32>
    %c0_3 = arith.constant 0 : index
    %c0_4 = arith.constant 0 : index
    %3 = vector.load %arg8[%c0_3, %c0_4] : memref<8x1xf32, #tpu.memory_space<vmem>>, vector<8x1xf32>
    %4 = vector.broadcast %3 : vector<8x1xf32> to vector<8x1024xf32>
    %5 = arith.addf %2, %4 : vector<8x1024xf32>
    %cst_5 = arith.constant 0.000000e+00 : f32
    %6 = vector.broadcast %cst_5 : f32 to vector<8x1024xf32>
    %7 = arith.maximumf %5, %6 : vector<8x1024xf32>
    %c0_6 = arith.constant 0 : index
    %c0_7 = arith.constant 0 : index
    %8 = vector.load %arg9[%c0_6, %c0_7] : memref<16x8xf32, #tpu.memory_space<vmem>>, vector<16x8xf32>
    %cst_8 = arith.constant dense<0.000000e+00> : vector<16x1024xf32>
    %9 = tpu.matmul %8, %7, %cst_8 {dimension_numbers = #tpu.dot_dimension_numbers<[1], [0], [0], [1], [0, 0, 1, 1], [], []>} : vector<16x8xf32>, vector<8x1024xf32>, vector<16x1024xf32> -> vector<16x1024xf32>
    %c0_9 = arith.constant 0 : index
    %c0_10 = arith.constant 0 : index
    %10 = vector.load %arg10[%c0_9, %c0_10] : memref<16x1xf32, #tpu.memory_space<vmem>>, vector<16x1xf32>
    %11 = vector.broadcast %10 : vector<16x1xf32> to vector<16x1024xf32>
    %12 = arith.addf %9, %11 : vector<16x1024xf32>
    %13 = arith.truncf %0 : vector<8x1024xf32> to vector<8x1024xbf16>
    %14 = arith.truncf %12 : vector<16x1024xf32> to vector<16x1024xbf16>
    %c0_11 = arith.constant 0 : index
    %c0_12 = arith.constant 0 : index
    %15 = vector.load %arg1[%c0_11, %c0_12] : memref<24x3xf32, #tpu.memory_space<vmem>>, vector<24x3xf32>
    %c0_13 = arith.constant 0 : index
    %c0_14 = arith.constant 0 : index
    %16 = vector.load %arg4[%c0_13, %c0_14] : memref<3x128xf32, #tpu.memory_space<vmem>>, vector<3x128xf32>
    %cst_15 = arith.constant dense<0.000000e+00> : vector<24x128xf32>
    %17 = tpu.matmul %15, %16, %cst_15 {dimension_numbers = #tpu.dot_dimension_numbers<[1], [0], [0], [1], [0, 0, 1, 1], [], []>} : vector<24x3xf32>, vector<3x128xf32>, vector<24x128xf32> -> vector<24x128xf32>
    %c0_16 = arith.constant 0 : index
    %c0_17 = arith.constant 0 : index
    %18 = vector.load %arg2[%c0_16, %c0_17] : memref<24x1xf32, #tpu.memory_space<vmem>>, vector<24x1xf32>
    %19 = vector.broadcast %18 : vector<24x1xf32> to vector<24x128xf32>
    %20 = arith.addf %17, %19 : vector<24x128xf32>
    %21 = vector.extract_strided_slice %20 {offsets = [16, 0], sizes = [8, 128], strides = [1, 1]} : vector<24x128xf32> to vector<8x128xf32>
    %cst_18 = arith.constant 9.99999997E-7 : f32
    %22 = vector.broadcast %cst_18 : f32 to vector<8x128xf32>
    %23 = arith.addf %21, %22 : vector<8x128xf32>
    %cst_19 = arith.constant 1.000000e+00 : f32
    %24 = vector.broadcast %cst_19 : f32 to vector<8x128xf32>
    %25 = arith.divf %24, %23 : vector<8x128xf32>
    %26 = vector.extract_strided_slice %20 {offsets = [0, 0], sizes = [8, 128], strides = [1, 1]} : vector<24x128xf32> to vector<8x128xf32>
    %27 = arith.mulf %26, %25 : vector<8x128xf32>
    %28 = vector.extract_strided_slice %20 {offsets = [8, 0], sizes = [8, 128], strides = [1, 1]} : vector<24x128xf32> to vector<8x128xf32>
    %29 = arith.mulf %28, %25 : vector<8x128xf32>
    %30 = tpu.iota {dimensions = array<i32: 0>} : vector<16x1xi32>
    %31 = arith.sitofp %30 : vector<16x1xi32> to vector<16x1xf32>
    %32 = tpu.iota {dimensions = array<i32: 0>} : vector<16x1xi32>
    %33 = arith.sitofp %32 : vector<16x1xi32> to vector<16x1xf32>
    %c0_20 = arith.constant 0 : index
    %c0_21 = arith.constant 0 : index
    %34 = vector.load %arg6[%c0_20, %c0_21] : memref<16x128xf32, #tpu.memory_space<vmem>>, vector<16x128xf32>
    %c0_22 = arith.constant 0 : index
    %c0_23 = arith.constant 0 : index
    %35 = vector.load %arg13[%c0_22, %c0_23] : memref<32x16xf32, #tpu.memory_space<vmem>>, vector<32x16xf32>
    %cst_24 = arith.constant dense<0.000000e+00> : vector<32x128xf32>
    %36 = tpu.matmul %35, %34, %cst_24 {dimension_numbers = #tpu.dot_dimension_numbers<[1], [0], [0], [1], [0, 0, 1, 1], [], []>} : vector<32x16xf32>, vector<16x128xf32>, vector<32x128xf32> -> vector<32x128xf32>
    %c0_25 = arith.constant 0 : index
    %c0_26 = arith.constant 0 : index
    %37 = vector.load %arg14[%c0_25, %c0_26] : memref<32x1xf32, #tpu.memory_space<vmem>>, vector<32x1xf32>
    %38 = vector.broadcast %37 : vector<32x1xf32> to vector<32x128xf32>
    %39 = arith.addf %36, %38 : vector<32x128xf32>
    %40 = vector.extract_strided_slice %27 {offsets = [0, 0], sizes = [1, 128], strides = [1, 1]} : vector<8x128xf32> to vector<1x128xf32>
    %41 = vector.extract_strided_slice %29 {offsets = [0, 0], sizes = [1, 128], strides = [1, 1]} : vector<8x128xf32> to vector<1x128xf32>
    %42 = vector.broadcast %40 : vector<1x128xf32> to vector<16x128xf32>
    %43 = vector.broadcast %31 : vector<16x1xf32> to vector<16x128xf32>
    %44 = arith.subf %42, %43 : vector<16x128xf32>
    %45 = math.absf %44 : vector<16x128xf32>
    %cst_27 = arith.constant 1.000000e+00 : f32
    %46 = vector.broadcast %cst_27 : f32 to vector<16x128xf32>
    %47 = arith.subf %46, %45 : vector<16x128xf32>
    %cst_28 = arith.constant 0.000000e+00 : f32
    %48 = vector.broadcast %cst_28 : f32 to vector<16x128xf32>
    %49 = arith.maximumf %47, %48 : vector<16x128xf32>
    %50 = vector.broadcast %41 : vector<1x128xf32> to vector<16x128xf32>
    %51 = vector.broadcast %33 : vector<16x1xf32> to vector<16x128xf32>
    %52 = arith.subf %50, %51 : vector<16x128xf32>
    %53 = math.absf %52 : vector<16x128xf32>
    %cst_29 = arith.constant 1.000000e+00 : f32
    %54 = vector.broadcast %cst_29 : f32 to vector<16x128xf32>
    %55 = arith.subf %54, %53 : vector<16x128xf32>
    %cst_30 = arith.constant 0.000000e+00 : f32
    %56 = vector.broadcast %cst_30 : f32 to vector<16x128xf32>
    %57 = arith.maximumf %55, %56 : vector<16x128xf32>
    %58 = vector.shape_cast %57 : vector<16x128xf32> to vector<16x1x128xf32>
    %59 = vector.shape_cast %49 : vector<16x128xf32> to vector<1x16x128xf32>
    %60 = vector.broadcast %58 : vector<16x1x128xf32> to vector<16x16x128xf32>
    %61 = vector.broadcast %59 : vector<1x16x128xf32> to vector<16x16x128xf32>
    %62 = arith.mulf %60, %61 : vector<16x16x128xf32>
    %63 = vector.shape_cast %62 : vector<16x16x128xf32> to vector<256x128xf32>
    %64 = arith.truncf %63 : vector<256x128xf32> to vector<256x128xbf16>
    %65 = vector.extract_strided_slice %13 {offsets = [0, 0], sizes = [8, 256], strides = [1, 1]} : vector<8x1024xbf16> to vector<8x256xbf16>
    %cst_31 = arith.constant dense<0.000000e+00> : vector<8x128xf32>
    %66 = tpu.matmul %65, %64, %cst_31 {dimension_numbers = #tpu.dot_dimension_numbers<[1], [0], [0], [1], [0, 0, 1, 1], [], []>} : vector<8x256xbf16>, vector<256x128xbf16>, vector<8x128xf32> -> vector<8x128xf32>
    %67 = vector.extract_strided_slice %14 {offsets = [0, 0], sizes = [16, 256], strides = [1, 1]} : vector<16x1024xbf16> to vector<16x256xbf16>
    %cst_32 = arith.constant dense<0.000000e+00> : vector<16x128xf32>
    %68 = tpu.matmul %67, %64, %cst_32 {dimension_numbers = #tpu.dot_dimension_numbers<[1], [0], [0], [1], [0, 0, 1, 1], [], []>} : vector<16x256xbf16>, vector<256x128xbf16>, vector<16x128xf32> -> vector<16x128xf32>
    %c0_33 = arith.constant 0 : index
    %c0_34 = arith.constant 0 : index
    %69 = vector.load %arg11[%c0_33, %c0_34] : memref<32x8xf32, #tpu.memory_space<vmem>>, vector<32x8xf32>
    %cst_35 = arith.constant dense<0.000000e+00> : vector<32x128xf32>
    %70 = tpu.matmul %69, %66, %cst_35 {dimension_numbers = #tpu.dot_dimension_numbers<[1], [0], [0], [1], [0, 0, 1, 1], [], []>} : vector<32x8xf32>, vector<8x128xf32>, vector<32x128xf32> -> vector<32x128xf32>
    %c0_36 = arith.constant 0 : index
    %c0_37 = arith.constant 0 : index
    %71 = vector.load %arg12[%c0_36, %c0_37] : memref<32x16xf32, #tpu.memory_space<vmem>>, vector<32x16xf32>
    %cst_38 = arith.constant dense<0.000000e+00> : vector<32x128xf32>
    %72 = tpu.matmul %71, %68, %cst_38 {dimension_numbers = #tpu.dot_dimension_numbers<[1], [0], [0], [1], [0, 0, 1, 1], [], []>} : vector<32x16xf32>, vector<16x128xf32>, vector<32x128xf32> -> vector<32x128xf32>
    %73 = arith.addf %70, %72 : vector<32x128xf32>
    %74 = arith.addf %73, %39 : vector<32x128xf32>
    %cst_39 = arith.constant 0.000000e+00 : f32
    %75 = vector.broadcast %cst_39 : f32 to vector<32x128xf32>
    %76 = arith.maximumf %74, %75 : vector<32x128xf32>
    %c0_40 = arith.constant 0 : index
    %c0_41 = arith.constant 0 : index
    %77 = vector.load %arg15[%c0_40, %c0_41] : memref<32x1xf32, #tpu.memory_space<vmem>>, vector<32x1xf32>
    %78 = vector.broadcast %77 : vector<32x1xf32> to vector<32x128xf32>
    %79 = arith.mulf %78, %76 : vector<32x128xf32>
    %cst_42 = arith.constant dense<0.000000e+00> : vector<128xf32>
    %80 = vector.multi_reduction <add>, %79, %cst_42 [0] : vector<32x128xf32> to vector<128xf32>
    %81 = vector.shape_cast %80 : vector<128xf32> to vector<1x128xf32>
    %c0_43 = arith.constant 0 : index
    %c0_44 = arith.constant 0 : index
    %82 = vector.load %arg16[%c0_43, %c0_44] : memref<1x1xf32, #tpu.memory_space<vmem>>, vector<1x1xf32>
    %83 = vector.broadcast %82 : vector<1x1xf32> to vector<1x128xf32>
    %84 = arith.addf %81, %83 : vector<1x128xf32>
    %85 = vector.extract_strided_slice %66 {offsets = [0, 0], sizes = [3, 128], strides = [1, 1]} : vector<8x128xf32> to vector<3x128xf32>
    %86 = vector.extract_strided_slice %27 {offsets = [1, 0], sizes = [1, 128], strides = [1, 1]} : vector<8x128xf32> to vector<1x128xf32>
    %87 = vector.extract_strided_slice %29 {offsets = [1, 0], sizes = [1, 128], strides = [1, 1]} : vector<8x128xf32> to vector<1x128xf32>
    %88 = vector.broadcast %86 : vector<1x128xf32> to vector<16x128xf32>
    %89 = vector.broadcast %31 : vector<16x1xf32> to vector<16x128xf32>
    %90 = arith.subf %88, %89 : vector<16x128xf32>
    %91 = math.absf %90 : vector<16x128xf32>
    %cst_45 = arith.constant 1.000000e+00 : f32
    %92 = vector.broadcast %cst_45 : f32 to vector<16x128xf32>
    %93 = arith.subf %92, %91 : vector<16x128xf32>
    %cst_46 = arith.constant 0.000000e+00 : f32
    %94 = vector.broadcast %cst_46 : f32 to vector<16x128xf32>
    %95 = arith.maximumf %93, %94 : vector<16x128xf32>
    %96 = vector.broadcast %87 : vector<1x128xf32> to vector<16x128xf32>
    %97 = vector.broadcast %33 : vector<16x1xf32> to vector<16x128xf32>
    %98 = arith.subf %96, %97 : vector<16x128xf32>
    %99 = math.absf %98 : vector<16x128xf32>
    %cst_47 = arith.constant 1.000000e+00 : f32
    %100 = vector.broadcast %cst_47 : f32 to vector<16x128xf32>
    %101 = arith.subf %100, %99 : vector<16x128xf32>
    %cst_48 = arith.constant 0.000000e+00 : f32
    %102 = vector.broadcast %cst_48 : f32 to vector<16x128xf32>
    %103 = arith.maximumf %101, %102 : vector<16x128xf32>
    %104 = vector.shape_cast %103 : vector<16x128xf32> to vector<16x1x128xf32>
    %105 = vector.shape_cast %95 : vector<16x128xf32> to vector<1x16x128xf32>
    %106 = vector.broadcast %104 : vector<16x1x128xf32> to vector<16x16x128xf32>
    %107 = vector.broadcast %105 : vector<1x16x128xf32> to vector<16x16x128xf32>
    %108 = arith.mulf %106, %107 : vector<16x16x128xf32>
    %109 = vector.shape_cast %108 : vector<16x16x128xf32> to vector<256x128xf32>
    %110 = arith.truncf %109 : vector<256x128xf32> to vector<256x128xbf16>
    %111 = vector.extract_strided_slice %13 {offsets = [0, 256], sizes = [8, 256], strides = [1, 1]} : vector<8x1024xbf16> to vector<8x256xbf16>
    %cst_49 = arith.constant dense<0.000000e+00> : vector<8x128xf32>
    %112 = tpu.matmul %111, %110, %cst_49 {dimension_numbers = #tpu.dot_dimension_numbers<[1], [0], [0], [1], [0, 0, 1, 1], [], []>} : vector<8x256xbf16>, vector<256x128xbf16>, vector<8x128xf32> -> vector<8x128xf32>
    %113 = vector.extract_strided_slice %14 {offsets = [0, 256], sizes = [16, 256], strides = [1, 1]} : vector<16x1024xbf16> to vector<16x256xbf16>
    %cst_50 = arith.constant dense<0.000000e+00> : vector<16x128xf32>
    %114 = tpu.matmul %113, %110, %cst_50 {dimension_numbers = #tpu.dot_dimension_numbers<[1], [0], [0], [1], [0, 0, 1, 1], [], []>} : vector<16x256xbf16>, vector<256x128xbf16>, vector<16x128xf32> -> vector<16x128xf32>
    %c0_51 = arith.constant 0 : index
    %c0_52 = arith.constant 0 : index
    %115 = vector.load %arg11[%c0_51, %c0_52] : memref<32x8xf32, #tpu.memory_space<vmem>>, vector<32x8xf32>
    %cst_53 = arith.constant dense<0.000000e+00> : vector<32x128xf32>
    %116 = tpu.matmul %115, %112, %cst_53 {dimension_numbers = #tpu.dot_dimension_numbers<[1], [0], [0], [1], [0, 0, 1, 1], [], []>} : vector<32x8xf32>, vector<8x128xf32>, vector<32x128xf32> -> vector<32x128xf32>
    %c0_54 = arith.constant 0 : index
    %c0_55 = arith.constant 0 : index
    %117 = vector.load %arg12[%c0_54, %c0_55] : memref<32x16xf32, #tpu.memory_space<vmem>>, vector<32x16xf32>
    %cst_56 = arith.constant dense<0.000000e+00> : vector<32x128xf32>
    %118 = tpu.matmul %117, %114, %cst_56 {dimension_numbers = #tpu.dot_dimension_numbers<[1], [0], [0], [1], [0, 0, 1, 1], [], []>} : vector<32x16xf32>, vector<16x128xf32>, vector<32x128xf32> -> vector<32x128xf32>
    %119 = arith.addf %116, %118 : vector<32x128xf32>
    %120 = arith.addf %119, %39 : vector<32x128xf32>
    %cst_57 = arith.constant 0.000000e+00 : f32
    %121 = vector.broadcast %cst_57 : f32 to vector<32x128xf32>
    %122 = arith.maximumf %120, %121 : vector<32x128xf32>
    %c0_58 = arith.constant 0 : index
    %c0_59 = arith.constant 0 : index
    %123 = vector.load %arg15[%c0_58, %c0_59] : memref<32x1xf32, #tpu.memory_space<vmem>>, vector<32x1xf32>
    %124 = vector.broadcast %123 : vector<32x1xf32> to vector<32x128xf32>
    %125 = arith.mulf %124, %122 : vector<32x128xf32>
    %cst_60 = arith.constant dense<0.000000e+00> : vector<128xf32>
    %126 = vector.multi_reduction <add>, %125, %cst_60 [0] : vector<32x128xf32> to vector<128xf32>
    %127 = vector.shape_cast %126 : vector<128xf32> to vector<1x128xf32>
    %c0_61 = arith.constant 0 : index
    %c0_62 = arith.constant 0 : index
    %128 = vector.load %arg16[%c0_61, %c0_62] : memref<1x1xf32, #tpu.memory_space<vmem>>, vector<1x1xf32>
    %129 = vector.broadcast %128 : vector<1x1xf32> to vector<1x128xf32>
    %130 = arith.addf %127, %129 : vector<1x128xf32>
    %131 = vector.extract_strided_slice %112 {offsets = [0, 0], sizes = [3, 128], strides = [1, 1]} : vector<8x128xf32> to vector<3x128xf32>
    %132 = vector.extract_strided_slice %27 {offsets = [2, 0], sizes = [1, 128], strides = [1, 1]} : vector<8x128xf32> to vector<1x128xf32>
    %133 = vector.extract_strided_slice %29 {offsets = [2, 0], sizes = [1, 128], strides = [1, 1]} : vector<8x128xf32> to vector<1x128xf32>
    %134 = vector.broadcast %132 : vector<1x128xf32> to vector<16x128xf32>
    %135 = vector.broadcast %31 : vector<16x1xf32> to vector<16x128xf32>
    %136 = arith.subf %134, %135 : vector<16x128xf32>
    %137 = math.absf %136 : vector<16x128xf32>
    %cst_63 = arith.constant 1.000000e+00 : f32
    %138 = vector.broadcast %cst_63 : f32 to vector<16x128xf32>
    %139 = arith.subf %138, %137 : vector<16x128xf32>
    %cst_64 = arith.constant 0.000000e+00 : f32
    %140 = vector.broadcast %cst_64 : f32 to vector<16x128xf32>
    %141 = arith.maximumf %139, %140 : vector<16x128xf32>
    %142 = vector.broadcast %133 : vector<1x128xf32> to vector<16x128xf32>
    %143 = vector.broadcast %33 : vector<16x1xf32> to vector<16x128xf32>
    %144 = arith.subf %142, %143 : vector<16x128xf32>
    %145 = math.absf %144 : vector<16x128xf32>
    %cst_65 = arith.constant 1.000000e+00 : f32
    %146 = vector.broadcast %cst_65 : f32 to vector<16x128xf32>
    %147 = arith.subf %146, %145 : vector<16x128xf32>
    %cst_66 = arith.constant 0.000000e+00 : f32
    %148 = vector.broadcast %cst_66 : f32 to vector<16x128xf32>
    %149 = arith.maximumf %147, %148 : vector<16x128xf32>
    %150 = vector.shape_cast %149 : vector<16x128xf32> to vector<16x1x128xf32>
    %151 = vector.shape_cast %141 : vector<16x128xf32> to vector<1x16x128xf32>
    %152 = vector.broadcast %150 : vector<16x1x128xf32> to vector<16x16x128xf32>
    %153 = vector.broadcast %151 : vector<1x16x128xf32> to vector<16x16x128xf32>
    %154 = arith.mulf %152, %153 : vector<16x16x128xf32>
    %155 = vector.shape_cast %154 : vector<16x16x128xf32> to vector<256x128xf32>
    %156 = arith.truncf %155 : vector<256x128xf32> to vector<256x128xbf16>
    %157 = vector.extract_strided_slice %13 {offsets = [0, 512], sizes = [8, 256], strides = [1, 1]} : vector<8x1024xbf16> to vector<8x256xbf16>
    %cst_67 = arith.constant dense<0.000000e+00> : vector<8x128xf32>
    %158 = tpu.matmul %157, %156, %cst_67 {dimension_numbers = #tpu.dot_dimension_numbers<[1], [0], [0], [1], [0, 0, 1, 1], [], []>} : vector<8x256xbf16>, vector<256x128xbf16>, vector<8x128xf32> -> vector<8x128xf32>
    %159 = vector.extract_strided_slice %14 {offsets = [0, 512], sizes = [16, 256], strides = [1, 1]} : vector<16x1024xbf16> to vector<16x256xbf16>
    %cst_68 = arith.constant dense<0.000000e+00> : vector<16x128xf32>
    %160 = tpu.matmul %159, %156, %cst_68 {dimension_numbers = #tpu.dot_dimension_numbers<[1], [0], [0], [1], [0, 0, 1, 1], [], []>} : vector<16x256xbf16>, vector<256x128xbf16>, vector<16x128xf32> -> vector<16x128xf32>
    %c0_69 = arith.constant 0 : index
    %c0_70 = arith.constant 0 : index
    %161 = vector.load %arg11[%c0_69, %c0_70] : memref<32x8xf32, #tpu.memory_space<vmem>>, vector<32x8xf32>
    %cst_71 = arith.constant dense<0.000000e+00> : vector<32x128xf32>
    %162 = tpu.matmul %161, %158, %cst_71 {dimension_numbers = #tpu.dot_dimension_numbers<[1], [0], [0], [1], [0, 0, 1, 1], [], []>} : vector<32x8xf32>, vector<8x128xf32>, vector<32x128xf32> -> vector<32x128xf32>
    %c0_72 = arith.constant 0 : index
    %c0_73 = arith.constant 0 : index
    %163 = vector.load %arg12[%c0_72, %c0_73] : memref<32x16xf32, #tpu.memory_space<vmem>>, vector<32x16xf32>
    %cst_74 = arith.constant dense<0.000000e+00> : vector<32x128xf32>
    %164 = tpu.matmul %163, %160, %cst_74 {dimension_numbers = #tpu.dot_dimension_numbers<[1], [0], [0], [1], [0, 0, 1, 1], [], []>} : vector<32x16xf32>, vector<16x128xf32>, vector<32x128xf32> -> vector<32x128xf32>
    %165 = arith.addf %162, %164 : vector<32x128xf32>
    %166 = arith.addf %165, %39 : vector<32x128xf32>
    %cst_75 = arith.constant 0.000000e+00 : f32
    %167 = vector.broadcast %cst_75 : f32 to vector<32x128xf32>
    %168 = arith.maximumf %166, %167 : vector<32x128xf32>
    %c0_76 = arith.constant 0 : index
    %c0_77 = arith.constant 0 : index
    %169 = vector.load %arg15[%c0_76, %c0_77] : memref<32x1xf32, #tpu.memory_space<vmem>>, vector<32x1xf32>
    %170 = vector.broadcast %169 : vector<32x1xf32> to vector<32x128xf32>
    %171 = arith.mulf %170, %168 : vector<32x128xf32>
    %cst_78 = arith.constant dense<0.000000e+00> : vector<128xf32>
    %172 = vector.multi_reduction <add>, %171, %cst_78 [0] : vector<32x128xf32> to vector<128xf32>
    %173 = vector.shape_cast %172 : vector<128xf32> to vector<1x128xf32>
    %c0_79 = arith.constant 0 : index
    %c0_80 = arith.constant 0 : index
    %174 = vector.load %arg16[%c0_79, %c0_80] : memref<1x1xf32, #tpu.memory_space<vmem>>, vector<1x1xf32>
    %175 = vector.broadcast %174 : vector<1x1xf32> to vector<1x128xf32>
    %176 = arith.addf %173, %175 : vector<1x128xf32>
    %177 = vector.extract_strided_slice %158 {offsets = [0, 0], sizes = [3, 128], strides = [1, 1]} : vector<8x128xf32> to vector<3x128xf32>
    %178 = vector.extract_strided_slice %27 {offsets = [3, 0], sizes = [1, 128], strides = [1, 1]} : vector<8x128xf32> to vector<1x128xf32>
    %179 = vector.extract_strided_slice %29 {offsets = [3, 0], sizes = [1, 128], strides = [1, 1]} : vector<8x128xf32> to vector<1x128xf32>
    %180 = vector.broadcast %178 : vector<1x128xf32> to vector<16x128xf32>
    %181 = vector.broadcast %31 : vector<16x1xf32> to vector<16x128xf32>
    %182 = arith.subf %180, %181 : vector<16x128xf32>
    %183 = math.absf %182 : vector<16x128xf32>
    %cst_81 = arith.constant 1.000000e+00 : f32
    %184 = vector.broadcast %cst_81 : f32 to vector<16x128xf32>
    %185 = arith.subf %184, %183 : vector<16x128xf32>
    %cst_82 = arith.constant 0.000000e+00 : f32
    %186 = vector.broadcast %cst_82 : f32 to vector<16x128xf32>
    %187 = arith.maximumf %185, %186 : vector<16x128xf32>
    %188 = vector.broadcast %179 : vector<1x128xf32> to vector<16x128xf32>
    %189 = vector.broadcast %33 : vector<16x1xf32> to vector<16x128xf32>
    %190 = arith.subf %188, %189 : vector<16x128xf32>
    %191 = math.absf %190 : vector<16x128xf32>
    %cst_83 = arith.constant 1.000000e+00 : f32
    %192 = vector.broadcast %cst_83 : f32 to vector<16x128xf32>
    %193 = arith.subf %192, %191 : vector<16x128xf32>
    %cst_84 = arith.constant 0.000000e+00 : f32
    %194 = vector.broadcast %cst_84 : f32 to vector<16x128xf32>
    %195 = arith.maximumf %193, %194 : vector<16x128xf32>
    %196 = vector.shape_cast %195 : vector<16x128xf32> to vector<16x1x128xf32>
    %197 = vector.shape_cast %187 : vector<16x128xf32> to vector<1x16x128xf32>
    %198 = vector.broadcast %196 : vector<16x1x128xf32> to vector<16x16x128xf32>
    %199 = vector.broadcast %197 : vector<1x16x128xf32> to vector<16x16x128xf32>
    %200 = arith.mulf %198, %199 : vector<16x16x128xf32>
    %201 = vector.shape_cast %200 : vector<16x16x128xf32> to vector<256x128xf32>
    %202 = arith.truncf %201 : vector<256x128xf32> to vector<256x128xbf16>
    %203 = vector.extract_strided_slice %13 {offsets = [0, 768], sizes = [8, 256], strides = [1, 1]} : vector<8x1024xbf16> to vector<8x256xbf16>
    %cst_85 = arith.constant dense<0.000000e+00> : vector<8x128xf32>
    %204 = tpu.matmul %203, %202, %cst_85 {dimension_numbers = #tpu.dot_dimension_numbers<[1], [0], [0], [1], [0, 0, 1, 1], [], []>} : vector<8x256xbf16>, vector<256x128xbf16>, vector<8x128xf32> -> vector<8x128xf32>
    %205 = vector.extract_strided_slice %14 {offsets = [0, 768], sizes = [16, 256], strides = [1, 1]} : vector<16x1024xbf16> to vector<16x256xbf16>
    %cst_86 = arith.constant dense<0.000000e+00> : vector<16x128xf32>
    %206 = tpu.matmul %205, %202, %cst_86 {dimension_numbers = #tpu.dot_dimension_numbers<[1], [0], [0], [1], [0, 0, 1, 1], [], []>} : vector<16x256xbf16>, vector<256x128xbf16>, vector<16x128xf32> -> vector<16x128xf32>
    %c0_87 = arith.constant 0 : index
    %c0_88 = arith.constant 0 : index
    %207 = vector.load %arg11[%c0_87, %c0_88] : memref<32x8xf32, #tpu.memory_space<vmem>>, vector<32x8xf32>
    %cst_89 = arith.constant dense<0.000000e+00> : vector<32x128xf32>
    %208 = tpu.matmul %207, %204, %cst_89 {dimension_numbers = #tpu.dot_dimension_numbers<[1], [0], [0], [1], [0, 0, 1, 1], [], []>} : vector<32x8xf32>, vector<8x128xf32>, vector<32x128xf32> -> vector<32x128xf32>
    %c0_90 = arith.constant 0 : index
    %c0_91 = arith.constant 0 : index
    %209 = vector.load %arg12[%c0_90, %c0_91] : memref<32x16xf32, #tpu.memory_space<vmem>>, vector<32x16xf32>
    %cst_92 = arith.constant dense<0.000000e+00> : vector<32x128xf32>
    %210 = tpu.matmul %209, %206, %cst_92 {dimension_numbers = #tpu.dot_dimension_numbers<[1], [0], [0], [1], [0, 0, 1, 1], [], []>} : vector<32x16xf32>, vector<16x128xf32>, vector<32x128xf32> -> vector<32x128xf32>
    %211 = arith.addf %208, %210 : vector<32x128xf32>
    %212 = arith.addf %211, %39 : vector<32x128xf32>
    %cst_93 = arith.constant 0.000000e+00 : f32
    %213 = vector.broadcast %cst_93 : f32 to vector<32x128xf32>
    %214 = arith.maximumf %212, %213 : vector<32x128xf32>
    %c0_94 = arith.constant 0 : index
    %c0_95 = arith.constant 0 : index
    %215 = vector.load %arg15[%c0_94, %c0_95] : memref<32x1xf32, #tpu.memory_space<vmem>>, vector<32x1xf32>
    %216 = vector.broadcast %215 : vector<32x1xf32> to vector<32x128xf32>
    %217 = arith.mulf %216, %214 : vector<32x128xf32>
    %cst_96 = arith.constant dense<0.000000e+00> : vector<128xf32>
    %218 = vector.multi_reduction <add>, %217, %cst_96 [0] : vector<32x128xf32> to vector<128xf32>
    %219 = vector.shape_cast %218 : vector<128xf32> to vector<1x128xf32>
    %c0_97 = arith.constant 0 : index
    %c0_98 = arith.constant 0 : index
    %220 = vector.load %arg16[%c0_97, %c0_98] : memref<1x1xf32, #tpu.memory_space<vmem>>, vector<1x1xf32>
    %221 = vector.broadcast %220 : vector<1x1xf32> to vector<1x128xf32>
    %222 = arith.addf %219, %221 : vector<1x128xf32>
    %223 = vector.extract_strided_slice %204 {offsets = [0, 0], sizes = [3, 128], strides = [1, 1]} : vector<8x128xf32> to vector<3x128xf32>
    %224 = arith.maximumf %84, %130 : vector<1x128xf32>
    %225 = arith.maximumf %224, %176 : vector<1x128xf32>
    %226 = arith.maximumf %225, %222 : vector<1x128xf32>
    %227 = arith.subf %84, %226 : vector<1x128xf32>
    %228 = math.exp %227 : vector<1x128xf32>
    %229 = arith.subf %130, %226 : vector<1x128xf32>
    %230 = math.exp %229 : vector<1x128xf32>
    %231 = arith.subf %176, %226 : vector<1x128xf32>
    %232 = math.exp %231 : vector<1x128xf32>
    %233 = arith.subf %222, %226 : vector<1x128xf32>
    %234 = math.exp %233 : vector<1x128xf32>
    %235 = arith.addf %228, %230 : vector<1x128xf32>
    %236 = arith.addf %235, %232 : vector<1x128xf32>
    %237 = arith.addf %236, %234 : vector<1x128xf32>
    %cst_99 = arith.constant 1.000000e+00 : f32
    %238 = vector.broadcast %cst_99 : f32 to vector<1x128xf32>
    %239 = arith.divf %238, %237 : vector<1x128xf32>
    %240 = arith.mulf %228, %239 : vector<1x128xf32>
    %241 = vector.broadcast %240 : vector<1x128xf32> to vector<3x128xf32>
    %242 = arith.mulf %85, %241 : vector<3x128xf32>
    %243 = arith.mulf %230, %239 : vector<1x128xf32>
    %244 = vector.broadcast %243 : vector<1x128xf32> to vector<3x128xf32>
    %245 = arith.mulf %131, %244 : vector<3x128xf32>
    %246 = arith.addf %242, %245 : vector<3x128xf32>
    %247 = arith.mulf %232, %239 : vector<1x128xf32>
    %248 = vector.broadcast %247 : vector<1x128xf32> to vector<3x128xf32>
    %249 = arith.mulf %177, %248 : vector<3x128xf32>
    %250 = arith.addf %246, %249 : vector<3x128xf32>
    %251 = arith.mulf %234, %239 : vector<1x128xf32>
    %252 = vector.broadcast %251 : vector<1x128xf32> to vector<3x128xf32>
    %253 = arith.mulf %223, %252 : vector<3x128xf32>
    %254 = arith.addf %250, %253 : vector<3x128xf32>
    %c0_100 = arith.constant 0 : index
    %c0_101 = arith.constant 0 : index
    %255 = vector.load %arg23[%c0_100, %c0_101] : memref<3x128xf32, #tpu.memory_space<vmem>>, vector<3x128xf32>
    tpu.vector_store %arg23[%c0_100, %c0_101], %254 {strides = array<i32>} : memref<3x128xf32, #tpu.memory_space<vmem>>, vector<3x128xf32>,
    %c0_102 = arith.constant 0 : index
    %c0_103 = arith.constant 0 : index
    %256 = vector.load %arg17[%c0_102, %c0_103] : memref<32x16xf32, #tpu.memory_space<vmem>>, vector<32x16xf32>
    %cst_104 = arith.constant dense<0.000000e+00> : vector<32x128xf32>
    %257 = tpu.matmul %256, %34, %cst_104 {dimension_numbers = #tpu.dot_dimension_numbers<[1], [0], [0], [1], [0, 0, 1, 1], [], []>} : vector<32x16xf32>, vector<16x128xf32>, vector<32x128xf32> -> vector<32x128xf32>
    %c0_105 = arith.constant 0 : index
    %c0_106 = arith.constant 0 : index
    %258 = vector.load %arg18[%c0_105, %c0_106] : memref<32x1xf32, #tpu.memory_space<vmem>>, vector<32x1xf32>
    %259 = vector.broadcast %258 : vector<32x1xf32> to vector<32x128xf32>
    %260 = arith.addf %257, %259 : vector<32x128xf32>
    %cst_107 = arith.constant 0.000000e+00 : f32
    %261 = vector.broadcast %cst_107 : f32 to vector<32x128xf32>
    %262 = arith.maximumf %260, %261 : vector<32x128xf32>
    %c0_108 = arith.constant 0 : index
    %c0_109 = arith.constant 0 : index
    %263 = vector.load %arg19[%c0_108, %c0_109] : memref<48x32xf32, #tpu.memory_space<vmem>>, vector<48x32xf32>
    %cst_110 = arith.constant dense<0.000000e+00> : vector<48x128xf32>
    %264 = tpu.matmul %263, %262, %cst_110 {dimension_numbers = #tpu.dot_dimension_numbers<[1], [0], [0], [1], [0, 0, 1, 1], [], []>} : vector<48x32xf32>, vector<32x128xf32>, vector<48x128xf32> -> vector<48x128xf32>
    %c0_111 = arith.constant 0 : index
    %c0_112 = arith.constant 0 : index
    %265 = vector.load %arg20[%c0_111, %c0_112] : memref<48x1xf32, #tpu.memory_space<vmem>>, vector<48x1xf32>
    %266 = vector.broadcast %265 : vector<48x1xf32> to vector<48x128xf32>
    %267 = arith.addf %264, %266 : vector<48x128xf32>
    %c0_113 = arith.constant 0 : index
    %c0_114 = arith.constant 0 : index
    %268 = vector.load %arg5[%c0_113, %c0_114] : memref<3x128xf32, #tpu.memory_space<vmem>>, vector<1x128xf32>
    %c1 = arith.constant 1 : index
    %c0_115 = arith.constant 0 : index
    %269 = vector.load %arg5[%c1, %c0_115] : memref<3x128xf32, #tpu.memory_space<vmem>>, vector<1x128xf32>
    %c2 = arith.constant 2 : index
    %c0_116 = arith.constant 0 : index
    %270 = vector.load %arg5[%c2, %c0_116] : memref<3x128xf32, #tpu.memory_space<vmem>>, vector<1x128xf32>
    %271 = arith.mulf %268, %268 : vector<1x128xf32>
    %272 = arith.mulf %269, %269 : vector<1x128xf32>
    %273 = arith.mulf %270, %270 : vector<1x128xf32>
    %cst_117 = arith.constant 0.282094806 : f32
    %274 = vector.broadcast %cst_117 : f32 to vector<1x128xf32>
    %cst_118 = arith.constant -0.488602519 : f32
    %275 = vector.broadcast %cst_118 : f32 to vector<1x128xf32>
    %276 = arith.mulf %275, %269 : vector<1x128xf32>
    %cst_119 = arith.constant 0.488602519 : f32
    %277 = vector.broadcast %cst_119 : f32 to vector<1x128xf32>
    %278 = arith.mulf %277, %270 : vector<1x128xf32>
    %cst_120 = arith.constant -0.488602519 : f32
    %279 = vector.broadcast %cst_120 : f32 to vector<1x128xf32>
    %280 = arith.mulf %279, %268 : vector<1x128xf32>
    %cst_121 = arith.constant 1.09254849 : f32
    %281 = vector.broadcast %cst_121 : f32 to vector<1x128xf32>
    %282 = arith.mulf %281, %268 : vector<1x128xf32>
    %283 = arith.mulf %282, %269 : vector<1x128xf32>
    %cst_122 = arith.constant -1.09254849 : f32
    %284 = vector.broadcast %cst_122 : f32 to vector<1x128xf32>
    %285 = arith.mulf %284, %269 : vector<1x128xf32>
    %286 = arith.mulf %285, %270 : vector<1x128xf32>
    %cst_123 = arith.constant 2.000000e+00 : f32
    %287 = vector.broadcast %cst_123 : f32 to vector<1x128xf32>
    %288 = arith.mulf %287, %273 : vector<1x128xf32>
    %289 = arith.subf %288, %271 : vector<1x128xf32>
    %290 = arith.subf %289, %272 : vector<1x128xf32>
    %cst_124 = arith.constant 0.31539157 : f32
    %291 = vector.broadcast %cst_124 : f32 to vector<1x128xf32>
    %292 = arith.mulf %291, %290 : vector<1x128xf32>
    %cst_125 = arith.constant -1.09254849 : f32
    %293 = vector.broadcast %cst_125 : f32 to vector<1x128xf32>
    %294 = arith.mulf %293, %268 : vector<1x128xf32>
    %295 = arith.mulf %294, %270 : vector<1x128xf32>
    %296 = arith.subf %271, %272 : vector<1x128xf32>
    %cst_126 = arith.constant 0.546274245 : f32
    %297 = vector.broadcast %cst_126 : f32 to vector<1x128xf32>
    %298 = arith.mulf %297, %296 : vector<1x128xf32>
    %cst_127 = arith.constant 0.000000e+00 : f32
    %299 = vector.broadcast %cst_127 : f32 to vector<7x128xf32>
    %300 = tpu.concatenate %274, %276, %278, %280, %283, %286, %292, %295, %298, %299 in 0 : vector<1x128xf32>, vector<1x128xf32>, vector<1x128xf32>, vector<1x128xf32>, vector<1x128xf32>, vector<1x128xf32>, vector<1x128xf32>, vector<1x128xf32>, vector<1x128xf32>, vector<7x128xf32> -> vector<16x128xf32>
    %301 = tpu.concatenate %300, %300, %300 in 0 : vector<16x128xf32>, vector<16x128xf32>, vector<16x128xf32> -> vector<48x128xf32>
    %c0_128 = arith.constant 0 : index
    %c0_129 = arith.constant 0 : index
    %302 = vector.load %arg21[%c0_128, %c0_129] : memref<3x48xf32, #tpu.memory_space<vmem>>, vector<3x48xf32>
    %303 = arith.mulf %267, %301 : vector<48x128xf32>
    %cst_130 = arith.constant dense<0.000000e+00> : vector<3x128xf32>
    %304 = tpu.matmul %302, %303, %cst_130 {dimension_numbers = #tpu.dot_dimension_numbers<[1], [0], [0], [1], [0, 0, 1, 1], [], []>} : vector<3x48xf32>, vector<48x128xf32>, vector<3x128xf32> -> vector<3x128xf32>
    %305 = math.tanh %304 : vector<3x128xf32>
    %cst_131 = arith.constant 2.500000e-01 : f32
    %306 = vector.broadcast %cst_131 : f32 to vector<3x128xf32>
    %307 = arith.mulf %305, %306 : vector<3x128xf32>
    %cst_132 = arith.constant 0.000000e+00 : f32
    %308 = vector.broadcast %cst_132 : f32 to vector<3x128xf32>
    %309 = arith.maximumf %307, %308 : vector<3x128xf32>
    %c0_133 = arith.constant 0 : index
    %c0_134 = arith.constant 0 : index
    %310 = vector.load %arg24[%c0_133, %c0_134] : memref<3x128xf32, #tpu.memory_space<vmem>>, vector<3x128xf32>
    tpu.vector_store %arg24[%c0_133, %c0_134], %309 {strides = array<i32>} : memref<3x128xf32, #tpu.memory_space<vmem>>, vector<3x128xf32>,
    %311 = arith.addf %254, %309 : vector<3x128xf32>
    %cst_135 = arith.constant 0.000000e+00 : f32
    %cst_136 = arith.constant 1.000000e+00 : f32
    %312 = vector.broadcast %cst_135 : f32 to vector<3x128xf32>
    %313 = arith.maximumf %312, %311 : vector<3x128xf32>
    %314 = vector.broadcast %cst_136 : f32 to vector<3x128xf32>
    %315 = arith.minimumf %314, %313 : vector<3x128xf32>
    %c0_137 = arith.constant 0 : index
    %c0_138 = arith.constant 0 : index
    %316 = vector.load %arg22[%c0_137, %c0_138] : memref<3x128xf32, #tpu.memory_space<vmem>>, vector<3x128xf32>
    tpu.vector_store %arg22[%c0_137, %c0_138], %315 {strides = array<i32>} : memref<3x128xf32, #tpu.memory_space<vmem>>, vector<3x128xf32>,
    return
  }
  func.func @transform_0(%arg0: i32) -> (i32, i32) {
    %c0_i32 = arith.constant 0 : i32
    %c0_i32_0 = arith.constant 0 : i32
    %c0_i32_1 = arith.constant 0 : i32
    return %c0_i32, %c0_i32_0 : i32, i32
  }
  func.func @transform_1(%arg0: i32) -> (i32, i32) {
    %c0_i32 = arith.constant 0 : i32
    %c0_i32_0 = arith.constant 0 : i32
    %c0_i32_1 = arith.constant 0 : i32
    return %c0_i32, %c0_i32_0 : i32, i32
  }
  func.func @transform_2(%arg0: i32) -> (i32, i32) {
    %c0_i32 = arith.constant 0 : i32
    %c0_i32_0 = arith.constant 0 : i32
    %c0_i32_1 = arith.constant 0 : i32
    return %c0_i32, %c0_i32_0 : i32, i32
  }
  func.func @transform_3(%arg0: i32) -> (i32, i32) {
    %c0_i32 = arith.constant 0 : i32
    %c0_i32_0 = arith.constant 0 : i32
    return %c0_i32, %arg0 : i32, i32
  }
  func.func @transform_4(%arg0: i32) -> (i32, i32) {
    %c0_i32 = arith.constant 0 : i32
    %c0_i32_0 = arith.constant 0 : i32
    return %c0_i32, %arg0 : i32, i32
  }
  func.func @transform_5(%arg0: i32) -> (i32, i32) {
    %c0_i32 = arith.constant 0 : i32
    %c0_i32_0 = arith.constant 0 : i32
    return %c0_i32, %arg0 : i32, i32
  }
  func.func @transform_6(%arg0: i32) -> (i32, i32) {
    %c0_i32 = arith.constant 0 : i32
    %c0_i32_0 = arith.constant 0 : i32
    %c0_i32_1 = arith.constant 0 : i32
    return %c0_i32, %c0_i32_0 : i32, i32
  }
  func.func @transform_7(%arg0: i32) -> (i32, i32) {
    %c0_i32 = arith.constant 0 : i32
    %c0_i32_0 = arith.constant 0 : i32
    %c0_i32_1 = arith.constant 0 : i32
    return %c0_i32, %c0_i32_0 : i32, i32
  }
  func.func @transform_8(%arg0: i32) -> (i32, i32) {
    %c0_i32 = arith.constant 0 : i32
    %c0_i32_0 = arith.constant 0 : i32
    %c0_i32_1 = arith.constant 0 : i32
    return %c0_i32, %c0_i32_0 : i32, i32
  }
  func.func @transform_9(%arg0: i32) -> (i32, i32) {
    %c0_i32 = arith.constant 0 : i32
    %c0_i32_0 = arith.constant 0 : i32
    %c0_i32_1 = arith.constant 0 : i32
    return %c0_i32, %c0_i32_0 : i32, i32
  }
  func.func @transform_10(%arg0: i32) -> (i32, i32) {
    %c0_i32 = arith.constant 0 : i32
    %c0_i32_0 = arith.constant 0 : i32
    %c0_i32_1 = arith.constant 0 : i32
    return %c0_i32, %c0_i32_0 : i32, i32
  }
  func.func @transform_11(%arg0: i32) -> (i32, i32) {
    %c0_i32 = arith.constant 0 : i32
    %c0_i32_0 = arith.constant 0 : i32
    %c0_i32_1 = arith.constant 0 : i32
    return %c0_i32, %c0_i32_0 : i32, i32
  }
  func.func @transform_12(%arg0: i32) -> (i32, i32) {
    %c0_i32 = arith.constant 0 : i32
    %c0_i32_0 = arith.constant 0 : i32
    %c0_i32_1 = arith.constant 0 : i32
    return %c0_i32, %c0_i32_0 : i32, i32
  }
  func.func @transform_13(%arg0: i32) -> (i32, i32) {
    %c0_i32 = arith.constant 0 : i32
    %c0_i32_0 = arith.constant 0 : i32
    %c0_i32_1 = arith.constant 0 : i32
    return %c0_i32, %c0_i32_0 : i32, i32
  }
  func.func @transform_14(%arg0: i32) -> (i32, i32) {
    %c0_i32 = arith.constant 0 : i32
    %c0_i32_0 = arith.constant 0 : i32
    %c0_i32_1 = arith.constant 0 : i32
    return %c0_i32, %c0_i32_0 : i32, i32
  }
  func.func @transform_15(%arg0: i32) -> (i32, i32) {
    %c0_i32 = arith.constant 0 : i32
    %c0_i32_0 = arith.constant 0 : i32
    %c0_i32_1 = arith.constant 0 : i32
    return %c0_i32, %c0_i32_0 : i32, i32
  }
  func.func @transform_16(%arg0: i32) -> (i32, i32) {
    %c0_i32 = arith.constant 0 : i32
    %c0_i32_0 = arith.constant 0 : i32
    %c0_i32_1 = arith.constant 0 : i32
    return %c0_i32, %c0_i32_0 : i32, i32
  }
  func.func @transform_17(%arg0: i32) -> (i32, i32) {
    %c0_i32 = arith.constant 0 : i32
    %c0_i32_0 = arith.constant 0 : i32
    %c0_i32_1 = arith.constant 0 : i32
    return %c0_i32, %c0_i32_0 : i32, i32
  }
  func.func @transform_18(%arg0: i32) -> (i32, i32) {
    %c0_i32 = arith.constant 0 : i32
    %c0_i32_0 = arith.constant 0 : i32
    %c0_i32_1 = arith.constant 0 : i32
    return %c0_i32, %c0_i32_0 : i32, i32
  }
  func.func @transform_19(%arg0: i32) -> (i32, i32) {
    %c0_i32 = arith.constant 0 : i32
    %c0_i32_0 = arith.constant 0 : i32
    %c0_i32_1 = arith.constant 0 : i32
    return %c0_i32, %c0_i32_0 : i32, i32
  }
  func.func @transform_20(%arg0: i32) -> (i32, i32) {
    %c0_i32 = arith.constant 0 : i32
    %c0_i32_0 = arith.constant 0 : i32
    %c0_i32_1 = arith.constant 0 : i32
    return %c0_i32, %c0_i32_0 : i32, i32
  }
  func.func @transform_21(%arg0: i32) -> (i32, i32) {
    %c0_i32 = arith.constant 0 : i32
    %c0_i32_0 = arith.constant 0 : i32
    return %c0_i32, %arg0 : i32, i32
  }
  func.func @transform_22(%arg0: i32) -> (i32, i32) {
    %c0_i32 = arith.constant 0 : i32
    %c0_i32_0 = arith.constant 0 : i32
    return %c0_i32, %arg0 : i32, i32
  }
  func.func @transform_23(%arg0: i32) -> (i32, i32) {
    %c0_i32 = arith.constant 0 : i32
    %c0_i32_0 = arith.constant 0 : i32
    return %c0_i32, %arg0 : i32, i32
  }
}

</mosaic_0001>

<llo_original>
// kernel: ibrnet_forward.1
$region0: #{ibrnet_forward.1}
  #allocation0 [shape = 'u32[]', space=smem, size = 0x4, offset = 0x4, fixed_abs, tag = 'smem constant byte address 0x4 - core index']
  #allocation1 [shape = 'u32[144,128]{1,0:T(1,128)}', space=vmem, size = 0x12000, scoped, tag = 'internal scratch']
  #allocation2 [shape = 'f32[1,1]{1,0:T(1,128)S(1)}', space=vmem, size = 0x200, scoped, tag = 'scoped memory for ibrnet_forward.1']
  %s0 = inlined_call_operand.vmem [shape: f32[24,3], index: 0, kind: input, shape index: {}]
  %s1 = inlined_call_operand.vmem [shape: f32[24,1], index: 1, kind: input, shape index: {}]
  %s2 = inlined_call_operand.vmem [shape: f32[8,1024], index: 2, kind: input, shape index: {}]
  %s3 = inlined_call_operand.vmem [shape: f32[3,512], index: 3, kind: input, shape index: {}]
  %s4 = inlined_call_operand.vmem [shape: f32[3,512], index: 4, kind: input, shape index: {}]
  %s5 = inlined_call_operand.vmem [shape: f32[16,512], index: 5, kind: input, shape index: {}]
  %s6 = inlined_call_operand.vmem [shape: f32[8,8], index: 6, kind: input, shape index: {}]
  %s7 = inlined_call_operand.vmem [shape: f32[8,1], index: 7, kind: input, shape index: {}]
  %s8 = inlined_call_operand.vmem [shape: f32[16,8], index: 8, kind: input, shape index: {}]
  %s9 = inlined_call_operand.vmem [shape: f32[16,1], index: 9, kind: input, shape index: {}]
  %s10 = inlined_call_operand.vmem [shape: f32[32,8], index: 10, kind: input, shape index: {}]
  %s11 = inlined_call_operand.vmem [shape: f32[32,16], index: 11, kind: input, shape index: {}]
  %s12 = inlined_call_operand.vmem [shape: f32[32,16], index: 12, kind: input, shape index: {}]
  %s13 = inlined_call_operand.vmem [shape: f32[32,1], index: 13, kind: input, shape index: {}]
  %s14 = inlined_call_operand.vmem [shape: f32[32,1], index: 14, kind: input, shape index: {}]
  %s15 = inlined_call_operand.<no memory space> [shape: f32[1,1], index: 15, kind: input, shape index: {}]
  %s16 = inlined_call_operand.vmem [shape: f32[32,16], index: 16, kind: input, shape index: {}]
  %s17 = inlined_call_operand.vmem [shape: f32[32,1], index: 17, kind: input, shape index: {}]
  %s18 = inlined_call_operand.vmem [shape: f32[48,32], index: 18, kind: input, shape index: {}]
  %s19 = inlined_call_operand.vmem [shape: f32[48,1], index: 19, kind: input, shape index: {}]
  %s20 = inlined_call_operand.vmem [shape: f32[3,48], index: 20, kind: input, shape index: {}]
  %s21 = inlined_call_operand.hbm [shape: f32[3,512], index: 21, kind: output, shape index: {0}]
  %s22 = inlined_call_operand.hbm [shape: f32[3,512], index: 22, kind: output, shape index: {1}]
  %s23 = inlined_call_operand.hbm [shape: f32[3,512], index: 23, kind: output, shape index: {2}]
  %24 = xla_tuple %s21, %s22, %s23
  %s25 = sld [smem:[#allocation0]]
  $region171: #{ibrnet_forward.1} parent=0
    _
  %s27 = ssub.s32 1, %s25
  %s28 = scalar_select 0, %s27, %s25
  %v29 = vstv %s15
  %30 = vst [vmem:[#allocation2] sm:$0x1] %v29
  $region1: #{ibrnet_forward.1} parent=0
    #allocation3 [shape = 'u8[16384]{0}', space=vmem, size = 0x4000, scoped, tag = 'input window, operand 5']
    #allocation4 [shape = 'u8[4096]{0}', space=vmem, size = 0x1000, scoped, tag = 'output window, operand 0']
    #allocation5 [shape = 's32[2]{0}', space=sflag, size = 0x8, scoped, tag = 'scoped memory for ibrnet_forward.1']
    #allocation6 [shape = 'u8[4096]{0}', space=vmem, size = 0x1000, scoped, tag = 'output window, operand 1']
    #allocation7 [shape = 's32[2]{0}', space=sflag, size = 0x8, scoped, tag = 'scoped memory for ibrnet_forward.1']
    #allocation8 [shape = 'u8[4096]{0}', space=vmem, size = 0x1000, scoped, tag = 'output window, operand 2']
    %31 = vsyncpa [#allocation5], 0
    %s32 = scalar_lea.sflag [#allocation5], 1
    %33 = vsyncpa %s32, 0
    %34 = vsyncpa [#allocation7], 0
    %s35 = scalar_lea.sflag [#allocation7], 1
    %36 = vsyncpa %s35, 0
    loop: start=0, step=1, limit=6
    $region2: #{ibrnet_forward.1} parent=1 // loop_pre_header
      _
    $region3: #{ibrnet_forward.1} parent=1 // loop_header
      %s38 = sphi 0, %s42
      %p39 = scmp.ge.s32.totalorder %s38, 6
      %s46 = sphi 0, %s46
      %s48 = sphi 0, %s46
      %s49 = sphi 0, %s48
      %s63 = sphi 0, %s49
      %s67 = sphi 0, %s67
      %s69 = sphi 0, %s67
      %s70 = sphi 0, %s69
      %s84 = sphi 0, %s70
      %s88 = sphi 0, %s88
      %s90 = sphi 0, %s88
      %s91 = sphi 0, %s90
      %s105 = sphi 0, %s91
      %s111 = sphi 0, %s113
      %s114 = sphi 0, %s111
      %s115 = sphi 0, %s114
      %s131 = sphi 0, %s115
      %s137 = sphi 0, %s139
      %s140 = sphi 0, %s137
      %s141 = sphi 0, %s140
      %s157 = sphi 0, %s141
      %s163 = sphi 0, %s165
      %s166 = sphi 0, %s163
      %s167 = sphi 0, %s166
      %s183 = sphi 0, %s167
      %s187 = sphi 0, %s187
      %s189 = sphi 0, %s187
      %s190 = sphi 0, %s189
      %s204 = sphi 0, %s190
      %s208 = sphi 0, %s208
      %s210 = sphi 0, %s208
      %s211 = sphi 0, %s210
      %s225 = sphi 0, %s211
      %s229 = sphi 0, %s229
      %s231 = sphi 0, %s229
      %s232 = sphi 0, %s231
      %s246 = sphi 0, %s232
      %s250 = sphi 0, %s250
      %s252 = sphi 0, %s250
      %s253 = sphi 0, %s252
      %s267 = sphi 0, %s253
      %s271 = sphi 0, %s271
      %s273 = sphi 0, %s271
      %s274 = sphi 0, %s273
      %s288 = sphi 0, %s274
      %s292 = sphi 0, %s292
      %s294 = sphi 0, %s292
      %s295 = sphi 0, %s294
      %s309 = sphi 0, %s295
      %s313 = sphi 0, %s313
      %s315 = sphi 0, %s313
      %s316 = sphi 0, %s315
      %s330 = sphi 0, %s316
      %s334 = sphi 0, %s334
      %s336 = sphi 0, %s334
      %s337 = sphi 0, %s336
      %s351 = sphi 0, %s337
      %s355 = sphi 0, %s355
      %s357 = sphi 0, %s355
      %s358 = sphi 0, %s357
      %s372 = sphi 0, %s358
      %s376 = sphi 0, %s376
      %s378 = sphi 0, %s376
      %s379 = sphi 0, %s378
      %s393 = sphi 0, %s379
      %s397 = sphi 0, %s397
      %s399 = sphi 0, %s397
      %s400 = sphi 0, %s399
      %s414 = sphi 0, %s400
      %s418 = sphi 0, %s418
      %s420 = sphi 0, %s418
      %s421 = sphi 0, %s420
      %s435 = sphi 0, %s421
      %s439 = sphi 0, %s439
      %s441 = sphi 0, %s439
      %s442 = sphi 0, %s441
      %s456 = sphi 0, %s442
      %s460 = sphi 0, %s460
      %s462 = sphi 0, %s460
      %s463 = sphi 0, %s462
      %s477 = sphi 0, %s463
      %s481 = sphi 0, %s481
      %s483 = sphi 0, %s481
      %s484 = sphi 0, %s483
      %s498 = sphi 0, %s484
      %s504 = sphi 0, %s506
      %s507 = sphi 0, %s504
      %s508 = sphi 0, %s507
      %s524 = sphi 0, %s508
      %s530 = sphi 0, %s532
      %s533 = sphi 0, %s530
      %s534 = sphi 0, %s533
      %s550 = sphi 0, %s534
      %s556 = sphi 0, %s558
      %s559 = sphi 0, %s556
      %s560 = sphi 0, %s559
      %s576 = sphi 0, %s560
    $region4: #{ibrnet_forward.1} parent=1 // loop_header_branch
      %41 = sbr.rel (%p39) target = $region8
    $region5: #{ibrnet_forward.1} parent=1 // loop_body
      %s43 = ssub.s32 %s38, 1
      %s44 = ssub.s32 %s38, 2
      %s45 = sadd.s32 %s38, 1
      %s47 = sadd.s32 %s46, 1
      %p50 = scmp.eq.s32.totalorder %s38, 3
      %p51 = scmp.ne.s32.totalorder %s46, %s48
      %p52 = scmp.eq.s32.totalorder %s38, 0
      %p53 = por %p51, %p52
      %p54 = scmp.ne.s32.totalorder %s46, %s48
      %p55 = scmp.eq.s32.totalorder %s43, 3
      %p56 = por %p54, %p55
      %p57 = scmp.ne.s32.totalorder %s48, %s49
      %p58 = scmp.eq.s32.totalorder %s43, 0
      %p59 = por %p57, %p58
      %p60 = scmp.ne.s32.totalorder %s48, %s49
      %p61 = scmp.eq.s32.totalorder %s44, 3
      %p62 = por %p60, %p61
      %p64 = scmp.ne.s32.totalorder %s49, %s63
      %p65 = scmp.eq.s32.totalorder %s44, 0
      %p66 = por %p64, %p65
      %s68 = sadd.s32 %s67, 1
      %p71 = scmp.eq.s32.totalorder %s38, 3
      %p72 = scmp.ne.s32.totalorder %s67, %s69
      %p73 = scmp.eq.s32.totalorder %s38, 0
      %p74 = por %p72, %p73
      %p75 = scmp.ne.s32.totalorder %s67, %s69
      %p76 = scmp.eq.s32.totalorder %s43, 3
      %p77 = por %p75, %p76
      %p78 = scmp.ne.s32.totalorder %s69, %s70
      %p79 = scmp.eq.s32.totalorder %s43, 0
      %p80 = por %p78, %p79
      %p81 = scmp.ne.s32.totalorder %s69, %s70
      %p82 = scmp.eq.s32.totalorder %s44, 3
      %p83 = por %p81, %p82
      %p85 = scmp.ne.s32.totalorder %s70, %s84
      %p86 = scmp.eq.s32.totalorder %s44, 0
      %p87 = por %p85, %p86
      %s89 = sadd.s32 %s88, 1
      %p92 = scmp.eq.s32.totalorder %s38, 3
      %p93 = scmp.ne.s32.totalorder %s88, %s90
      %p94 = scmp.eq.s32.totalorder %s38, 0
      %p95 = por %p93, %p94
      %p96 = scmp.ne.s32.totalorder %s88, %s90
      %p97 = scmp.eq.s32.totalorder %s43, 3
      %p98 = por %p96, %p97
      %p99 = scmp.ne.s32.totalorder %s90, %s91
      %p100 = scmp.eq.s32.totalorder %s43, 0
      %p101 = por %p99, %p100
      %p102 = scmp.ne.s32.totalorder %s90, %s91
      %p103 = scmp.eq.s32.totalorder %s44, 3
      %p104 = por %p102, %p103
      %p106 = scmp.ne.s32.totalorder %s91, %s105
      %p107 = scmp.eq.s32.totalorder %s44, 0
      %p108 = por %p106, %p107
      %s109 = ssub.s32 %s38, %s45
      %p110 = scmp.eq.s32.totalorder %s109, 0
      %s112 = sadd.s32 %s111, 1
      %s113 = scalar_select %p110, %s111, %s112
      %p116 = pneg %p110
      %p117 = scmp.eq.s32.totalorder %s38, 3
      %p118 = por %p116, %p117
      %p119 = scmp.ne.s32.totalorder %s111, %s114
      %p120 = scmp.eq.s32.totalorder %s38, 0
      %p121 = por %p119, %p120
      %p122 = scmp.ne.s32.totalorder %s111, %s114
      %p123 = scmp.eq.s32.totalorder %s43, 3
      %p124 = por %p122, %p123
      %p125 = scmp.ne.s32.totalorder %s114, %s115
      %p126 = scmp.eq.s32.totalorder %s43, 0
      %p127 = por %p125, %p126
      %p128 = scmp.ne.s32.totalorder %s114, %s115
      %p129 = scmp.eq.s32.totalorder %s44, 3
      %p130 = por %p128, %p129
      %p132 = scmp.ne.s32.totalorder %s115, %s131
      %p133 = scmp.eq.s32.totalorder %s44, 0
      %p134 = por %p132, %p133
      %s135 = ssub.s32 %s38, %s45
      %p136 = scmp.eq.s32.totalorder %s135, 0
      %s138 = sadd.s32 %s137, 1
      %s139 = scalar_select %p136, %s137, %s138
      %p142 = pneg %p136
      %p143 = scmp.eq.s32.totalorder %s38, 3
      %p144 = por %p142, %p143
      %p145 = scmp.ne.s32.totalorder %s137, %s140
      %p146 = scmp.eq.s32.totalorder %s38, 0
      %p147 = por %p145, %p146
      %p148 = scmp.ne.s32.totalorder %s137, %s140
      %p149 = scmp.eq.s32.totalorder %s43, 3
      %p150 = por %p148, %p149
      %p151 = scmp.ne.s32.totalorder %s140, %s141
      %p152 = scmp.eq.s32.totalorder %s43, 0
      %p153 = por %p151, %p152
      %p154 = scmp.ne.s32.totalorder %s140, %s141
      %p155 = scmp.eq.s32.totalorder %s44, 3
      %p156 = por %p154, %p155
      %p158 = scmp.ne.s32.totalorder %s141, %s157
      %p159 = scmp.eq.s32.totalorder %s44, 0
      %p160 = por %p158, %p159
      %s161 = ssub.s32 %s38, %s45
      %p162 = scmp.eq.s32.totalorder %s161, 0
      %s164 = sadd.s32 %s163, 1
      %s165 = scalar_select %p162, %s163, %s164
      %p168 = pneg %p162
      %p169 = scmp.eq.s32.totalorder %s38, 3
      %p170 = por %p168, %p169
      %p171 = scmp.ne.s32.totalorder %s163, %s166
      %p172 = scmp.eq.s32.totalorder %s38, 0
      %p173 = por %p171, %p172
      %p174 = scmp.ne.s32.totalorder %s163, %s166
      %p175 = scmp.eq.s32.totalorder %s43, 3
      %p176 = por %p174, %p175
      %p177 = scmp.ne.s32.totalorder %s166, %s167
      %p178 = scmp.eq.s32.totalorder %s43, 0
      %p179 = por %p177, %p178
      %p180 = scmp.ne.s32.totalorder %s166, %s167
      %p181 = scmp.eq.s32.totalorder %s44, 3
      %p182 = por %p180, %p181
      %p184 = scmp.ne.s32.totalorder %s167, %s183
      %p185 = scmp.eq.s32.totalorder %s44, 0
      %p186 = por %p184, %p185
      %s188 = sadd.s32 %s187, 1
      %p191 = scmp.eq.s32.totalorder %s38, 3
      %p192 = scmp.ne.s32.totalorder %s187, %s189
      %p193 = scmp.eq.s32.totalorder %s38, 0
      %p194 = por %p192, %p193
      %p195 = scmp.ne.s32.totalorder %s187, %s189
      %p196 = scmp.eq.s32.totalorder %s43, 3
      %p197 = por %p195, %p196
      %p198 = scmp.ne.s32.totalorder %s189, %s190
      %p199 = scmp.eq.s32.totalorder %s43, 0
      %p200 = por %p198, %p199
      %p201 = scmp.ne.s32.totalorder %s189, %s190
      %p202 = scmp.eq.s32.totalorder %s44, 3
      %p203 = por %p201, %p202
      %p205 = scmp.ne.s32.totalorder %s190, %s204
      %p206 = scmp.eq.s32.totalorder %s44, 0
      %p207 = por %p205, %p206
      %s209 = sadd.s32 %s208, 1
      %p212 = scmp.eq.s32.totalorder %s38, 3
      %p213 = scmp.ne.s32.totalorder %s208, %s210
      %p214 = scmp.eq.s32.totalorder %s38, 0
      %p215 = por %p213, %p214
      %p216 = scmp.ne.s32.totalorder %s208, %s210
      %p217 = scmp.eq.s32.totalorder %s43, 3
      %p218 = por %p216, %p217
      %p219 = scmp.ne.s32.totalorder %s210, %s211
      %p220 = scmp.eq.s32.totalorder %s43, 0
      %p221 = por %p219, %p220
      %p222 = scmp.ne.s32.totalorder %s210, %s211
      %p223 = scmp.eq.s32.totalorder %s44, 3
      %p224 = por %p222, %p223
      %p226 = scmp.ne.s32.totalorder %s211, %s225
      %p227 = scmp.eq.s32.totalorder %s44, 0
      %p228 = por %p226, %p227
      %s230 = sadd.s32 %s229, 1
      %p233 = scmp.eq.s32.totalorder %s38, 3
      %p234 = scmp.ne.s32.totalorder %s229, %s231
      %p235 = scmp.eq.s32.totalorder %s38, 0
      %p236 = por %p234, %p235
      %p237 = scmp.ne.s32.totalorder %s229, %s231
      %p238 = scmp.eq.s32.totalorder %s43, 3
      %p239 = por %p237, %p238
      %p240 = scmp.ne.s32.totalorder %s231, %s232
      %p241 = scmp.eq.s32.totalorder %s43, 0
      %p242 = por %p240, %p241
      %p243 = scmp.ne.s32.totalorder %s231, %s232
      %p244 = scmp.eq.s32.totalorder %s44, 3
      %p245 = por %p243, %p244
      %p247 = scmp.ne.s32.totalorder %s232, %s246
      %p248 = scmp.eq.s32.totalorder %s44, 0
      %p249 = por %p247, %p248
      %s251 = sadd.s32 %s250, 1
      %p254 = scmp.eq.s32.totalorder %s38, 3
      %p255 = scmp.ne.s32.totalorder %s250, %s252
      %p256 = scmp.eq.s32.totalorder %s38, 0
      %p257 = por %p255, %p256
      %p258 = scmp.ne.s32.totalorder %s250, %s252
      %p259 = scmp.eq.s32.totalorder %s43, 3
      %p260 = por %p258, %p259
      %p261 = scmp.ne.s32.totalorder %s252, %s253
      %p262 = scmp.eq.s32.totalorder %s43, 0
      %p263 = por %p261, %p262
      %p264 = scmp.ne.s32.totalorder %s252, %s253
      %p265 = scmp.eq.s32.totalorder %s44, 3
      %p266 = por %p264, %p265
      %p268 = scmp.ne.s32.totalorder %s253, %s267
      %p269 = scmp.eq.s32.totalorder %s44, 0
      %p270 = por %p268, %p269
      %s272 = sadd.s32 %s271, 1
      %p275 = scmp.eq.s32.totalorder %s38, 3
      %p276 = scmp.ne.s32.totalorder %s271, %s273
      %p277 = scmp.eq.s32.totalorder %s38, 0
      %p278 = por %p276, %p277
      %p279 = scmp.ne.s32.totalorder %s271, %s273
      %p280 = scmp.eq.s32.totalorder %s43, 3
      %p281 = por %p279, %p280
      %p282 = scmp.ne.s32.totalorder %s273, %s274
      %p283 = scmp.eq.s32.totalorder %s43, 0
      %p284 = por %p282, %p283
      %p285 = scmp.ne.s32.totalorder %s273, %s274
      %p286 = scmp.eq.s32.totalorder %s44, 3
      %p287 = por %p285, %p286
      %p289 = scmp.ne.s32.totalorder %s274, %s288
      %p290 = scmp.eq.s32.totalorder %s44, 0
      %p291 = por %p289, %p290
      %s293 = sadd.s32 %s292, 1
      %p296 = scmp.eq.s32.totalorder %s38, 3
      %p297 = scmp.ne.s32.totalorder %s292, %s294
      %p298 = scmp.eq.s32.totalorder %s38, 0
      %p299 = por %p297, %p298
      %p300 = scmp.ne.s32.totalorder %s292, %s294
      %p301 = scmp.eq.s32.totalorder %s43, 3
      %p302 = por %p300, %p301
      %p303 = scmp.ne.s32.totalorder %s294, %s295
      %p304 = scmp.eq.s32.totalorder %s43, 0
      %p305 = por %p303, %p304
      %p306 = scmp.ne.s32.totalorder %s294, %s295
      %p307 = scmp.eq.s32.totalorder %s44, 3
      %p308 = por %p306, %p307
      %p310 = scmp.ne.s32.totalorder %s295, %s309
      %p311 = scmp.eq.s32.totalorder %s44, 0
      %p312 = por %p310, %p311
      %s314 = sadd.s32 %s313, 1
      %p317 = scmp.eq.s32.totalorder %s38, 3
      %p318 = scmp.ne.s32.totalorder %s313, %s315
      %p319 = scmp.eq.s32.totalorder %s38, 0
      %p320 = por %p318, %p319
      %p321 = scmp.ne.s32.totalorder %s313, %s315
      %p322 = scmp.eq.s32.totalorder %s43, 3
      %p323 = por %p321, %p322
      %p324 = scmp.ne.s32.totalorder %s315, %s316
      %p325 = scmp.eq.s32.totalorder %s43, 0
      %p326 = por %p324, %p325
      %p327 = scmp.ne.s32.totalorder %s315, %s316
      %p328 = scmp.eq.s32.totalorder %s44, 3
      %p329 = por %p327, %p328
      %p331 = scmp.ne.s32.totalorder %s316, %s330
      %p332 = scmp.eq.s32.totalorder %s44, 0
      %p333 = por %p331, %p332
      %s335 = sadd.s32 %s334, 1
      %p338 = scmp.eq.s32.totalorder %s38, 3
      %p339 = scmp.ne.s32.totalorder %s334, %s336
      %p340 = scmp.eq.s32.totalorder %s38, 0
      %p341 = por %p339, %p340
      %p342 = scmp.ne.s32.totalorder %s334, %s336
      %p343 = scmp.eq.s32.totalorder %s43, 3
      %p344 = por %p342, %p343
      %p345 = scmp.ne.s32.totalorder %s336, %s337
      %p346 = scmp.eq.s32.totalorder %s43, 0
      %p347 = por %p345, %p346
      %p348 = scmp.ne.s32.totalorder %s336, %s337
      %p349 = scmp.eq.s32.totalorder %s44, 3
      %p350 = por %p348, %p349
      %p352 = scmp.ne.s32.totalorder %s337, %s351
      %p353 = scmp.eq.s32.totalorder %s44, 0
      %p354 = por %p352, %p353
      %s356 = sadd.s32 %s355, 1
      %p359 = scmp.eq.s32.totalorder %s38, 3
      %p360 = scmp.ne.s32.totalorder %s355, %s357
      %p361 = scmp.eq.s32.totalorder %s38, 0
      %p362 = por %p360, %p361
      %p363 = scmp.ne.s32.totalorder %s355, %s357
      %p364 = scmp.eq.s32.totalorder %s43, 3
      %p365 = por %p363, %p364
      %p366 = scmp.ne.s32.totalorder %s357, %s358
      %p367 = scmp.eq.s32.totalorder %s43, 0
      %p368 = por %p366, %p367
      %p369 = scmp.ne.s32.totalorder %s357, %s358
      %p370 = scmp.eq.s32.totalorder %s44, 3
      %p371 = por %p369, %p370
      %p373 = scmp.ne.s32.totalorder %s358, %s372
      %p374 = scmp.eq.s32.totalorder %s44, 0
      %p375 = por %p373, %p374
      %s377 = sadd.s32 %s376, 1
      %p380 = scmp.eq.s32.totalorder %s38, 3
      %p381 = scmp.ne.s32.totalorder %s376, %s378
      %p382 = scmp.eq.s32.totalorder %s38, 0
      %p383 = por %p381, %p382
      %p384 = scmp.ne.s32.totalorder %s376, %s378
      %p385 = scmp.eq.s32.totalorder %s43, 3
      %p386 = por %p384, %p385
      %p387 = scmp.ne.s32.totalorder %s378, %s379
      %p388 = scmp.eq.s32.totalorder %s43, 0
      %p389 = por %p387, %p388
      %p390 = scmp.ne.s32.totalorder %s378, %s379
      %p391 = scmp.eq.s32.totalorder %s44, 3
      %p392 = por %p390, %p391
      %p394 = scmp.ne.s32.totalorder %s379, %s393
      %p395 = scmp.eq.s32.totalorder %s44, 0
      %p396 = por %p394, %p395
      %s398 = sadd.s32 %s397, 1
      %p401 = scmp.eq.s32.totalorder %s38, 3
      %p402 = scmp.ne.s32.totalorder %s397, %s399
      %p403 = scmp.eq.s32.totalorder %s38, 0
      %p404 = por %p402, %p403
      %p405 = scmp.ne.s32.totalorder %s397, %s399
      %p406 = scmp.eq.s32.totalorder %s43, 3
      %p407 = por %p405, %p406
      %p408 = scmp.ne.s32.totalorder %s399, %s400
      %p409 = scmp.eq.s32.totalorder %s43, 0
      %p410 = por %p408, %p409
      %p411 = scmp.ne.s32.totalorder %s399, %s400
      %p412 = scmp.eq.s32.totalorder %s44, 3
      %p413 = por %p411, %p412
      %p415 = scmp.ne.s32.totalorder %s400, %s414
      %p416 = scmp.eq.s32.totalorder %s44, 0
      %p417 = por %p415, %p416
      %s419 = sadd.s32 %s418, 1
      %p422 = scmp.eq.s32.totalorder %s38, 3
      %p423 = scmp.ne.s32.totalorder %s418, %s420
      %p424 = scmp.eq.s32.totalorder %s38, 0
      %p425 = por %p423, %p424
      %p426 = scmp.ne.s32.totalorder %s418, %s420
      %p427 = scmp.eq.s32.totalorder %s43, 3
      %p428 = por %p426, %p427
      %p429 = scmp.ne.s32.totalorder %s420, %s421
      %p430 = scmp.eq.s32.totalorder %s43, 0
      %p431 = por %p429, %p430
      %p432 = scmp.ne.s32.totalorder %s420, %s421
      %p433 = scmp.eq.s32.totalorder %s44, 3
      %p434 = por %p432, %p433
      %p436 = scmp.ne.s32.totalorder %s421, %s435
      %p437 = scmp.eq.s32.totalorder %s44, 0
      %p438 = por %p436, %p437
      %s440 = sadd.s32 %s439, 1
      %p443 = scmp.eq.s32.totalorder %s38, 3
      %p444 = scmp.ne.s32.totalorder %s439, %s441
      %p445 = scmp.eq.s32.totalorder %s38, 0
      %p446 = por %p444, %p445
      %p447 = scmp.ne.s32.totalorder %s439, %s441
      %p448 = scmp.eq.s32.totalorder %s43, 3
      %p449 = por %p447, %p448
      %p450 = scmp.ne.s32.totalorder %s441, %s442
      %p451 = scmp.eq.s32.totalorder %s43, 0
      %p452 = por %p450, %p451
      %p453 = scmp.ne.s32.totalorder %s441, %s442
      %p454 = scmp.eq.s32.totalorder %s44, 3
      %p455 = por %p453, %p454
      %p457 = scmp.ne.s32.totalorder %s442, %s456
      %p458 = scmp.eq.s32.totalorder %s44, 0
      %p459 = por %p457, %p458
      %s461 = sadd.s32 %s460, 1
      %p464 = scmp.eq.s32.totalorder %s38, 3
      %p465 = scmp.ne.s32.totalorder %s460, %s462
      %p466 = scmp.eq.s32.totalorder %s38, 0
      %p467 = por %p465, %p466
      %p468 = scmp.ne.s32.totalorder %s460, %s462
      %p469 = scmp.eq.s32.totalorder %s43, 3
      %p470 = por %p468, %p469
      %p471 = scmp.ne.s32.totalorder %s462, %s463
      %p472 = scmp.eq.s32.totalorder %s43, 0
      %p473 = por %p471, %p472
      %p474 = scmp.ne.s32.totalorder %s462, %s463
      %p475 = scmp.eq.s32.totalorder %s44, 3
      %p476 = por %p474, %p475
      %p478 = scmp.ne.s32.totalorder %s463, %s477
      %p479 = scmp.eq.s32.totalorder %s44, 0
      %p480 = por %p478, %p479
      %s482 = sadd.s32 %s481, 1
      %p485 = scmp.eq.s32.totalorder %s38, 3
      %p486 = scmp.ne.s32.totalorder %s481, %s483
      %p487 = scmp.eq.s32.totalorder %s38, 0
      %p488 = por %p486, %p487
      %p489 = scmp.ne.s32.totalorder %s481, %s483
      %p490 = scmp.eq.s32.totalorder %s43, 3
      %p491 = por %p489, %p490
      %p492 = scmp.ne.s32.totalorder %s483, %s484
      %p493 = scmp.eq.s32.totalorder %s43, 0
      %p494 = por %p492, %p493
      %p495 = scmp.ne.s32.totalorder %s483, %s484
      %p496 = scmp.eq.s32.totalorder %s44, 3
      %p497 = por %p495, %p496
      %p499 = scmp.ne.s32.totalorder %s484, %s498
      %p500 = scmp.eq.s32.totalorder %s44, 0
      %p501 = por %p499, %p500
      %s502 = ssub.s32 %s38, %s45
      %p503 = scmp.eq.s32.totalorder %s502, 0
      %s505 = sadd.s32 %s504, 1
      %s506 = scalar_select %p503, %s504, %s505
      %p509 = pneg %p503
      %p510 = scmp.eq.s32.totalorder %s38, 3
      %p511 = por %p509, %p510
      %p512 = scmp.ne.s32.totalorder %s504, %s507
      %p513 = scmp.eq.s32.totalorder %s38, 0
      %p514 = por %p512, %p513
      %p515 = scmp.ne.s32.totalorder %s504, %s507
      %p516 = scmp.eq.s32.totalorder %s43, 3
      %p517 = por %p515, %p516
      %p518 = scmp.ne.s32.totalorder %s507, %s508
      %p519 = scmp.eq.s32.totalorder %s43, 0
      %p520 = por %p518, %p519
      %p521 = scmp.ne.s32.totalorder %s507, %s508
      %p522 = scmp.eq.s32.totalorder %s44, 3
      %p523 = por %p521, %p522
      %p525 = scmp.ne.s32.totalorder %s508, %s524
      %p526 = scmp.eq.s32.totalorder %s44, 0
      %p527 = por %p525, %p526
      %s528 = ssub.s32 %s38, %s45
      %p529 = scmp.eq.s32.totalorder %s528, 0
      %s531 = sadd.s32 %s530, 1
      %s532 = scalar_select %p529, %s530, %s531
      %p535 = pneg %p529
      %p536 = scmp.eq.s32.totalorder %s38, 3
      %p537 = por %p535, %p536
      %p538 = scmp.ne.s32.totalorder %s530, %s533
      %p539 = scmp.eq.s32.totalorder %s38, 0
      %p540 = por %p538, %p539
      %p541 = scmp.ne.s32.totalorder %s530, %s533
      %p542 = scmp.eq.s32.totalorder %s43, 3
      %p543 = por %p541, %p542
      %p544 = scmp.ne.s32.totalorder %s533, %s534
      %p545 = scmp.eq.s32.totalorder %s43, 0
      %p546 = por %p544, %p545
      %p547 = scmp.ne.s32.totalorder %s533, %s534
      %p548 = scmp.eq.s32.totalorder %s44, 3
      %p549 = por %p547, %p548
      %p551 = scmp.ne.s32.totalorder %s534, %s550
      %p552 = scmp.eq.s32.totalorder %s44, 0
      %p553 = por %p551, %p552
      %s554 = ssub.s32 %s38, %s45
      %p555 = scmp.eq.s32.totalorder %s554, 0
      %s557 = sadd.s32 %s556, 1
      %s558 = scalar_select %p555, %s556, %s557
      %p561 = pneg %p555
      %p562 = scmp.eq.s32.totalorder %s38, 3
      %p563 = por %p561, %p562
      %p564 = scmp.ne.s32.totalorder %s556, %s559
      %p565 = scmp.eq.s32.totalorder %s38, 0
      %p566 = por %p564, %p565
      %p567 = scmp.ne.s32.totalorder %s556, %s559
      %p568 = scmp.eq.s32.totalorder %s43, 3
      %p569 = por %p567, %p568
      %p570 = scmp.ne.s32.totalorder %s559, %s560
      %p571 = scmp.eq.s32.totalorder %s43, 0
      %p572 = por %p570, %p571
      %p573 = scmp.ne.s32.totalorder %s559, %s560
      %p574 = scmp.eq.s32.totalorder %s44, 3
      %p575 = por %p573, %p574
      %p577 = scmp.ne.s32.totalorder %s560, %s576
      %p578 = scmp.eq.s32.totalorder %s44, 0
      %p579 = por %p577, %p578
      %p580 = scmp.le.s32.totalorder 1, %s38
      %p581 = scmp.lt.s32.totalorder %s38, 5
      %p582 = pnand %p580, %p581
      %p583 = pneg %p582
      // Predicated region
      $region9: #{ibrnet_forward.1} parent=5 // pred_check
        _
      $region10: #{ibrnet_forward.1} parent=5 // pred_check_branch
        %585 = sbr.rel (%p582) target = $region12
      $region11: #{ibrnet_forward.1} parent=5 // pred_region
        %s586 = ssub.s32 %s38, 1
        // Predicated region
        $region13: #{ibrnet_forward.1} parent=11 // pred_check
          %p587 = pneg %p59
        $region14: #{ibrnet_forward.1} parent=11 // pred_check_branch
          %589 = sbr.rel (%p587) target = $region16
        $region15: #{ibrnet_forward.1} parent=11 // pred_region
          _
        $region16: #{ibrnet_forward.1} parent=11 // pred_fallthru
          _
        // Predicated region
        $region17: #{ibrnet_forward.1} parent=11 // pred_check
          %p590 = pneg %p80
        $region18: #{ibrnet_forward.1} parent=11 // pred_check_branch
          %592 = sbr.rel (%p590) target = $region20
        $region19: #{ibrnet_forward.1} parent=11 // pred_region
          _
        $region20: #{ibrnet_forward.1} parent=11 // pred_fallthru
          _
        // Predicated region
        $region21: #{ibrnet_forward.1} parent=11 // pred_check
          %p593 = pneg %p101
        $region22: #{ibrnet_forward.1} parent=11 // pred_check_branch
          %595 = sbr.rel (%p593) target = $region24
        $region23: #{ibrnet_forward.1} parent=11 // pred_region
          _
        $region24: #{ibrnet_forward.1} parent=11 // pred_fallthru
          _
        // Predicated region
        $region25: #{ibrnet_forward.1} parent=11 // pred_check
          %p596 = pneg %p200
        $region26: #{ibrnet_forward.1} parent=11 // pred_check_branch
          %598 = sbr.rel (%p596) target = $region28
        $region27: #{ibrnet_forward.1} parent=11 // pred_region
          _
        $region28: #{ibrnet_forward.1} parent=11 // pred_fallthru
          _
        // Predicated region
        $region29: #{ibrnet_forward.1} parent=11 // pred_check
          %p599 = pneg %p221
        $region30: #{ibrnet_forward.1} parent=11 // pred_check_branch
          %601 = sbr.rel (%p599) target = $region32
        $region31: #{ibrnet_forward.1} parent=11 // pred_region
          _
        $region32: #{ibrnet_forward.1} parent=11 // pred_fallthru
          _
        // Predicated region
        $region33: #{ibrnet_forward.1} parent=11 // pred_check
          %p602 = pneg %p242
        $region34: #{ibrnet_forward.1} parent=11 // pred_check_branch
          %604 = sbr.rel (%p602) target = $region36
        $region35: #{ibrnet_forward.1} parent=11 // pred_region
          _
        $region36: #{ibrnet_forward.1} parent=11 // pred_fallthru
          _
        // Predicated region
        $region37: #{ibrnet_forward.1} parent=11 // pred_check
          %p605 = pneg %p263
        $region38: #{ibrnet_forward.1} parent=11 // pred_check_branch
          %607 = sbr.rel (%p605) target = $region40
        $region39: #{ibrnet_forward.1} parent=11 // pred_region
          _
        $region40: #{ibrnet_forward.1} parent=11 // pred_fallthru
          _
        // Predicated region
        $region41: #{ibrnet_forward.1} parent=11 // pred_check
          %p608 = pneg %p284
        $region42: #{ibrnet_forward.1} parent=11 // pred_check_branch
          %610 = sbr.rel (%p608) target = $region44
        $region43: #{ibrnet_forward.1} parent=11 // pred_region
          _
        $region44: #{ibrnet_forward.1} parent=11 // pred_fallthru
          _
        // Predicated region
        $region45: #{ibrnet_forward.1} parent=11 // pred_check
          %p611 = pneg %p305
        $region46: #{ibrnet_forward.1} parent=11 // pred_check_branch
          %613 = sbr.rel (%p611) target = $region48
        $region47: #{ibrnet_forward.1} parent=11 // pred_region
          _
        $region48: #{ibrnet_forward.1} parent=11 // pred_fallthru
          _
        // Predicated region
        $region49: #{ibrnet_forward.1} parent=11 // pred_check
          %p614 = pneg %p326
        $region50: #{ibrnet_forward.1} parent=11 // pred_check_branch
          %616 = sbr.rel (%p614) target = $region52
        $region51: #{ibrnet_forward.1} parent=11 // pred_region
          _
        $region52: #{ibrnet_forward.1} parent=11 // pred_fallthru
          _
        // Predicated region
        $region53: #{ibrnet_forward.1} parent=11 // pred_check
          %p617 = pneg %p347
        $region54: #{ibrnet_forward.1} parent=11 // pred_check_branch
          %619 = sbr.rel (%p617) target = $region56
        $region55: #{ibrnet_forward.1} parent=11 // pred_region
          _
        $region56: #{ibrnet_forward.1} parent=11 // pred_fallthru
          _
        // Predicated region
        $region57: #{ibrnet_forward.1} parent=11 // pred_check
          %p620 = pneg %p368
        $region58: #{ibrnet_forward.1} parent=11 // pred_check_branch
          %622 = sbr.rel (%p620) target = $region60
        $region59: #{ibrnet_forward.1} parent=11 // pred_region
          _
        $region60: #{ibrnet_forward.1} parent=11 // pred_fallthru
          _
        // Predicated region
        $region61: #{ibrnet_forward.1} parent=11 // pred_check
          %p623 = pneg %p389
        $region62: #{ibrnet_forward.1} parent=11 // pred_check_branch
          %625 = sbr.rel (%p623) target = $region64
        $region63: #{ibrnet_forward.1} parent=11 // pred_region
          _
        $region64: #{ibrnet_forward.1} parent=11 // pred_fallthru
          _
        // Predicated region
        $region65: #{ibrnet_forward.1} parent=11 // pred_check
          %p626 = pneg %p410
        $region66: #{ibrnet_forward.1} parent=11 // pred_check_branch
          %628 = sbr.rel (%p626) target = $region68
        $region67: #{ibrnet_forward.1} parent=11 // pred_region
          _
        $region68: #{ibrnet_forward.1} parent=11 // pred_fallthru
          _
        // Predicated region
        $region69: #{ibrnet_forward.1} parent=11 // pred_check
          %p629 = pneg %p431
        $region70: #{ibrnet_forward.1} parent=11 // pred_check_branch
          %631 = sbr.rel (%p629) target = $region72
        $region71: #{ibrnet_forward.1} parent=11 // pred_region
          _
        $region72: #{ibrnet_forward.1} parent=11 // pred_fallthru
          _
        // Predicated region
        $region73: #{ibrnet_forward.1} parent=11 // pred_check
          %p632 = pneg %p452
        $region74: #{ibrnet_forward.1} parent=11 // pred_check_branch
          %634 = sbr.rel (%p632) target = $region76
        $region75: #{ibrnet_forward.1} parent=11 // pred_region
          _
        $region76: #{ibrnet_forward.1} parent=11 // pred_fallthru
          _
        // Predicated region
        $region77: #{ibrnet_forward.1} parent=11 // pred_check
          %p635 = pneg %p473
        $region78: #{ibrnet_forward.1} parent=11 // pred_check_branch
          %637 = sbr.rel (%p635) target = $region80
        $region79: #{ibrnet_forward.1} parent=11 // pred_region
          _
        $region80: #{ibrnet_forward.1} parent=11 // pred_fallthru
          _
        // Predicated region
        $region81: #{ibrnet_forward.1} parent=11 // pred_check
          %p638 = pneg %p494
        $region82: #{ibrnet_forward.1} parent=11 // pred_check_branch
          %640 = sbr.rel (%p638) target = $region84
        $region83: #{ibrnet_forward.1} parent=11 // pred_region
          _
        $region84: #{ibrnet_forward.1} parent=11 // pred_fallthru
          _
      $region12: #{ibrnet_forward.1} parent=5 // pred_fallthru
        _
      %p641 = scmp.lt.s32.totalorder %s38, 4
      // Predicated region
      $region85: #{ibrnet_forward.1} parent=5 // pred_check
        %p642 = pneg %p641
      $region86: #{ibrnet_forward.1} parent=5 // pred_check_branch
        %644 = sbr.rel (%p642) target = $region88
      $region87: #{ibrnet_forward.1} parent=5 // pred_region
        // Predicated region
        $region89: #{ibrnet_forward.1} parent=87 // pred_check
          %p645 = pneg %p121
        $region90: #{ibrnet_forward.1} parent=87 // pred_check_branch
          %647 = sbr.rel (%p645) target = $region92
        $region91: #{ibrnet_forward.1} parent=87 // pred_region
          %p648 = scmp.lt.s32.totalorder %s38, 3
          %s649 = scalar_select %p648, %s38, 3
          %s650 = smul.addr %s649, 4
          %s651 = scalar_lea.vmem %s3, %s650
        $region92: #{ibrnet_forward.1} parent=87 // pred_fallthru
          _
        // Predicated region
        $region93: #{ibrnet_forward.1} parent=87 // pred_check
          %p652 = pneg %p147
        $region94: #{ibrnet_forward.1} parent=87 // pred_check_branch
          %654 = sbr.rel (%p652) target = $region96
        $region95: #{ibrnet_forward.1} parent=87 // pred_region
          %p655 = scmp.lt.s32.totalorder %s38, 3
          %s656 = scalar_select %p655, %s38, 3
          %s657 = smul.addr %s656, 4
          %s658 = scalar_lea.vmem %s4, %s657
        $region96: #{ibrnet_forward.1} parent=87 // pred_fallthru
          _
        // Predicated region
        $region97: #{ibrnet_forward.1} parent=87 // pred_check
          %p659 = pneg %p173
        $region98: #{ibrnet_forward.1} parent=87 // pred_check_branch
          %661 = sbr.rel (%p659) target = $region100
        $region99: #{ibrnet_forward.1} parent=87 // pred_region
          %s662 = sand.u32 %s163, 1
          %s663 = sand.u32 %s163, 1
          %s664 = smul.addr %s663, 16
          %s665 = scalar_lea.vmem [#allocation3], %s664
          %s666 = smul.addr %s38, 8
          %s667 = scalar_lea.vmem %s5, %s666
          // Predicated region
          $region101: #{ibrnet_forward.1} parent=99 // pred_check
            _
          $region102: #{ibrnet_forward.1} parent=99 // pred_check_branch
            %669 = sbr.rel (0) target = $region104
          $region103: #{ibrnet_forward.1} parent=99 // pred_region
            // Predicated region
            $region105: #{ibrnet_forward.1} parent=103 // pred_check
              _
            $region106: #{ibrnet_forward.1} parent=103 // pred_check_branch
              %671 = sbr.rel (0) target = $region108
            $region107: #{ibrnet_forward.1} parent=103 // pred_region
              // Predicated region
              $region120: #{ibrnet_forward.1} parent=107 // pred_check
                _
              $region121: #{ibrnet_forward.1} parent=107 // pred_check_branch
                %689 = sbr.rel (0) target = $region123
              $region122: #{ibrnet_forward.1} parent=107 // pred_region
                loop: start=0, step=1, limit=1
                $region124: #{ibrnet_forward.1} parent=122 // loop_pre_header
                  _
                $region125: #{ibrnet_forward.1} parent=122 // loop_header
                  %s691 = sphi 0, %s695
                  %p692 = scmp.ge.s32.totalorder %s691, 1
                  %s696 = sphi %s667, %s667
                  %s697 = sphi %s665, %s665
                $region126: #{ibrnet_forward.1} parent=122 // loop_header_branch
                  %694 = sbr.rel (%p692) target = $region130
                $region127: #{ibrnet_forward.1} parent=122 // loop_body
                  %v698 = vld [vmem:[%s696] sm:$0xff]
                  %699 = vst [vmem:[%s697] sm:$0xff] %v698
                  %v700 = vld [vmem:[%s696 + $0x20] sm:$0xff]
                  %701 = vst [vmem:[%s697 + $0x8] sm:$0xff] %v700
                $region128: #{ibrnet_forward.1} parent=122 // loop_footer
                  %s695 = sadd.s32 1, %s691
                $region129: #{ibrnet_forward.1} parent=122 // loop_footer_branch
                  %690 = sbr.rel target = $region125
                $region130: #{ibrnet_forward.1} parent=122 // loop_exit
                  _
              $region123: #{ibrnet_forward.1} parent=107 // pred_fallthru
                _
              // Predicated region
              $region131: #{ibrnet_forward.1} parent=107 // pred_check
                _
              $region132: #{ibrnet_forward.1} parent=107 // pred_check_branch
                %703 = sbr.rel target = $region134
              $region133: #{ibrnet_forward.1} parent=107 // pred_region
                _
              $region134: #{ibrnet_forward.1} parent=107 // pred_fallthru
                _
            $region108: #{ibrnet_forward.1} parent=103 // pred_fallthru
              _
            // Predicated region
            $region109: #{ibrnet_forward.1} parent=103 // pred_check
              _
            $region110: #{ibrnet_forward.1} parent=103 // pred_check_branch
              %673 = sbr.rel target = $region112
            $region111: #{ibrnet_forward.1} parent=103 // pred_region
              %s675 = ssub.s32 256, 1
              loop: start=0, step=1, limit=1
              $region113: #{ibrnet_forward.1} parent=111 // loop_pre_header
                _
              $region114: #{ibrnet_forward.1} parent=111 // loop_header
                %s677 = sphi 0, %s681
                %p678 = scmp.ge.s32.totalorder %s677, 1
                %s682 = sphi %s667, %s667
                %s683 = sphi %s665, %s665
              $region115: #{ibrnet_forward.1} parent=111 // loop_header_branch
                %680 = sbr.rel (%p678) target = $region119
              $region116: #{ibrnet_forward.1} parent=111 // loop_body
                %v684 = vld [vmem:[%s682] sm:%s675]
                %685 = vst [vmem:[%s683] sm:%s675] %v684
                %v686 = vld [vmem:[%s682 + $0x20] sm:%s675]
                %687 = vst [vmem:[%s683 + $0x8] sm:%s675] %v686
              $region117: #{ibrnet_forward.1} parent=111 // loop_footer
                %s681 = sadd.s32 1, %s677
              $region118: #{ibrnet_forward.1} parent=111 // loop_footer_branch
                %676 = sbr.rel target = $region114
              $region119: #{ibrnet_forward.1} parent=111 // loop_exit
                _
            $region112: #{ibrnet_forward.1} parent=103 // pred_fallthru
              _
          $region104: #{ibrnet_forward.1} parent=99 // pred_fallthru
            _
          %704 = vnop
        $region100: #{ibrnet_forward.1} parent=87 // pred_fallthru
          _
      $region88: #{ibrnet_forward.1} parent=5 // pred_fallthru
        _
      %p705 = scmp.le.s32.totalorder 1, %s38
      %p706 = scmp.lt.s32.totalorder %s38, 5
      %p707 = pnand %p705, %p706
      %p708 = pneg %p707
      // Predicated region
      $region135: #{ibrnet_forward.1} parent=5 // pred_check
        _
      $region136: #{ibrnet_forward.1} parent=5 // pred_check_branch
        %710 = sbr.rel (%p707) target = $region138
      $region137: #{ibrnet_forward.1} parent=5 // pred_region
        %s711 = ssub.s32 %s38, 1
        %s712 = sand.u32 %s166, 1
        %s713 = sand.u32 %s166, 1
        %s714 = smul.addr %s713, 16
        %s715 = scalar_lea.vmem [#allocation3], %s714
        // Predicated region
        $region139: #{ibrnet_forward.1} parent=137 // pred_check
          %p716 = pneg %p179
        $region140: #{ibrnet_forward.1} parent=137 // pred_check_branch
          %718 = sbr.rel (%p716) target = $region142
        $region141: #{ibrnet_forward.1} parent=137 // pred_region
          _
        $region142: #{ibrnet_forward.1} parent=137 // pred_fallthru
          _
        %p719 = pneg %p59
        %p720 = pneg %p56
        %p721 = pneg %p80
        %p722 = pneg %p77
        %p723 = pneg %p101
        %p724 = pneg %p98
        %p725 = scmp.lt.s32.totalorder %s43, 3
        %s726 = scalar_select %p725, %s43, 3
        %s727 = smul.addr %s726, 4
        %s728 = scalar_lea.vmem %s3, %s727
        %p729 = pneg %p127
        %p730 = pneg %p124
        %p731 = scmp.lt.s32.totalorder %s43, 3
        %s732 = scalar_select %p731, %s43, 3
        %s733 = smul.addr %s732, 4
        %s734 = scalar_lea.vmem %s4, %s733
        %p735 = pneg %p153
        %p736 = pneg %p150
        %s737 = sand.u32 %s166, 1
        %s738 = sand.u32 %s166, 1
        %s739 = smul.addr %s738, 16
        %s740 = scalar_lea.vmem [#allocation3], %s739
        %p741 = pneg %p179
        %p742 = pneg %p176
        %p743 = pneg %p200
        %p744 = pneg %p197
        %p745 = pneg %p221
        %p746 = pneg %p218
        %p747 = pneg %p242
        %p748 = pneg %p239
        %p749 = pneg %p263
        %p750 = pneg %p260
        %p751 = pneg %p284
        %p752 = pneg %p281
        %p753 = pneg %p305
        %p754 = pneg %p302
        %p755 = pneg %p326
        %p756 = pneg %p323
        %p757 = pneg %p347
        %p758 = pneg %p344
        %p759 = pneg %p368
        %p760 = pneg %p365
        %p761 = pneg %p389
        %p762 = pneg %p386
        %p763 = pneg %p410
        %p764 = pneg %p407
        %p765 = pneg %p431
        %p766 = pneg %p428
        %p767 = pneg %p452
        %p768 = pneg %p449
        %p769 = pneg %p473
        %p770 = pneg %p470
        %p771 = pneg %p494
        %p772 = pneg %p491
        %p773 = pneg %p520
        %p774 = pneg %p517
        %s775 = sand.u32 %s507, 1
        %s776 = scalar_lea.sflag [#allocation5], %s775
        %s777 = sand.u32 %s507, 1
        %s778 = smul.addr %s777, 4
        %s779 = scalar_lea.vmem [#allocation4], %s778
        %p780 = pneg %p546
        %p781 = pneg %p543
        %s782 = sand.u32 %s43, 1
        %s783 = scalar_lea.sflag [#allocation7], %s782
        %s784 = sand.u32 %s533, 1
        %s785 = smul.addr %s784, 4
        %s786 = scalar_lea.vmem [#allocation6], %s785
        %p787 = pneg %p572
        %p788 = pneg %p569
        %s789 = sand.u32 %s43, 1
        %s790 = scalar_lea.sflag [#allocation7], %s789
        %s791 = sand.u32 %s559, 1
        %s792 = smul.addr %s791, 4
        %s793 = scalar_lea.vmem [#allocation8], %s792
        %p794 = scmp.lt.s32.totalorder %s43, 3
        %s795 = scalar_select %p794, %s43, 3
        %s796 = smul.addr %s795, 4
        %s797 = scalar_lea.vmem %s3, %s796
        %p798 = scmp.lt.s32.totalorder %s43, 3
        %s799 = scalar_select %p798, %s43, 3
        %s800 = smul.addr %s799, 4
        %s801 = scalar_lea.vmem %s4, %s800
        %v803 = vld [vmem:[%s2] sm:$0xff]
        %v804 = vld [vmem:[%s2 + $0x8] sm:$0xff]
        %v805 = vld [vmem:[%s2 + $0x10] sm:$0xff]
        %v806 = vld [vmem:[%s2 + $0x18] sm:$0xff]
        %v807 = vld [vmem:[%s2 + $0x20] sm:$0xff]
        %v808 = vld [vmem:[%s2 + $0x28] sm:$0xff]
        %v809 = vld [vmem:[%s2 + $0x30] sm:$0xff]
        %v810 = vld [vmem:[%s2 + $0x38] sm:$0xff]
        %v811 = vld [vmem:[%s6] sm:$0xff]
        %v812 = vld [vmem:[%s7] sm:$0xff]
        %814 = vset.pattern.permute.xlu0 0
        %815 = vperm.xlu0 %814, %v812
        %v816 = vpop.permute.xlu0 %815
        %vm818 = vcmask 64512
        %v820 = vsel %vm818, %v811, 0
        %822 = vmatprep.subr.mxu0 0.0
        %823 = vmatpush1.msra.mxu0 0.0
        %824 = vmatprep.subr.mxu0 0.0
        %825 = vmatpush1.msra.mxu0 0.0
        %826 = vmatprep.subr.mxu0 0.0
        %827 = vmatpush1.msra.mxu0 0.0
        %828 = vmatprep.subr.mxu0 0.0
        %829 = vmatpush1.msra.mxu0 0.0
        %830 = vmatprep.subr.mxu0 0.0
        %831 = vmatpush1.msra.mxu0 0.0
        %832 = vmatprep.subr.mxu0 0.0
        %833 = vmatpush1.msra.mxu0 0.0
        %834 = vmatprep.subr.mxu0 0.0
        %835 = vmatpush1.msra.mxu0 0.0
        %836 = vmatprep.subr.mxu0 0.0
        %837 = vmatpush1.msra.mxu0 0.0
        %838 = vmatprep.subr.mxu0 0.0
        %839 = vmatpush1.msra.mxu0 0.0
        %840 = vmatprep.subr.mxu0 0.0
        %841 = vmatpush1.msra.mxu0 0.0
        %842 = vmatprep.subr.mxu0 0.0
        %843 = vmatpush1.msra.mxu0 0.0
        %844 = vmatprep.subr.mxu0 0.0
        %845 = vmatpush1.msra.mxu0 0.0
        %846 = vmatprep.subr.mxu0 0.0
        %847 = vmatpush1.msra.mxu0 0.0
        %848 = vmatprep.subr.mxu0 0.0
        %849 = vmatpush1.msra.mxu0 0.0
        %850 = vmatprep.subr.mxu0 0.0
        %851 = vmatpush1.msra.mxu0 0.0
        %852 = vmatprep.subr.mxu0 %v804
        %853 = vmatpush1.msra.mxu0 %v803
        %854 = vmatprep.subr.mxu0 0.0
        %855 = vmatpush2.msra.mxu0 0.0
        %856 = vmatprep.subr.mxu0 0.0
        %857 = vmatpush2.msra.mxu0 0.0
        %858 = vmatprep.subr.mxu0 0.0
        %859 = vmatpush2.msra.mxu0 0.0
        %860 = vmatprep.subr.mxu0 0.0
        %861 = vmatpush2.msra.mxu0 0.0
        %862 = vmatprep.subr.mxu0 0.0
        %863 = vmatpush2.msra.mxu0 0.0
        %864 = vmatprep.subr.mxu0 0.0
        %865 = vmatpush2.msra.mxu0 0.0
        %866 = vmatprep.subr.mxu0 0.0
        %867 = vmatpush2.msra.mxu0 0.0
        %868 = vmatprep.subr.mxu0 0.0
        %869 = vmatpush2.msra.mxu0 0.0
        %870 = vmatprep.subr.mxu0 0.0
        %871 = vmatpush2.msra.mxu0 0.0
        %872 = vmatprep.subr.mxu0 0.0
        %873 = vmatpush2.msra.mxu0 0.0
        %874 = vmatprep.subr.mxu0 0.0
        %875 = vmatpush2.msra.mxu0 0.0
        %876 = vmatprep.subr.mxu0 0.0
        %877 = vmatpush2.msra.mxu0 0.0
        %878 = vmatprep.subr.mxu0 0.0
        %879 = vmatpush2.msra.mxu0 0.0
        %880 = vmatprep.subr.mxu0 0.0
        %881 = vmatpush2.msra.mxu0 0.0
        %882 = vmatprep.subr.mxu0 0.0
        %883 = vmatpush2.msra.mxu0 0.0
        %884 = vmatprep.subr.mxu0 0.0
        %885 = vmatpush2.msra.mxu0 0.0
        %886 = vmatprep.mubr.f32.mxu0 0.0
        %887 = vmatmul.mubr.f32.gmra.mxu0 %v820
        %v888 = vpop.f32.mrf.mxu0
        %v889 = vadd.f32 %v816, %v888
        %v890 = vpop.f32.mrf.mxu0
        %v891 = vadd.f32 %v816, %v890
        %892 = vdwg.mxu0
        %893 = vmatprep.subr.mxu0 0.0
        %894 = vmatpush1.msra.mxu0 0.0
        %895 = vmatprep.subr.mxu0 0.0
        %896 = vmatpush1.msra.mxu0 0.0
        %897 = vmatprep.subr.mxu0 0.0
        %898 = vmatpush1.msra.mxu0 0.0
        %899 = vmatprep.subr.mxu0 0.0
        %900 = vmatpush1.msra.mxu0 0.0
        %901 = vmatprep.subr.mxu0 0.0
        %902 = vmatpush1.msra.mxu0 0.0
        %903 = vmatprep.subr.mxu0 0.0
        %904 = vmatpush1.msra.mxu0 0.0
        %905 = vmatprep.subr.mxu0 0.0
        %906 = vmatpush1.msra.mxu0 0.0
        %907 = vmatprep.subr.mxu0 0.0
        %908 = vmatpush1.msra.mxu0 0.0
        %909 = vmatprep.subr.mxu0 0.0
        %910 = vmatpush1.msra.mxu0 0.0
        %911 = vmatprep.subr.mxu0 0.0
        %912 = vmatpush1.msra.mxu0 0.0
        %913 = vmatprep.subr.mxu0 0.0
        %914 = vmatpush1.msra.mxu0 0.0
        %915 = vmatprep.subr.mxu0 0.0
        %916 = vmatpush1.msra.mxu0 0.0
        %917 = vmatprep.subr.mxu0 0.0
        %918 = vmatpush1.msra.mxu0 0.0
        %919 = vmatprep.subr.mxu0 0.0
        %920 = vmatpush1.msra.mxu0 0.0
        %921 = vmatprep.subr.mxu0 0.0
        %922 = vmatpush1.msra.mxu0 0.0
        %923 = vmatprep.subr.mxu0 %v806
        %924 = vmatpush1.msra.mxu0 %v805
        %925 = vmatprep.subr.mxu0 0.0
        %926 = vmatpush2.msra.mxu0 0.0
        %927 = vmatprep.subr.mxu0 0.0
        %928 = vmatpush2.msra.mxu0 0.0
        %929 = vmatprep.subr.mxu0 0.0
        %930 = vmatpush2.msra.mxu0 0.0
        %931 = vmatprep.subr.mxu0 0.0
        %932 = vmatpush2.msra.mxu0 0.0
        %933 = vmatprep.subr.mxu0 0.0
        %934 = vmatpush2.msra.mxu0 0.0
        %935 = vmatprep.subr.mxu0 0.0
        %936 = vmatpush2.msra.mxu0 0.0
        %937 = vmatprep.subr.mxu0 0.0
        %938 = vmatpush2.msra.mxu0 0.0
        %939 = vmatprep.subr.mxu0 0.0
        %940 = vmatpush2.msra.mxu0 0.0
        %941 = vmatprep.subr.mxu0 0.0
        %942 = vmatpush2.msra.mxu0 0.0
        %943 = vmatprep.subr.mxu0 0.0
        %944 = vmatpush2.msra.mxu0 0.0
        %945 = vmatprep.subr.mxu0 0.0
        %946 = vmatpush2.msra.mxu0 0.0
        %947 = vmatprep.subr.mxu0 0.0
        %948 = vmatpush2.msra.mxu0 0.0
        %949 = vmatprep.subr.mxu0 0.0
        %950 = vmatpush2.msra.mxu0 0.0
        %951 = vmatprep.subr.mxu0 0.0
        %952 = vmatpush2.msra.mxu0 0.0
        %953 = vmatprep.subr.mxu0 0.0
        %954 = vmatpush2.msra.mxu0 0.0
        %955 = vmatprep.subr.mxu0 0.0
        %956 = vmatpush2.msra.mxu0 0.0
        %957 = vmatprep.mubr.f32.mxu0 0.0
        %958 = vmatmul.mubr.f32.gmra.mxu0 %v820
        %v959 = vpop.f32.mrf.mxu0
        %v960 = vadd.f32 %v816, %v959
        %v961 = vpop.f32.mrf.mxu0
        %v962 = vadd.f32 %v816, %v961
        %963 = vdwg.mxu0
        %964 = vmatprep.subr.mxu0 0.0
        %965 = vmatpush1.msra.mxu0 0.0
        %966 = vmatprep.subr.mxu0 0.0
        %967 = vmatpush1.msra.mxu0 0.0
        %968 = vmatprep.subr.mxu0 0.0
        %969 = vmatpush1.msra.mxu0 0.0
        %970 = vmatprep.subr.mxu0 0.0
        %971 = vmatpush1.msra.mxu0 0.0
        %972 = vmatprep.subr.mxu0 0.0
        %973 = vmatpush1.msra.mxu0 0.0
        %974 = vmatprep.subr.mxu0 0.0
        %975 = vmatpush1.msra.mxu0 0.0
        %976 = vmatprep.subr.mxu0 0.0
        %977 = vmatpush1.msra.mxu0 0.0
        %978 = vmatprep.subr.mxu0 0.0
        %979 = vmatpush1.msra.mxu0 0.0
        %980 = vmatprep.subr.mxu0 0.0
        %981 = vmatpush1.msra.mxu0 0.0
        %982 = vmatprep.subr.mxu0 0.0
        %983 = vmatpush1.msra.mxu0 0.0
        %984 = vmatprep.subr.mxu0 0.0
        %985 = vmatpush1.msra.mxu0 0.0
        %986 = vmatprep.subr.mxu0 0.0
        %987 = vmatpush1.msra.mxu0 0.0
        %988 = vmatprep.subr.mxu0 0.0
        %989 = vmatpush1.msra.mxu0 0.0
        %990 = vmatprep.subr.mxu0 0.0
        %991 = vmatpush1.msra.mxu0 0.0
        %992 = vmatprep.subr.mxu0 0.0
        %993 = vmatpush1.msra.mxu0 0.0
        %994 = vmatprep.subr.mxu0 %v808
        %995 = vmatpush1.msra.mxu0 %v807
        %996 = vmatprep.subr.mxu0 0.0
        %997 = vmatpush2.msra.mxu0 0.0
        %998 = vmatprep.subr.mxu0 0.0
        %999 = vmatpush2.msra.mxu0 0.0
        %1000 = vmatprep.subr.mxu0 0.0
        %1001 = vmatpush2.msra.mxu0 0.0
        %1002 = vmatprep.subr.mxu0 0.0
        %1003 = vmatpush2.msra.mxu0 0.0
        %1004 = vmatprep.subr.mxu0 0.0
        %1005 = vmatpush2.msra.mxu0 0.0
        %1006 = vmatprep.subr.mxu0 0.0
        %1007 = vmatpush2.msra.mxu0 0.0
        %1008 = vmatprep.subr.mxu0 0.0
        %1009 = vmatpush2.msra.mxu0 0.0
        %1010 = vmatprep.subr.mxu0 0.0
        %1011 = vmatpush2.msra.mxu0 0.0
        %1012 = vmatprep.subr.mxu0 0.0
        %1013 = vmatpush2.msra.mxu0 0.0
        %1014 = vmatprep.subr.mxu0 0.0
        %1015 = vmatpush2.msra.mxu0 0.0
        %1016 = vmatprep.subr.mxu0 0.0
        %1017 = vmatpush2.msra.mxu0 0.0
        %1018 = vmatprep.subr.mxu0 0.0
        %1019 = vmatpush2.msra.mxu0 0.0
        %1020 = vmatprep.subr.mxu0 0.0
        %1021 = vmatpush2.msra.mxu0 0.0
        %1022 = vmatprep.subr.mxu0 0.0
        %1023 = vmatpush2.msra.mxu0 0.0
        %1024 = vmatprep.subr.mxu0 0.0
        %1025 = vmatpush2.msra.mxu0 0.0
        %1026 = vmatprep.subr.mxu0 0.0
        %1027 = vmatpush2.msra.mxu0 0.0
        %1028 = vmatprep.mubr.f32.mxu0 0.0
        %1029 = vmatmul.mubr.f32.gmra.mxu0 %v820
        %v1030 = vpop.f32.mrf.mxu0
        %v1031 = vadd.f32 %v816, %v1030
        %v1032 = vpop.f32.mrf.mxu0
        %v1033 = vadd.f32 %v816, %v1032
        %1034 = vdwg.mxu0
        %1035 = vmatprep.subr.mxu0 0.0
        %1036 = vmatpush1.msra.mxu0 0.0
        %1037 = vmatprep.subr.mxu0 0.0
        %1038 = vmatpush1.msra.mxu0 0.0
        %1039 = vmatprep.subr.mxu0 0.0
        %1040 = vmatpush1.msra.mxu0 0.0
        %1041 = vmatprep.subr.mxu0 0.0
        %1042 = vmatpush1.msra.mxu0 0.0
        %1043 = vmatprep.subr.mxu0 0.0
        %1044 = vmatpush1.msra.mxu0 0.0
        %1045 = vmatprep.subr.mxu0 0.0
        %1046 = vmatpush1.msra.mxu0 0.0
        %1047 = vmatprep.subr.mxu0 0.0
        %1048 = vmatpush1.msra.mxu0 0.0
        %1049 = vmatprep.subr.mxu0 0.0
        %1050 = vmatpush1.msra.mxu0 0.0
        %1051 = vmatprep.subr.mxu0 0.0
        %1052 = vmatpush1.msra.mxu0 0.0
        %1053 = vmatprep.subr.mxu0 0.0
        %1054 = vmatpush1.msra.mxu0 0.0
        %1055 = vmatprep.subr.mxu0 0.0
        %1056 = vmatpush1.msra.mxu0 0.0
        %1057 = vmatprep.subr.mxu0 0.0
        %1058 = vmatpush1.msra.mxu0 0.0
        %1059 = vmatprep.subr.mxu0 0.0
        %1060 = vmatpush1.msra.mxu0 0.0
        %1061 = vmatprep.subr.mxu0 0.0
        %1062 = vmatpush1.msra.mxu0 0.0
        %1063 = vmatprep.subr.mxu0 0.0
        %1064 = vmatpush1.msra.mxu0 0.0
        %1065 = vmatprep.subr.mxu0 %v810
        %1066 = vmatpush1.msra.mxu0 %v809
        %1067 = vmatprep.subr.mxu0 0.0
        %1068 = vmatpush2.msra.mxu0 0.0
        %1069 = vmatprep.subr.mxu0 0.0
        %1070 = vmatpush2.msra.mxu0 0.0
        %1071 = vmatprep.subr.mxu0 0.0
        %1072 = vmatpush2.msra.mxu0 0.0
        %1073 = vmatprep.subr.mxu0 0.0
        %1074 = vmatpush2.msra.mxu0 0.0
        %1075 = vmatprep.subr.mxu0 0.0
        %1076 = vmatpush2.msra.mxu0 0.0
        %1077 = vmatprep.subr.mxu0 0.0
        %1078 = vmatpush2.msra.mxu0 0.0
        %1079 = vmatprep.subr.mxu0 0.0
        %1080 = vmatpush2.msra.mxu0 0.0
        %1081 = vmatprep.subr.mxu0 0.0
        %1082 = vmatpush2.msra.mxu0 0.0
        %1083 = vmatprep.subr.mxu0 0.0
        %1084 = vmatpush2.msra.mxu0 0.0
        %1085 = vmatprep.subr.mxu0 0.0
        %1086 = vmatpush2.msra.mxu0 0.0
        %1087 = vmatprep.subr.mxu0 0.0
        %1088 = vmatpush2.msra.mxu0 0.0
        %1089 = vmatprep.subr.mxu0 0.0
        %1090 = vmatpush2.msra.mxu0 0.0
        %1091 = vmatprep.subr.mxu0 0.0
        %1092 = vmatpush2.msra.mxu0 0.0
        %1093 = vmatprep.subr.mxu0 0.0
        %1094 = vmatpush2.msra.mxu0 0.0
        %1095 = vmatprep.subr.mxu0 0.0
        %1096 = vmatpush2.msra.mxu0 0.0
        %1097 = vmatprep.subr.mxu0 0.0
        %1098 = vmatpush2.msra.mxu0 0.0
        %1099 = vmatprep.mubr.f32.mxu0 0.0
        %1100 = vmatmul.mubr.f32.gmra.mxu0 %v820
        %v1101 = vpop.f32.mrf.mxu0
        %v1102 = vadd.f32 %v816, %v1101
        %v1103 = vpop.f32.mrf.mxu0
        %v1104 = vadd.f32 %v816, %v1103
        %1105 = vdwg.mxu0
        %v1106 = vmax.f32 %v889, 0.0
        %v1107 = vmax.f32 %v891, 0.0
        %v1108 = vmax.f32 %v960, 0.0
        %v1109 = vmax.f32 %v962, 0.0
        %v1110 = vmax.f32 %v1031, 0.0
        %v1111 = vmax.f32 %v1033, 0.0
        %v1112 = vmax.f32 %v1102, 0.0
        %v1113 = vmax.f32 %v1104, 0.0
        %v1114 = vld [vmem:[%s8] sm:$0xff]
        %v1115 = vld [vmem:[%s8 + $0x8] sm:$0xff]
        %v1116 = vld [vmem:[%s9] sm:$0xff]
        %v1117 = vld [vmem:[%s9 + $0x8] sm:$0xff]
        %1119 = vset.pattern.permute.xlu0 0
        %1120 = vperm.xlu0 %1119, %v1116
        %v1121 = vpop.permute.xlu0 %1120
        %1124 = vset.pattern.permute.xlu0 0
        %1125 = vperm.xlu0 %1124, %v1117
        %v1126 = vpop.permute.xlu0 %1125
        %v1129 = vsel %vm818, %v1114, 0
        %v1132 = vsel %vm818, %v1115, 0
        %1134 = vmatprep.subr.mxu0 0.0
        %1135 = vmatpush1.msra.mxu0 0.0
        %1136 = vmatprep.subr.mxu0 0.0
        %1137 = vmatpush1.msra.mxu0 0.0
        %1138 = vmatprep.subr.mxu0 0.0
        %1139 = vmatpush1.msra.mxu0 0.0
        %1140 = vmatprep.subr.mxu0 0.0
        %1141 = vmatpush1.msra.mxu0 0.0
        %1142 = vmatprep.subr.mxu0 0.0
        %1143 = vmatpush1.msra.mxu0 0.0
        %1144 = vmatprep.subr.mxu0 0.0
        %1145 = vmatpush1.msra.mxu0 0.0
        %1146 = vmatprep.subr.mxu0 0.0
        %1147 = vmatpush1.msra.mxu0 0.0
        %1148 = vmatprep.subr.mxu0 0.0
        %1149 = vmatpush1.msra.mxu0 0.0
        %1150 = vmatprep.subr.mxu0 0.0
        %1151 = vmatpush1.msra.mxu0 0.0
        %1152 = vmatprep.subr.mxu0 0.0
        %1153 = vmatpush1.msra.mxu0 0.0
        %1154 = vmatprep.subr.mxu0 0.0
        %1155 = vmatpush1.msra.mxu0 0.0
        %1156 = vmatprep.subr.mxu0 0.0
        %1157 = vmatpush1.msra.mxu0 0.0
        %1158 = vmatprep.subr.mxu0 0.0
        %1159 = vmatpush1.msra.mxu0 0.0
        %1160 = vmatprep.subr.mxu0 0.0
        %1161 = vmatpush1.msra.mxu0 0.0
        %1162 = vmatprep.subr.mxu0 0.0
        %1163 = vmatpush1.msra.mxu0 0.0
        %1164 = vmatprep.subr.mxu0 %v1107
        %1165 = vmatpush1.msra.mxu0 %v1106
        %1166 = vmatprep.subr.mxu0 0.0
        %1167 = vmatpush2.msra.mxu0 0.0
        %1168 = vmatprep.subr.mxu0 0.0
        %1169 = vmatpush2.msra.mxu0 0.0
        %1170 = vmatprep.subr.mxu0 0.0
        %1171 = vmatpush2.msra.mxu0 0.0
        %1172 = vmatprep.subr.mxu0 0.0
        %1173 = vmatpush2.msra.mxu0 0.0
        %1174 = vmatprep.subr.mxu0 0.0
        %1175 = vmatpush2.msra.mxu0 0.0
        %1176 = vmatprep.subr.mxu0 0.0
        %1177 = vmatpush2.msra.mxu0 0.0
        %1178 = vmatprep.subr.mxu0 0.0
        %1179 = vmatpush2.msra.mxu0 0.0
        %1180 = vmatprep.subr.mxu0 0.0
        %1181 = vmatpush2.msra.mxu0 0.0
        %1182 = vmatprep.subr.mxu0 0.0
        %1183 = vmatpush2.msra.mxu0 0.0
        %1184 = vmatprep.subr.mxu0 0.0
        %1185 = vmatpush2.msra.mxu0 0.0
        %1186 = vmatprep.subr.mxu0 0.0
        %1187 = vmatpush2.msra.mxu0 0.0
        %1188 = vmatprep.subr.mxu0 0.0
        %1189 = vmatpush2.msra.mxu0 0.0
        %1190 = vmatprep.subr.mxu0 0.0
        %1191 = vmatpush2.msra.mxu0 0.0
        %1192 = vmatprep.subr.mxu0 0.0
        %1193 = vmatpush2.msra.mxu0 0.0
        %1194 = vmatprep.subr.mxu0 0.0
        %1195 = vmatpush2.msra.mxu0 0.0
        %1196 = vmatprep.subr.mxu0 0.0
        %1197 = vmatpush2.msra.mxu0 0.0
        %1198 = vmatprep.mubr.f32.mxu0 0.0
        %1199 = vmatmul.mubr.f32.gmra.mxu0 %v1129
        %v1200 = vpop.f32.mrf.mxu0
        %v1201 = vadd.f32 %v1121, %v1200
        %v1202 = vpop.f32.mrf.mxu0
        %v1203 = vadd.f32 %v1121, %v1202
        %1204 = vmatprep.mubr.f32.mxu0 0.0
        %1205 = vmatmul.mubr.f32.gmra.mxu0 %v1132
        %v1206 = vpop.f32.mrf.mxu0
        %v1207 = vadd.f32 %v1126, %v1206
        %v1208 = vpop.f32.mrf.mxu0
        %v1209 = vadd.f32 %v1126, %v1208
        %1210 = vdwg.mxu0
        %1211 = vmatprep.subr.mxu0 0.0
        %1212 = vmatpush1.msra.mxu0 0.0
        %1213 = vmatprep.subr.mxu0 0.0
        %1214 = vmatpush1.msra.mxu0 0.0
        %1215 = vmatprep.subr.mxu0 0.0
        %1216 = vmatpush1.msra.mxu0 0.0
        %1217 = vmatprep.subr.mxu0 0.0
        %1218 = vmatpush1.msra.mxu0 0.0
        %1219 = vmatprep.subr.mxu0 0.0
        %1220 = vmatpush1.msra.mxu0 0.0
        %1221 = vmatprep.subr.mxu0 0.0
        %1222 = vmatpush1.msra.mxu0 0.0
        %1223 = vmatprep.subr.mxu0 0.0
        %1224 = vmatpush1.msra.mxu0 0.0
        %1225 = vmatprep.subr.mxu0 0.0
        %1226 = vmatpush1.msra.mxu0 0.0
        %1227 = vmatprep.subr.mxu0 0.0
        %1228 = vmatpush1.msra.mxu0 0.0
        %1229 = vmatprep.subr.mxu0 0.0
        %1230 = vmatpush1.msra.mxu0 0.0
        %1231 = vmatprep.subr.mxu0 0.0
        %1232 = vmatpush1.msra.mxu0 0.0
        %1233 = vmatprep.subr.mxu0 0.0
        %1234 = vmatpush1.msra.mxu0 0.0
        %1235 = vmatprep.subr.mxu0 0.0
        %1236 = vmatpush1.msra.mxu0 0.0
        %1237 = vmatprep.subr.mxu0 0.0
        %1238 = vmatpush1.msra.mxu0 0.0
        %1239 = vmatprep.subr.mxu0 0.0
        %1240 = vmatpush1.msra.mxu0 0.0
        %1241 = vmatprep.subr.mxu0 %v1109
        %1242 = vmatpush1.msra.mxu0 %v1108
        %1243 = vmatprep.subr.mxu0 0.0
        %1244 = vmatpush2.msra.mxu0 0.0
        %1245 = vmatprep.subr.mxu0 0.0
        %1246 = vmatpush2.msra.mxu0 0.0
        %1247 = vmatprep.subr.mxu0 0.0
        %1248 = vmatpush2.msra.mxu0 0.0
        %1249 = vmatprep.subr.mxu0 0.0
        %1250 = vmatpush2.msra.mxu0 0.0
        %1251 = vmatprep.subr.mxu0 0.0
        %1252 = vmatpush2.msra.mxu0 0.0
        %1253 = vmatprep.subr.mxu0 0.0
        %1254 = vmatpush2.msra.mxu0 0.0
        %1255 = vmatprep.subr.mxu0 0.0
        %1256 = vmatpush2.msra.mxu0 0.0
        %1257 = vmatprep.subr.mxu0 0.0
        %1258 = vmatpush2.msra.mxu0 0.0
        %1259 = vmatprep.subr.mxu0 0.0
        %1260 = vmatpush2.msra.mxu0 0.0
        %1261 = vmatprep.subr.mxu0 0.0
        %1262 = vmatpush2.msra.mxu0 0.0
        %1263 = vmatprep.subr.mxu0 0.0
        %1264 = vmatpush2.msra.mxu0 0.0
        %1265 = vmatprep.subr.mxu0 0.0
        %1266 = vmatpush2.msra.mxu0 0.0
        %1267 = vmatprep.subr.mxu0 0.0
        %1268 = vmatpush2.msra.mxu0 0.0
        %1269 = vmatprep.subr.mxu0 0.0
        %1270 = vmatpush2.msra.mxu0 0.0
        %1271 = vmatprep.subr.mxu0 0.0
        %1272 = vmatpush2.msra.mxu0 0.0
        %1273 = vmatprep.subr.mxu0 0.0
        %1274 = vmatpush2.msra.mxu0 0.0
        %1275 = vmatprep.mubr.f32.mxu0 0.0
        %1276 = vmatmul.mubr.f32.gmra.mxu0 %v1129
        %v1277 = vpop.f32.mrf.mxu0
        %v1278 = vadd.f32 %v1121, %v1277
        %v1279 = vpop.f32.mrf.mxu0
        %v1280 = vadd.f32 %v1121, %v1279
        %1281 = vmatprep.mubr.f32.mxu0 0.0
        %1282 = vmatmul.mubr.f32.gmra.mxu0 %v1132
        %v1283 = vpop.f32.mrf.mxu0
        %v1284 = vadd.f32 %v1126, %v1283
        %v1285 = vpop.f32.mrf.mxu0
        %v1286 = vadd.f32 %v1126, %v1285
        %1287 = vdwg.mxu0
        %1288 = vmatprep.subr.mxu0 0.0
        %1289 = vmatpush1.msra.mxu0 0.0
        %1290 = vmatprep.subr.mxu0 0.0
        %1291 = vmatpush1.msra.mxu0 0.0
        %1292 = vmatprep.subr.mxu0 0.0
        %1293 = vmatpush1.msra.mxu0 0.0
        %1294 = vmatprep.subr.mxu0 0.0
        %1295 = vmatpush1.msra.mxu0 0.0
        %1296 = vmatprep.subr.mxu0 0.0
        %1297 = vmatpush1.msra.mxu0 0.0
        %1298 = vmatprep.subr.mxu0 0.0
        %1299 = vmatpush1.msra.mxu0 0.0
        %1300 = vmatprep.subr.mxu0 0.0
        %1301 = vmatpush1.msra.mxu0 0.0
        %1302 = vmatprep.subr.mxu0 0.0
        %1303 = vmatpush1.msra.mxu0 0.0
        %1304 = vmatprep.subr.mxu0 0.0
        %1305 = vmatpush1.msra.mxu0 0.0
        %1306 = vmatprep.subr.mxu0 0.0
        %1307 = vmatpush1.msra.mxu0 0.0
        %1308 = vmatprep.subr.mxu0 0.0
        %1309 = vmatpush1.msra.mxu0 0.0
        %1310 = vmatprep.subr.mxu0 0.0
        %1311 = vmatpush1.msra.mxu0 0.0
        %1312 = vmatprep.subr.mxu0 0.0
        %1313 = vmatpush1.msra.mxu0 0.0
        %1314 = vmatprep.subr.mxu0 0.0
        %1315 = vmatpush1.msra.mxu0 0.0
        %1316 = vmatprep.subr.mxu0 0.0
        %1317 = vmatpush1.msra.mxu0 0.0
        %1318 = vmatprep.subr.mxu0 %v1111
        %1319 = vmatpush1.msra.mxu0 %v1110
        %1320 = vmatprep.subr.mxu0 0.0
        %1321 = vmatpush2.msra.mxu0 0.0
        %1322 = vmatprep.subr.mxu0 0.0
        %1323 = vmatpush2.msra.mxu0 0.0
        %1324 = vmatprep.subr.mxu0 0.0
        %1325 = vmatpush2.msra.mxu0 0.0
        %1326 = vmatprep.subr.mxu0 0.0
        %1327 = vmatpush2.msra.mxu0 0.0
        %1328 = vmatprep.subr.mxu0 0.0
        %1329 = vmatpush2.msra.mxu0 0.0
        %1330 = vmatprep.subr.mxu0 0.0
        %1331 = vmatpush2.msra.mxu0 0.0
        %1332 = vmatprep.subr.mxu0 0.0
        %1333 = vmatpush2.msra.mxu0 0.0
        %1334 = vmatprep.subr.mxu0 0.0
        %1335 = vmatpush2.msra.mxu0 0.0
        %1336 = vmatprep.subr.mxu0 0.0
        %1337 = vmatpush2.msra.mxu0 0.0
        %1338 = vmatprep.subr.mxu0 0.0
        %1339 = vmatpush2.msra.mxu0 0.0
        %1340 = vmatprep.subr.mxu0 0.0
        %1341 = vmatpush2.msra.mxu0 0.0
        %1342 = vmatprep.subr.mxu0 0.0
        %1343 = vmatpush2.msra.mxu0 0.0
        %1344 = vmatprep.subr.mxu0 0.0
        %1345 = vmatpush2.msra.mxu0 0.0
        %1346 = vmatprep.subr.mxu0 0.0
        %1347 = vmatpush2.msra.mxu0 0.0
        %1348 = vmatprep.subr.mxu0 0.0
        %1349 = vmatpush2.msra.mxu0 0.0
        %1350 = vmatprep.subr.mxu0 0.0
        %1351 = vmatpush2.msra.mxu0 0.0
        %1352 = vmatprep.mubr.f32.mxu0 0.0
        %1353 = vmatmul.mubr.f32.gmra.mxu0 %v1129
        %v1354 = vpop.f32.mrf.mxu0
        %v1355 = vadd.f32 %v1121, %v1354
        %v1356 = vpop.f32.mrf.mxu0
        %v1357 = vadd.f32 %v1121, %v1356
        %1358 = vmatprep.mubr.f32.mxu0 0.0
        %1359 = vmatmul.mubr.f32.gmra.mxu0 %v1132
        %v1360 = vpop.f32.mrf.mxu0
        %v1361 = vadd.f32 %v1126, %v1360
        %v1362 = vpop.f32.mrf.mxu0
        %v1363 = vadd.f32 %v1126, %v1362
        %1364 = vdwg.mxu0
        %1365 = vmatprep.subr.mxu0 0.0
        %1366 = vmatpush1.msra.mxu0 0.0
        %1367 = vmatprep.subr.mxu0 0.0
        %1368 = vmatpush1.msra.mxu0 0.0
        %1369 = vmatprep.subr.mxu0 0.0
        %1370 = vmatpush1.msra.mxu0 0.0
        %1371 = vmatprep.subr.mxu0 0.0
        %1372 = vmatpush1.msra.mxu0 0.0
        %1373 = vmatprep.subr.mxu0 0.0
        %1374 = vmatpush1.msra.mxu0 0.0
        %1375 = vmatprep.subr.mxu0 0.0
        %1376 = vmatpush1.msra.mxu0 0.0
        %1377 = vmatprep.subr.mxu0 0.0
        %1378 = vmatpush1.msra.mxu0 0.0
        %1379 = vmatprep.subr.mxu0 0.0
        %1380 = vmatpush1.msra.mxu0 0.0
        %1381 = vmatprep.subr.mxu0 0.0
        %1382 = vmatpush1.msra.mxu0 0.0
        %1383 = vmatprep.subr.mxu0 0.0
        %1384 = vmatpush1.msra.mxu0 0.0
        %1385 = vmatprep.subr.mxu0 0.0
        %1386 = vmatpush1.msra.mxu0 0.0
        %1387 = vmatprep.subr.mxu0 0.0
        %1388 = vmatpush1.msra.mxu0 0.0
        %1389 = vmatprep.subr.mxu0 0.0
        %1390 = vmatpush1.msra.mxu0 0.0
        %1391 = vmatprep.subr.mxu0 0.0
        %1392 = vmatpush1.msra.mxu0 0.0
        %1393 = vmatprep.subr.mxu0 0.0
        %1394 = vmatpush1.msra.mxu0 0.0
        %1395 = vmatprep.subr.mxu0 %v1113
        %1396 = vmatpush1.msra.mxu0 %v1112
        %1397 = vmatprep.subr.mxu0 0.0
        %1398 = vmatpush2.msra.mxu0 0.0
        %1399 = vmatprep.subr.mxu0 0.0
        %1400 = vmatpush2.msra.mxu0 0.0
        %1401 = vmatprep.subr.mxu0 0.0
        %1402 = vmatpush2.msra.mxu0 0.0
        %1403 = vmatprep.subr.mxu0 0.0
        %1404 = vmatpush2.msra.mxu0 0.0
        %1405 = vmatprep.subr.mxu0 0.0
        %1406 = vmatpush2.msra.mxu0 0.0
        %1407 = vmatprep.subr.mxu0 0.0
        %1408 = vmatpush2.msra.mxu0 0.0
        %1409 = vmatprep.subr.mxu0 0.0
        %1410 = vmatpush2.msra.mxu0 0.0
        %1411 = vmatprep.subr.mxu0 0.0
        %1412 = vmatpush2.msra.mxu0 0.0
        %1413 = vmatprep.subr.mxu0 0.0
        %1414 = vmatpush2.msra.mxu0 0.0
        %1415 = vmatprep.subr.mxu0 0.0
        %1416 = vmatpush2.msra.mxu0 0.0
        %1417 = vmatprep.subr.mxu0 0.0
        %1418 = vmatpush2.msra.mxu0 0.0
        %1419 = vmatprep.subr.mxu0 0.0
        %1420 = vmatpush2.msra.mxu0 0.0
        %1421 = vmatprep.subr.mxu0 0.0
        %1422 = vmatpush2.msra.mxu0 0.0
        %1423 = vmatprep.subr.mxu0 0.0
        %1424 = vmatpush2.msra.mxu0 0.0
        %1425 = vmatprep.subr.mxu0 0.0
        %1426 = vmatpush2.msra.mxu0 0.0
        %1427 = vmatprep.subr.mxu0 0.0
        %1428 = vmatpush2.msra.mxu0 0.0
        %1429 = vmatprep.mubr.f32.mxu0 0.0
        %1430 = vmatmul.mubr.f32.gmra.mxu0 %v1129
        %v1431 = vpop.f32.mrf.mxu0
        %v1432 = vadd.f32 %v1121, %v1431
        %v1433 = vpop.f32.mrf.mxu0
        %v1434 = vadd.f32 %v1121, %v1433
        %1435 = vmatprep.mubr.f32.mxu0 0.0
        %1436 = vmatmul.mubr.f32.gmra.mxu0 %v1132
        %v1437 = vpop.f32.mrf.mxu0
        %v1438 = vadd.f32 %v1126, %v1437
        %v1439 = vpop.f32.mrf.mxu0
        %v1440 = vadd.f32 %v1126, %v1439
        %1441 = vdwg.mxu0
        %v1442 = vpack.c.bf16 %v803, %v803
        %v1443 = vpack.c.bf16 %v804, %v804
        %v1444 = vpack.c.bf16 %v805, %v805
        %v1445 = vpack.c.bf16 %v806, %v806
        %v1446 = vpack.c.bf16 %v807, %v807
        %v1447 = vpack.c.bf16 %v808, %v808
        %v1448 = vpack.c.bf16 %v809, %v809
        %v1449 = vpack.c.bf16 %v810, %v810
        %v1450 = vpack.c.bf16 %v1207, %v1201
        %v1451 = vpack.c.bf16 %v1209, %v1203
        %v1452 = vpack.c.bf16 %v1284, %v1278
        %v1453 = vpack.c.bf16 %v1286, %v1280
        %v1454 = vpack.c.bf16 %v1361, %v1355
        %v1455 = vpack.c.bf16 %v1363, %v1357
        %v1456 = vpack.c.bf16 %v1438, %v1432
        %v1457 = vpack.c.bf16 %v1440, %v1434
        %v1458 = vld [vmem:[%s0] sm:$0xff]
        %v1459 = vld [vmem:[%s0 + $0x8] sm:$0xff]
        %v1460 = vld [vmem:[%s0 + $0x10] sm:$0xff]
        %v1461 = vld [vmem:[%s797] sm:$0x7]
        %v1462 = vld [vmem:[%s1] sm:$0xff]
        %v1463 = vld [vmem:[%s1 + $0x8] sm:$0xff]
        %v1464 = vld [vmem:[%s1 + $0x10] sm:$0xff]
        %1466 = vset.pattern.permute.xlu0 0
        %1467 = vperm.xlu0 %1466, %v1462
        %v1468 = vpop.permute.xlu0 %1467
        %1471 = vset.pattern.permute.xlu0 0
        %1472 = vperm.xlu0 %1471, %v1463
        %v1473 = vpop.permute.xlu0 %1472
        %1476 = vset.pattern.permute.xlu0 0
        %1477 = vperm.xlu0 %1476, %v1464
        %v1478 = vpop.permute.xlu0 %1477
        %vm1480 = vcmask 23552
        %v1482 = vsel %vm1480, %v1458, 0
        %v1485 = vsel %vm1480, %v1459, 0
        %v1488 = vsel %vm1480, %v1460, 0
        %vm1490 = vcmask 1042432
        %v1492 = vsel %vm1490, %v1461, 0
        %1494 = vmatprep.subr.mxu0 0.0
        %1495 = vmatpush1.msra.mxu0 0.0
        %1496 = vmatprep.subr.mxu0 0.0
        %1497 = vmatpush1.msra.mxu0 0.0
        %1498 = vmatprep.subr.mxu0 0.0
        %1499 = vmatpush1.msra.mxu0 0.0
        %1500 = vmatprep.subr.mxu0 0.0
        %1501 = vmatpush1.msra.mxu0 0.0
        %1502 = vmatprep.subr.mxu0 0.0
        %1503 = vmatpush1.msra.mxu0 0.0
        %1504 = vmatprep.subr.mxu0 0.0
        %1505 = vmatpush1.msra.mxu0 0.0
        %1506 = vmatprep.subr.mxu0 0.0
        %1507 = vmatpush1.msra.mxu0 0.0
        %1508 = vmatprep.subr.mxu0 0.0
        %1509 = vmatpush1.msra.mxu0 0.0
        %1510 = vmatprep.subr.mxu0 0.0
        %1511 = vmatpush1.msra.mxu0 0.0
        %1512 = vmatprep.subr.mxu0 0.0
        %1513 = vmatpush1.msra.mxu0 0.0
        %1514 = vmatprep.subr.mxu0 0.0
        %1515 = vmatpush1.msra.mxu0 0.0
        %1516 = vmatprep.subr.mxu0 0.0
        %1517 = vmatpush1.msra.mxu0 0.0
        %1518 = vmatprep.subr.mxu0 0.0
        %1519 = vmatpush1.msra.mxu0 0.0
        %1520 = vmatprep.subr.mxu0 0.0
        %1521 = vmatpush1.msra.mxu0 0.0
        %1522 = vmatprep.subr.mxu0 0.0
        %1523 = vmatpush1.msra.mxu0 0.0
        %1524 = vmatprep.subr.mxu0 0.0
        %1525 = vmatpush1.msra.mxu0 %v1492
        %1526 = vmatprep.subr.mxu0 0.0
        %1527 = vmatpush2.msra.mxu0 0.0
        %1528 = vmatprep.subr.mxu0 0.0
        %1529 = vmatpush2.msra.mxu0 0.0
        %1530 = vmatprep.subr.mxu0 0.0
        %1531 = vmatpush2.msra.mxu0 0.0
        %1532 = vmatprep.subr.mxu0 0.0
        %1533 = vmatpush2.msra.mxu0 0.0
        %1534 = vmatprep.subr.mxu0 0.0
        %1535 = vmatpush2.msra.mxu0 0.0
        %1536 = vmatprep.subr.mxu0 0.0
        %1537 = vmatpush2.msra.mxu0 0.0
        %1538 = vmatprep.subr.mxu0 0.0
        %1539 = vmatpush2.msra.mxu0 0.0
        %1540 = vmatprep.subr.mxu0 0.0
        %1541 = vmatpush2.msra.mxu0 0.0
        %1542 = vmatprep.subr.mxu0 0.0
        %1543 = vmatpush2.msra.mxu0 0.0
        %1544 = vmatprep.subr.mxu0 0.0
        %1545 = vmatpush2.msra.mxu0 0.0
        %1546 = vmatprep.subr.mxu0 0.0
        %1547 = vmatpush2.msra.mxu0 0.0
        %1548 = vmatprep.subr.mxu0 0.0
        %1549 = vmatpush2.msra.mxu0 0.0
        %1550 = vmatprep.subr.mxu0 0.0
        %1551 = vmatpush2.msra.mxu0 0.0
        %1552 = vmatprep.subr.mxu0 0.0
        %1553 = vmatpush2.msra.mxu0 0.0
        %1554 = vmatprep.subr.mxu0 0.0
        %1555 = vmatpush2.msra.mxu0 0.0
        %1556 = vmatprep.subr.mxu0 0.0
        %1557 = vmatpush2.msra.mxu0 0.0
        %1558 = vmatprep.mubr.f32.mxu0 0.0
        %1559 = vmatmul.mubr.f32.gmra.mxu0 %v1482
        %v1560 = vpop.f32.mrf.mxu0
        %v1561 = vadd.f32 %v1468, %v1560
        %v1562 = vpop.f32.mrf.mxu0
        %1563 = vmatprep.mubr.f32.mxu0 0.0
        %1564 = vmatmul.mubr.f32.gmra.mxu0 %v1485
        %v1565 = vpop.f32.mrf.mxu0
        %v1566 = vadd.f32 %v1473, %v1565
        %v1567 = vpop.f32.mrf.mxu0
        %1568 = vmatprep.mubr.f32.mxu0 0.0
        %1569 = vmatmul.mubr.f32.gmra.mxu0 %v1488
        %v1570 = vpop.f32.mrf.mxu0
        %v1571 = vadd.f32 %v1478, %v1570
        %v1572 = vpop.f32.mrf.mxu0
        %1573 = vdwg.mxu0
        %v1574 = vadd.f32 %v1571, 1e-06
        %v1575 = vrcp.pop %v1574
        %v1576 = vmul.f32 1.0, %v1575
        %v1577 = vmul.f32 %v1561, %v1576
        %v1578 = vmul.f32 %v1566, %v1576
        %v1579 = vlaneseq
        %v1580 = vshrl.u32 %v1579, 7
        %v1581 = vadd.s32 %v1580, 8
        %v1582 = vcvt.s32.f32 %v1580
        %v1583 = vcvt.s32.f32 %v1581
        %v1584 = vld [vmem:[%s715] sm:$0xff]
        %v1585 = vld [vmem:[%s715 + $0x8] sm:$0xff]
        %v1586 = vld [vmem:[%s12] sm:$0xff]
        %v1587 = vld [vmem:[%s12 + $0x8] sm:$0xff]
        %v1588 = vld [vmem:[%s12 + $0x10] sm:$0xff]
        %v1589 = vld [vmem:[%s12 + $0x18] sm:$0xff]
        %v1590 = vld [vmem:[%s13] sm:$0xff]
        %v1591 = vld [vmem:[%s13 + $0x8] sm:$0xff]
        %v1592 = vld [vmem:[%s13 + $0x10] sm:$0xff]
        %v1593 = vld [vmem:[%s13 + $0x18] sm:$0xff]
        %1595 = vset.pattern.permute.xlu0 0
        %1596 = vperm.xlu0 %1595, %v1590
        %v1597 = vpop.permute.xlu0 %1596
        %1600 = vset.pattern.permute.xlu0 0
        %1601 = vperm.xlu0 %1600, %v1591
        %v1602 = vpop.permute.xlu0 %1601
        %1605 = vset.pattern.permute.xlu0 0
        %1606 = vperm.xlu0 %1605, %v1592
        %v1607 = vpop.permute.xlu0 %1606
        %1610 = vset.pattern.permute.xlu0 0
        %1611 = vperm.xlu0 %1610, %v1593
        %v1612 = vpop.permute.xlu0 %1611
        %vm1614 = vcmask 130048
        %v1616 = vsel %vm1614, %v1586, 0
        %v1619 = vsel %vm1614, %v1587, 0
        %v1622 = vsel %vm1614, %v1588, 0
        %v1625 = vsel %vm1614, %v1589, 0
        %1627 = vmatprep.subr.mxu0 0.0
        %1628 = vmatpush1.msra.mxu0 0.0
        %1629 = vmatprep.subr.mxu0 0.0
        %1630 = vmatpush1.msra.mxu0 0.0
        %1631 = vmatprep.subr.mxu0 0.0
        %1632 = vmatpush1.msra.mxu0 0.0
        %1633 = vmatprep.subr.mxu0 0.0
        %1634 = vmatpush1.msra.mxu0 0.0
        %1635 = vmatprep.subr.mxu0 0.0
        %1636 = vmatpush1.msra.mxu0 0.0
        %1637 = vmatprep.subr.mxu0 0.0
        %1638 = vmatpush1.msra.mxu0 0.0
        %1639 = vmatprep.subr.mxu0 0.0
        %1640 = vmatpush1.msra.mxu0 0.0
        %1641 = vmatprep.subr.mxu0 0.0
        %1642 = vmatpush1.msra.mxu0 0.0
        %1643 = vmatprep.subr.mxu0 0.0
        %1644 = vmatpush1.msra.mxu0 0.0
        %1645 = vmatprep.subr.mxu0 0.0
        %1646 = vmatpush1.msra.mxu0 0.0
        %1647 = vmatprep.subr.mxu0 0.0
        %1648 = vmatpush1.msra.mxu0 0.0
        %1649 = vmatprep.subr.mxu0 0.0
        %1650 = vmatpush1.msra.mxu0 0.0
        %1651 = vmatprep.subr.mxu0 0.0
        %1652 = vmatpush1.msra.mxu0 0.0
        %1653 = vmatprep.subr.mxu0 0.0
        %1654 = vmatpush1.msra.mxu0 0.0
        %1655 = vmatprep.subr.mxu0 0.0
        %1656 = vmatpush1.msra.mxu0 %v1585
        %1657 = vmatprep.subr.mxu0 0.0
        %1658 = vmatpush1.msra.mxu0 %v1584
        %1659 = vmatprep.subr.mxu0 0.0
        %1660 = vmatpush2.msra.mxu0 0.0
        %1661 = vmatprep.subr.mxu0 0.0
        %1662 = vmatpush2.msra.mxu0 0.0
        %1663 = vmatprep.subr.mxu0 0.0
        %1664 = vmatpush2.msra.mxu0 0.0
        %1665 = vmatprep.subr.mxu0 0.0
        %1666 = vmatpush2.msra.mxu0 0.0
        %1667 = vmatprep.subr.mxu0 0.0
        %1668 = vmatpush2.msra.mxu0 0.0
        %1669 = vmatprep.subr.mxu0 0.0
        %1670 = vmatpush2.msra.mxu0 0.0
        %1671 = vmatprep.subr.mxu0 0.0
        %1672 = vmatpush2.msra.mxu0 0.0
        %1673 = vmatprep.subr.mxu0 0.0
        %1674 = vmatpush2.msra.mxu0 0.0
        %1675 = vmatprep.subr.mxu0 0.0
        %1676 = vmatpush2.msra.mxu0 0.0
        %1677 = vmatprep.subr.mxu0 0.0
        %1678 = vmatpush2.msra.mxu0 0.0
        %1679 = vmatprep.subr.mxu0 0.0
        %1680 = vmatpush2.msra.mxu0 0.0
        %1681 = vmatprep.subr.mxu0 0.0
        %1682 = vmatpush2.msra.mxu0 0.0
        %1683 = vmatprep.subr.mxu0 0.0
        %1684 = vmatpush2.msra.mxu0 0.0
        %1685 = vmatprep.subr.mxu0 0.0
        %1686 = vmatpush2.msra.mxu0 0.0
        %1687 = vmatprep.subr.mxu0 0.0
        %1688 = vmatpush2.msra.mxu0 0.0
        %1689 = vmatprep.subr.mxu0 0.0
        %1690 = vmatpush2.msra.mxu0 0.0
        %1691 = vmatprep.mubr.f32.mxu0 0.0
        %1692 = vmatmul.mubr.f32.gmra.mxu0 %v1616
        %v1693 = vpop.f32.mrf.mxu0
        %v1694 = vadd.f32 %v1597, %v1693
        %v1695 = vpop.f32.mrf.mxu0
        %1696 = vmatprep.mubr.f32.mxu0 0.0
        %1697 = vmatmul.mubr.f32.gmra.mxu0 %v1619
        %v1698 = vpop.f32.mrf.mxu0
        %v1699 = vadd.f32 %v1602, %v1698
        %v1700 = vpop.f32.mrf.mxu0
        %1701 = vmatprep.mubr.f32.mxu0 0.0
        %1702 = vmatmul.mubr.f32.gmra.mxu0 %v1622
        %v1703 = vpop.f32.mrf.mxu0
        %v1704 = vadd.f32 %v1607, %v1703
        %v1705 = vpop.f32.mrf.mxu0
        %1706 = vmatprep.mubr.f32.mxu0 0.0
        %1707 = vmatmul.mubr.f32.gmra.mxu0 %v1625
        %v1708 = vpop.f32.mrf.mxu0
        %v1709 = vadd.f32 %v1612, %v1708
        %v1710 = vpop.f32.mrf.mxu0
        %1711 = vdwg.mxu0
        %v1712 = vlaneseq
        %v1713 = vshrl.u32 %v1712, 7
        %v1714 = vsub.s32 0, %v1713
        %v1715 = vrot.slane %v1577, %v1714
        %v1716 = vsub.f32 %v1715, %v1582
        %v1717 = vsub.f32 %v1715, %v1583
        %v1718 = vand.u32 2147483647, %v1716
        %v1719 = vand.u32 2147483647, %v1717
        %v1720 = vsub.f32 1.0, %v1718
        %v1721 = vsub.f32 1.0, %v1719
        %v1722 = vmax.f32 %v1720, 0.0
        %v1723 = vmax.f32 %v1721, 0.0
        %v1724 = vlaneseq
        %v1725 = vshrl.u32 %v1724, 7
        %v1726 = vsub.s32 0, %v1725
        %v1727 = vrot.slane %v1578, %v1726
        %v1728 = vsub.f32 %v1727, %v1582
        %v1729 = vsub.f32 %v1727, %v1583
        %v1730 = vand.u32 2147483647, %v1728
        %v1731 = vand.u32 2147483647, %v1729
        %v1732 = vsub.f32 1.0, %v1730
        %v1733 = vsub.f32 1.0, %v1731
        %v1734 = vmax.f32 %v1732, 0.0
        %v1735 = vmax.f32 %v1733, 0.0
        %v1738 = vcombine.high %v1734, %v1734
        %v1740 = vunpack.c.l.s4 1966171168
        %v1741 = vunpack.c.0.s8 %v1740
        %v1742 = vlaneseq
        %v1743 = vshrl.u32 %v1742, 7
        %v1744 = vsub.s32 %v1741, %v1743
        %v1745 = vrot.slane %v1734, %v1744
        %v1747 = vunpack.c.l.s4 1966171168
        %v1748 = vunpack.c.0.s8 %v1747
        %v1749 = vlaneseq
        %v1750 = vshrl.u32 %v1749, 7
        %v1751 = vsub.s32 %v1748, %v1750
        %v1752 = vrot.slane %v1738, %v1751
        %v1753 = vcombine.high %v1745, %v1745
        %v1754 = vcombine.high %v1752, %v1752
        %v1756 = vunpack.c.l.s4 1966171168
        %v1757 = vunpack.c.0.s8 %v1756
        %v1758 = vlaneseq
        %v1759 = vshrl.u32 %v1758, 7
        %v1760 = vsub.s32 %v1757, %v1759
        %v1761 = vrot.slane %v1745, %v1760
        %v1763 = vunpack.c.l.s4 1966171168
        %v1764 = vunpack.c.0.s8 %v1763
        %v1765 = vlaneseq
        %v1766 = vshrl.u32 %v1765, 7
        %v1767 = vsub.s32 %v1764, %v1766
        %v1768 = vrot.slane %v1752, %v1767
        %v1770 = vunpack.c.l.s4 1966171168
        %v1771 = vunpack.c.0.s8 %v1770
        %v1772 = vlaneseq
        %v1773 = vshrl.u32 %v1772, 7
        %v1774 = vsub.s32 %v1771, %v1773
        %v1775 = vrot.slane %v1753, %v1774
        %v1777 = vunpack.c.l.s4 1966171168
        %v1778 = vunpack.c.0.s8 %v1777
        %v1779 = vlaneseq
        %v1780 = vshrl.u32 %v1779, 7
        %v1781 = vsub.s32 %v1778, %v1780
        %v1782 = vrot.slane %v1754, %v1781
        %v1783 = vcombine.high %v1761, %v1761
        %v1784 = vcombine.high %v1768, %v1768
        %v1785 = vcombine.high %v1775, %v1775
        %v1786 = vcombine.high %v1782, %v1782
        %v1787 = vcombine.high %v1735, %v1735
        %v1789 = vunpack.c.l.s4 1966171168
        %v1790 = vunpack.c.0.s8 %v1789
        %v1791 = vlaneseq
        %v1792 = vshrl.u32 %v1791, 7
        %v1793 = vsub.s32 %v1790, %v1792
        %v1794 = vrot.slane %v1735, %v1793
        %v1796 = vunpack.c.l.s4 1966171168
        %v1797 = vunpack.c.0.s8 %v1796
        %v1798 = vlaneseq
        %v1799 = vshrl.u32 %v1798, 7
        %v1800 = vsub.s32 %v1797, %v1799
        %v1801 = vrot.slane %v1787, %v1800
        %v1802 = vcombine.high %v1794, %v1794
        %v1803 = vcombine.high %v1801, %v1801
        %v1805 = vunpack.c.l.s4 1966171168
        %v1806 = vunpack.c.0.s8 %v1805
        %v1807 = vlaneseq
        %v1808 = vshrl.u32 %v1807, 7
        %v1809 = vsub.s32 %v1806, %v1808
        %v1810 = vrot.slane %v1794, %v1809
        %v1812 = vunpack.c.l.s4 1966171168
        %v1813 = vunpack.c.0.s8 %v1812
        %v1814 = vlaneseq
        %v1815 = vshrl.u32 %v1814, 7
        %v1816 = vsub.s32 %v1813, %v1815
        %v1817 = vrot.slane %v1801, %v1816
        %v1819 = vunpack.c.l.s4 1966171168
        %v1820 = vunpack.c.0.s8 %v1819
        %v1821 = vlaneseq
        %v1822 = vshrl.u32 %v1821, 7
        %v1823 = vsub.s32 %v1820, %v1822
        %v1824 = vrot.slane %v1802, %v1823
        %v1826 = vunpack.c.l.s4 1966171168
        %v1827 = vunpack.c.0.s8 %v1826
        %v1828 = vlaneseq
        %v1829 = vshrl.u32 %v1828, 7
        %v1830 = vsub.s32 %v1827, %v1829
        %v1831 = vrot.slane %v1803, %v1830
        %v1832 = vcombine.high %v1810, %v1810
        %v1833 = vcombine.high %v1817, %v1817
        %v1834 = vcombine.high %v1824, %v1824
        %v1835 = vcombine.high %v1831, %v1831
        %v1836 = vlaneseq
        %v1837 = vshrl.u32 %v1836, 7
        %v1838 = vsub.s32 0, %v1837
        %v1839 = vrot.slane %v1761, %v1838
        %v1840 = vlaneseq
        %v1841 = vshrl.u32 %v1840, 7
        %v1842 = vsub.s32 0, %v1841
        %v1843 = vrot.slane %v1775, %v1842
        %v1844 = vlaneseq
        %v1845 = vshrl.u32 %v1844, 7
        %v1846 = vsub.s32 0, %v1845
        %v1847 = vrot.slane %v1783, %v1846
        %v1848 = vlaneseq
        %v1849 = vshrl.u32 %v1848, 7
        %v1850 = vsub.s32 0, %v1849
        %v1851 = vrot.slane %v1785, %v1850
        %v1852 = vlaneseq
        %v1853 = vshrl.u32 %v1852, 7
        %v1854 = vsub.s32 0, %v1853
        %v1855 = vrot.slane %v1768, %v1854
        %v1856 = vlaneseq
        %v1857 = vshrl.u32 %v1856, 7
        %v1858 = vsub.s32 0, %v1857
        %v1859 = vrot.slane %v1782, %v1858
        %v1860 = vlaneseq
        %v1861 = vshrl.u32 %v1860, 7
        %v1862 = vsub.s32 0, %v1861
        %v1863 = vrot.slane %v1784, %v1862
        %v1864 = vlaneseq
        %v1865 = vshrl.u32 %v1864, 7
        %v1866 = vsub.s32 0, %v1865
        %v1867 = vrot.slane %v1786, %v1866
        %v1868 = vlaneseq
        %v1869 = vshrl.u32 %v1868, 7
        %v1870 = vsub.s32 0, %v1869
        %v1871 = vrot.slane %v1810, %v1870
        %v1872 = vlaneseq
        %v1873 = vshrl.u32 %v1872, 7
        %v1874 = vsub.s32 0, %v1873
        %v1875 = vrot.slane %v1824, %v1874
        %v1876 = vlaneseq
        %v1877 = vshrl.u32 %v1876, 7
        %v1878 = vsub.s32 0, %v1877
        %v1879 = vrot.slane %v1832, %v1878
        %v1880 = vlaneseq
        %v1881 = vshrl.u32 %v1880, 7
        %v1882 = vsub.s32 0, %v1881
        %v1883 = vrot.slane %v1834, %v1882
        %v1884 = vlaneseq
        %v1885 = vshrl.u32 %v1884, 7
        %v1886 = vsub.s32 0, %v1885
        %v1887 = vrot.slane %v1817, %v1886
        %v1888 = vlaneseq
        %v1889 = vshrl.u32 %v1888, 7
        %v1890 = vsub.s32 0, %v1889
        %v1891 = vrot.slane %v1831, %v1890
        %v1892 = vlaneseq
        %v1893 = vshrl.u32 %v1892, 7
        %v1894 = vsub.s32 0, %v1893
        %v1895 = vrot.slane %v1833, %v1894
        %v1896 = vlaneseq
        %v1897 = vshrl.u32 %v1896, 7
        %v1898 = vsub.s32 0, %v1897
        %v1899 = vrot.slane %v1835, %v1898
        %v1916 = vmul.f32 %v1839, %v1722
        %v1917 = vmul.f32 %v1839, %v1723
        %v1918 = vmul.f32 %v1843, %v1722
        %v1919 = vmul.f32 %v1843, %v1723
        %v1920 = vmul.f32 %v1847, %v1722
        %v1921 = vmul.f32 %v1847, %v1723
        %v1922 = vmul.f32 %v1851, %v1722
        %v1923 = vmul.f32 %v1851, %v1723
        %v1924 = vmul.f32 %v1855, %v1722
        %v1925 = vmul.f32 %v1855, %v1723
        %v1926 = vmul.f32 %v1859, %v1722
        %v1927 = vmul.f32 %v1859, %v1723
        %v1928 = vmul.f32 %v1863, %v1722
        %v1929 = vmul.f32 %v1863, %v1723
        %v1930 = vmul.f32 %v1867, %v1722
        %v1931 = vmul.f32 %v1867, %v1723
        %v1932 = vmul.f32 %v1871, %v1722
        %v1933 = vmul.f32 %v1871, %v1723
        %v1934 = vmul.f32 %v1875, %v1722
        %v1935 = vmul.f32 %v1875, %v1723
        %v1936 = vmul.f32 %v1879, %v1722
        %v1937 = vmul.f32 %v1879, %v1723
        %v1938 = vmul.f32 %v1883, %v1722
        %v1939 = vmul.f32 %v1883, %v1723
        %v1940 = vmul.f32 %v1887, %v1722
        %v1941 = vmul.f32 %v1887, %v1723
        %v1942 = vmul.f32 %v1891, %v1722
        %v1943 = vmul.f32 %v1891, %v1723
        %v1944 = vmul.f32 %v1895, %v1722
        %v1945 = vmul.f32 %v1895, %v1723
        %v1946 = vmul.f32 %v1899, %v1722
        %v1947 = vmul.f32 %v1899, %v1723
        %v1948 = vpack.c.bf16 %v1917, %v1916
        %v1949 = vpack.c.bf16 %v1919, %v1918
        %v1950 = vpack.c.bf16 %v1921, %v1920
        %v1951 = vpack.c.bf16 %v1923, %v1922
        %v1952 = vpack.c.bf16 %v1925, %v1924
        %v1953 = vpack.c.bf16 %v1927, %v1926
        %v1954 = vpack.c.bf16 %v1929, %v1928
        %v1955 = vpack.c.bf16 %v1931, %v1930
        %v1956 = vpack.c.bf16 %v1933, %v1932
        %v1957 = vpack.c.bf16 %v1935, %v1934
        %v1958 = vpack.c.bf16 %v1937, %v1936
        %v1959 = vpack.c.bf16 %v1939, %v1938
        %v1960 = vpack.c.bf16 %v1941, %v1940
        %v1961 = vpack.c.bf16 %v1943, %v1942
        %v1962 = vpack.c.bf16 %v1945, %v1944
        %v1963 = vpack.c.bf16 %v1947, %v1946
        %1964 = vmatprep.subr.bf16.mxu0 0
        %1965 = vmatpush1.bf16.msra.mxu0 %v1955
        %1966 = vmatprep.subr.bf16.mxu0 0
        %1967 = vmatpush1.bf16.msra.mxu0 %v1954
        %1968 = vmatprep.subr.bf16.mxu0 0
        %1969 = vmatpush1.bf16.msra.mxu0 %v1953
        %1970 = vmatprep.subr.bf16.mxu0 0
        %1971 = vmatpush1.bf16.msra.mxu0 %v1952
        %1972 = vmatprep.subr.bf16.mxu0 0
        %1973 = vmatpush1.bf16.msra.mxu0 %v1951
        %1974 = vmatprep.subr.bf16.mxu0 0
        %1975 = vmatpush1.bf16.msra.mxu0 %v1950
        %1976 = vmatprep.subr.bf16.mxu0 0
        %1977 = vmatpush1.bf16.msra.mxu0 %v1949
        %1978 = vmatprep.subr.bf16.mxu0 0
        %1979 = vmatpush1.bf16.msra.mxu0 %v1948
        %1980 = vmatprep.subr.bf16.mxu0 0
        %1981 = vmatpush2.bf16.msra.mxu0 %v1963
        %1982 = vmatprep.subr.bf16.mxu0 0
        %1983 = vmatpush2.bf16.msra.mxu0 %v1962
        %1984 = vmatprep.subr.bf16.mxu0 0
        %1985 = vmatpush2.bf16.msra.mxu0 %v1961
        %1986 = vmatprep.subr.bf16.mxu0 0
        %1987 = vmatpush2.bf16.msra.mxu0 %v1960
        %1988 = vmatprep.subr.bf16.mxu0 0
        %1989 = vmatpush2.bf16.msra.mxu0 %v1959
        %1990 = vmatprep.subr.bf16.mxu0 0
        %1991 = vmatpush2.bf16.msra.mxu0 %v1958
        %1992 = vmatprep.subr.bf16.mxu0 0
        %1993 = vmatpush2.bf16.msra.mxu0 %v1957
        %1994 = vmatprep.subr.bf16.mxu0 0
        %1995 = vmatpush2.bf16.msra.mxu0 %v1956
        %1996 = vmatprep.mubr.bf16.mxu0 %v1443
        %1997 = vmatmul.mubr.bf16.gmra.mxu0 %v1442
        %v1998 = vpop.f32.mrf.mxu0
        %v1999 = vadd.f32 0.0, %v1998
        %v2000 = vpop.f32.mrf.mxu0
        %v2001 = vpop.f32.mrf.mxu0
        %v2002 = vpop.f32.mrf.mxu0
        %2003 = vdwg.mxu0
        %2004 = vmatprep.subr.bf16.mxu0 0
        %2005 = vmatpush1.bf16.msra.mxu0 %v1955
        %2006 = vmatprep.subr.bf16.mxu0 0
        %2007 = vmatpush1.bf16.msra.mxu0 %v1954
        %2008 = vmatprep.subr.bf16.mxu0 0
        %2009 = vmatpush1.bf16.msra.mxu0 %v1953
        %2010 = vmatprep.subr.bf16.mxu0 0
        %2011 = vmatpush1.bf16.msra.mxu0 %v1952
        %2012 = vmatprep.subr.bf16.mxu0 0
        %2013 = vmatpush1.bf16.msra.mxu0 %v1951
        %2014 = vmatprep.subr.bf16.mxu0 0
        %2015 = vmatpush1.bf16.msra.mxu0 %v1950
        %2016 = vmatprep.subr.bf16.mxu0 0
        %2017 = vmatpush1.bf16.msra.mxu0 %v1949
        %2018 = vmatprep.subr.bf16.mxu0 0
        %2019 = vmatpush1.bf16.msra.mxu0 %v1948
        %2020 = vmatprep.subr.bf16.mxu0 0
        %2021 = vmatpush2.bf16.msra.mxu0 %v1963
        %2022 = vmatprep.subr.bf16.mxu0 0
        %2023 = vmatpush2.bf16.msra.mxu0 %v1962
        %2024 = vmatprep.subr.bf16.mxu0 0
        %2025 = vmatpush2.bf16.msra.mxu0 %v1961
        %2026 = vmatprep.subr.bf16.mxu0 0
        %2027 = vmatpush2.bf16.msra.mxu0 %v1960
        %2028 = vmatprep.subr.bf16.mxu0 0
        %2029 = vmatpush2.bf16.msra.mxu0 %v1959
        %2030 = vmatprep.subr.bf16.mxu0 0
        %2031 = vmatpush2.bf16.msra.mxu0 %v1958
        %2032 = vmatprep.subr.bf16.mxu0 0
        %2033 = vmatpush2.bf16.msra.mxu0 %v1957
        %2034 = vmatprep.subr.bf16.mxu0 0
        %2035 = vmatpush2.bf16.msra.mxu0 %v1956
        %2036 = vmatprep.mubr.bf16.mxu0 %v1451
        %2037 = vmatmul.mubr.bf16.gmra.mxu0 %v1450
        %v2038 = vpop.f32.mrf.mxu0
        %v2039 = vadd.f32 0.0, %v2038
        %v2040 = vpop.f32.mrf.mxu0
        %v2041 = vpop.f32.mrf.mxu0
        %v2042 = vadd.f32 0.0, %v2041
        %v2043 = vpop.f32.mrf.mxu0
        %2044 = vdwg.mxu0
        %v2045 = vld [vmem:[%s10] sm:$0xff]
        %v2046 = vld [vmem:[%s10 + $0x8] sm:$0xff]
        %v2047 = vld [vmem:[%s10 + $0x10] sm:$0xff]
        %v2048 = vld [vmem:[%s10 + $0x18] sm:$0xff]
        %v2049 = vld [vmem:[%s11] sm:$0xff]
        %v2050 = vld [vmem:[%s11 + $0x8] sm:$0xff]
        %v2051 = vld [vmem:[%s11 + $0x10] sm:$0xff]
        %v2052 = vld [vmem:[%s11 + $0x18] sm:$0xff]
        %v2054 = vsel %vm1614, %v2049, 0
        %v2057 = vsel %vm1614, %v2050, 0
        %v2060 = vsel %vm1614, %v2051, 0
        %v2063 = vsel %vm1614, %v2052, 0
        %2065 = vmatprep.subr.mxu0 0.0
        %2066 = vmatpush1.msra.mxu0 0.0
        %2067 = vmatprep.subr.mxu0 0.0
        %2068 = vmatpush1.msra.mxu0 0.0
        %2069 = vmatprep.subr.mxu0 0.0
        %2070 = vmatpush1.msra.mxu0 0.0
        %2071 = vmatprep.subr.mxu0 0.0
        %2072 = vmatpush1.msra.mxu0 0.0
        %2073 = vmatprep.subr.mxu0 0.0
        %2074 = vmatpush1.msra.mxu0 0.0
        %2075 = vmatprep.subr.mxu0 0.0
        %2076 = vmatpush1.msra.mxu0 0.0
        %2077 = vmatprep.subr.mxu0 0.0
        %2078 = vmatpush1.msra.mxu0 0.0
        %2079 = vmatprep.subr.mxu0 0.0
        %2080 = vmatpush1.msra.mxu0 0.0
        %2081 = vmatprep.subr.mxu0 0.0
        %2082 = vmatpush1.msra.mxu0 0.0
        %2083 = vmatprep.subr.mxu0 0.0
        %2084 = vmatpush1.msra.mxu0 0.0
        %2085 = vmatprep.subr.mxu0 0.0
        %2086 = vmatpush1.msra.mxu0 0.0
        %2087 = vmatprep.subr.mxu0 0.0
        %2088 = vmatpush1.msra.mxu0 0.0
        %2089 = vmatprep.subr.mxu0 0.0
        %2090 = vmatpush1.msra.mxu0 0.0
        %2091 = vmatprep.subr.mxu0 0.0
        %2092 = vmatpush1.msra.mxu0 0.0
        %2093 = vmatprep.subr.mxu0 0.0
        %2094 = vmatpush1.msra.mxu0 %v2042
        %2095 = vmatprep.subr.mxu0 0.0
        %2096 = vmatpush1.msra.mxu0 %v2039
        %2097 = vmatprep.subr.mxu0 0.0
        %2098 = vmatpush2.msra.mxu0 0.0
        %2099 = vmatprep.subr.mxu0 0.0
        %2100 = vmatpush2.msra.mxu0 0.0
        %2101 = vmatprep.subr.mxu0 0.0
        %2102 = vmatpush2.msra.mxu0 0.0
        %2103 = vmatprep.subr.mxu0 0.0
        %2104 = vmatpush2.msra.mxu0 0.0
        %2105 = vmatprep.subr.mxu0 0.0
        %2106 = vmatpush2.msra.mxu0 0.0
        %2107 = vmatprep.subr.mxu0 0.0
        %2108 = vmatpush2.msra.mxu0 0.0
        %2109 = vmatprep.subr.mxu0 0.0
        %2110 = vmatpush2.msra.mxu0 0.0
        %2111 = vmatprep.subr.mxu0 0.0
        %2112 = vmatpush2.msra.mxu0 0.0
        %2113 = vmatprep.subr.mxu0 0.0
        %2114 = vmatpush2.msra.mxu0 0.0
        %2115 = vmatprep.subr.mxu0 0.0
        %2116 = vmatpush2.msra.mxu0 0.0
        %2117 = vmatprep.subr.mxu0 0.0
        %2118 = vmatpush2.msra.mxu0 0.0
        %2119 = vmatprep.subr.mxu0 0.0
        %2120 = vmatpush2.msra.mxu0 0.0
        %2121 = vmatprep.subr.mxu0 0.0
        %2122 = vmatpush2.msra.mxu0 0.0
        %2123 = vmatprep.subr.mxu0 0.0
        %2124 = vmatpush2.msra.mxu0 0.0
        %2125 = vmatprep.subr.mxu0 0.0
        %2126 = vmatpush2.msra.mxu0 0.0
        %2127 = vmatprep.subr.mxu0 0.0
        %2128 = vmatpush2.msra.mxu0 0.0
        %2129 = vmatprep.mubr.f32.mxu0 0.0
        %2130 = vmatmul.mubr.f32.gmra.mxu0 %v2054
        %v2131 = vpop.f32.mrf.mxu0
        %v2132 = vadd.f32 0.0, %v2131
        %v2133 = vpop.f32.mrf.mxu0
        %2134 = vmatprep.mubr.f32.mxu0 0.0
        %2135 = vmatmul.mubr.f32.gmra.mxu0 %v2057
        %v2136 = vpop.f32.mrf.mxu0
        %v2137 = vadd.f32 0.0, %v2136
        %v2138 = vpop.f32.mrf.mxu0
        %2139 = vmatprep.mubr.f32.mxu0 0.0
        %2140 = vmatmul.mubr.f32.gmra.mxu0 %v2060
        %v2141 = vpop.f32.mrf.mxu0
        %v2142 = vadd.f32 0.0, %v2141
        %v2143 = vpop.f32.mrf.mxu0
        %2144 = vmatprep.mubr.f32.mxu0 0.0
        %2145 = vmatmul.mubr.f32.gmra.mxu0 %v2063
        %v2146 = vpop.f32.mrf.mxu0
        %v2147 = vadd.f32 0.0, %v2146
        %v2148 = vpop.f32.mrf.mxu0
        %2149 = vdwg.mxu0
        %v2151 = vsel %vm818, %v2045, 0
        %v2154 = vsel %vm818, %v2046, 0
        %v2157 = vsel %vm818, %v2047, 0
        %v2160 = vsel %vm818, %v2048, 0
        %2162 = vmatprep.subr.mxu0 0.0
        %2163 = vmatpush1.msra.mxu0 0.0
        %2164 = vmatprep.subr.mxu0 0.0
        %2165 = vmatpush1.msra.mxu0 0.0
        %2166 = vmatprep.subr.mxu0 0.0
        %2167 = vmatpush1.msra.mxu0 0.0
        %2168 = vmatprep.subr.mxu0 0.0
        %2169 = vmatpush1.msra.mxu0 0.0
        %2170 = vmatprep.subr.mxu0 0.0
        %2171 = vmatpush1.msra.mxu0 0.0
        %2172 = vmatprep.subr.mxu0 0.0
        %2173 = vmatpush1.msra.mxu0 0.0
        %2174 = vmatprep.subr.mxu0 0.0
        %2175 = vmatpush1.msra.mxu0 0.0
        %2176 = vmatprep.subr.mxu0 0.0
        %2177 = vmatpush1.msra.mxu0 0.0
        %2178 = vmatprep.subr.mxu0 0.0
        %2179 = vmatpush1.msra.mxu0 0.0
        %2180 = vmatprep.subr.mxu0 0.0
        %2181 = vmatpush1.msra.mxu0 0.0
        %2182 = vmatprep.subr.mxu0 0.0
        %2183 = vmatpush1.msra.mxu0 0.0
        %2184 = vmatprep.subr.mxu0 0.0
        %2185 = vmatpush1.msra.mxu0 0.0
        %2186 = vmatprep.subr.mxu0 0.0
        %2187 = vmatpush1.msra.mxu0 0.0
        %2188 = vmatprep.subr.mxu0 0.0
        %2189 = vmatpush1.msra.mxu0 0.0
        %2190 = vmatprep.subr.mxu0 0.0
        %2191 = vmatpush1.msra.mxu0 0.0
        %2192 = vmatprep.subr.mxu0 0.0
        %2193 = vmatpush1.msra.mxu0 %v1999
        %2194 = vmatprep.subr.mxu0 0.0
        %2195 = vmatpush2.msra.mxu0 0.0
        %2196 = vmatprep.subr.mxu0 0.0
        %2197 = vmatpush2.msra.mxu0 0.0
        %2198 = vmatprep.subr.mxu0 0.0
        %2199 = vmatpush2.msra.mxu0 0.0
        %2200 = vmatprep.subr.mxu0 0.0
        %2201 = vmatpush2.msra.mxu0 0.0
        %2202 = vmatprep.subr.mxu0 0.0
        %2203 = vmatpush2.msra.mxu0 0.0
        %2204 = vmatprep.subr.mxu0 0.0
        %2205 = vmatpush2.msra.mxu0 0.0
        %2206 = vmatprep.subr.mxu0 0.0
        %2207 = vmatpush2.msra.mxu0 0.0
        %2208 = vmatprep.subr.mxu0 0.0
        %2209 = vmatpush2.msra.mxu0 0.0
        %2210 = vmatprep.subr.mxu0 0.0
        %2211 = vmatpush2.msra.mxu0 0.0
        %2212 = vmatprep.subr.mxu0 0.0
        %2213 = vmatpush2.msra.mxu0 0.0
        %2214 = vmatprep.subr.mxu0 0.0
        %2215 = vmatpush2.msra.mxu0 0.0
        %2216 = vmatprep.subr.mxu0 0.0
        %2217 = vmatpush2.msra.mxu0 0.0
        %2218 = vmatprep.subr.mxu0 0.0
        %2219 = vmatpush2.msra.mxu0 0.0
        %2220 = vmatprep.subr.mxu0 0.0
        %2221 = vmatpush2.msra.mxu0 0.0
        %2222 = vmatprep.subr.mxu0 0.0
        %2223 = vmatpush2.msra.mxu0 0.0
        %2224 = vmatprep.subr.mxu0 0.0
        %2225 = vmatpush2.msra.mxu0 0.0
        %2226 = vmatprep.mubr.f32.mxu0 0.0
        %2227 = vmatmul.mubr.f32.gmra.mxu0 %v2151
        %v2228 = vpop.f32.mrf.mxu0
        %v2229 = vadd.f32 %v2132, %v2228
        %v2230 = vpop.f32.mrf.mxu0
        %2231 = vmatprep.mubr.f32.mxu0 0.0
        %2232 = vmatmul.mubr.f32.gmra.mxu0 %v2154
        %v2233 = vpop.f32.mrf.mxu0
        %v2234 = vadd.f32 %v2137, %v2233
        %v2235 = vpop.f32.mrf.mxu0
        %2236 = vmatprep.mubr.f32.mxu0 0.0
        %2237 = vmatmul.mubr.f32.gmra.mxu0 %v2157
        %v2238 = vpop.f32.mrf.mxu0
        %v2239 = vadd.f32 %v2142, %v2238
        %v2240 = vpop.f32.mrf.mxu0
        %2241 = vmatprep.mubr.f32.mxu0 0.0
        %2242 = vmatmul.mubr.f32.gmra.mxu0 %v2160
        %v2243 = vpop.f32.mrf.mxu0
        %v2244 = vadd.f32 %v2147, %v2243
        %v2245 = vpop.f32.mrf.mxu0
        %2246 = vdwg.mxu0
        %v2247 = vadd.f32 %v2229, %v1694
        %v2248 = vadd.f32 %v2234, %v1699
        %v2249 = vadd.f32 %v2239, %v1704
        %v2250 = vadd.f32 %v2244, %v1709
        %v2251 = vmax.f32 %v2247, 0.0
        %v2252 = vmax.f32 %v2248, 0.0
        %v2253 = vmax.f32 %v2249, 0.0
        %v2254 = vmax.f32 %v2250, 0.0
        %v2255 = vld [vmem:[%s14] sm:$0xff]
        %v2256 = vld [vmem:[%s14 + $0x8] sm:$0xff]
        %v2257 = vld [vmem:[%s14 + $0x10] sm:$0xff]
        %v2258 = vld [vmem:[%s14 + $0x18] sm:$0xff]
        %2260 = vset.pattern.permute.xlu0 0
        %2261 = vperm.xlu0 %2260, %v2255
        %v2262 = vpop.permute.xlu0 %2261
        %2265 = vset.pattern.permute.xlu0 0
        %2266 = vperm.xlu0 %2265, %v2256
        %v2267 = vpop.permute.xlu0 %2266
        %2270 = vset.pattern.permute.xlu0 0
        %2271 = vperm.xlu0 %2270, %v2257
        %v2272 = vpop.permute.xlu0 %2271
        %2275 = vset.pattern.permute.xlu0 0
        %2276 = vperm.xlu0 %2275, %v2258
        %v2277 = vpop.permute.xlu0 %2276
        %v2279 = vmul.f32 %v2262, %v2251
        %v2280 = vmul.f32 %v2267, %v2252
        %v2281 = vmul.f32 %v2272, %v2253
        %v2282 = vmul.f32 %v2277, %v2254
        %v2283 = vadd.f32 %v2279, %v2280
        %v2284 = vadd.f32 %v2283, %v2281
        %v2285 = vadd.f32 %v2284, %v2282
        %v2286 = vrot.slane %v2285, 4
        %v2287 = vadd.f32 %v2285, %v2286
        %v2288 = vrot.slane %v2287, 2
        %v2289 = vadd.f32 %v2287, %v2288
        %v2290 = vrot.slane %v2289, 1
        %v2291 = vadd.f32 %v2289, %v2290
        %v2292 = vld [vmem:[#allocation2] sm:$0x1]
        %2294 = vset.pattern.permute.xlu0 0
        %2295 = vperm.xlu0 %2294, %v2292
        %v2296 = vpop.permute.xlu0 %2295
        %v2298 = vlaneseq
        %v2299 = vshrl.u32 %v2298, 7
        %v2300 = vsub.s32 0, %v2299
        %v2301 = vrot.slane %v2296, %v2300
        %v2302 = vadd.f32 %v2291, %v2301
        %v2303 = vlaneseq
        %v2304 = vshrl.u32 %v2303, 7
        %v2305 = vsub.s32 1, %v2304
        %v2306 = vrot.slane %v1577, %v2305
        %v2307 = vsub.f32 %v2306, %v1582
        %v2308 = vsub.f32 %v2306, %v1583
        %v2309 = vand.u32 2147483647, %v2307
        %v2310 = vand.u32 2147483647, %v2308
        %v2311 = vsub.f32 1.0, %v2309
        %v2312 = vsub.f32 1.0, %v2310
        %v2313 = vmax.f32 %v2311, 0.0
        %v2314 = vmax.f32 %v2312, 0.0
        %v2315 = vlaneseq
        %v2316 = vshrl.u32 %v2315, 7
        %v2317 = vsub.s32 1, %v2316
        %v2318 = vrot.slane %v1578, %v2317
        %v2319 = vsub.f32 %v2318, %v1582
        %v2320 = vsub.f32 %v2318, %v1583
        %v2321 = vand.u32 2147483647, %v2319
        %v2322 = vand.u32 2147483647, %v2320
        %v2323 = vsub.f32 1.0, %v2321
        %v2324 = vsub.f32 1.0, %v2322
        %v2325 = vmax.f32 %v2323, 0.0
        %v2326 = vmax.f32 %v2324, 0.0
        %v2329 = vcombine.high %v2325, %v2325
        %v2331 = vunpack.c.l.s4 1966171168
        %v2332 = vunpack.c.0.s8 %v2331
        %v2333 = vlaneseq
        %v2334 = vshrl.u32 %v2333, 7
        %v2335 = vsub.s32 %v2332, %v2334
        %v2336 = vrot.slane %v2325, %v2335
        %v2338 = vunpack.c.l.s4 1966171168
        %v2339 = vunpack.c.0.s8 %v2338
        %v2340 = vlaneseq
        %v2341 = vshrl.u32 %v2340, 7
        %v2342 = vsub.s32 %v2339, %v2341
        %v2343 = vrot.slane %v2329, %v2342
        %v2344 = vcombine.high %v2336, %v2336
        %v2345 = vcombine.high %v2343, %v2343
        %v2347 = vunpack.c.l.s4 1966171168
        %v2348 = vunpack.c.0.s8 %v2347
        %v2349 = vlaneseq
        %v2350 = vshrl.u32 %v2349, 7
        %v2351 = vsub.s32 %v2348, %v2350
        %v2352 = vrot.slane %v2336, %v2351
        %v2354 = vunpack.c.l.s4 1966171168
        %v2355 = vunpack.c.0.s8 %v2354
        %v2356 = vlaneseq
        %v2357 = vshrl.u32 %v2356, 7
        %v2358 = vsub.s32 %v2355, %v2357
        %v2359 = vrot.slane %v2343, %v2358
        %v2361 = vunpack.c.l.s4 1966171168
        %v2362 = vunpack.c.0.s8 %v2361
        %v2363 = vlaneseq
        %v2364 = vshrl.u32 %v2363, 7
        %v2365 = vsub.s32 %v2362, %v2364
        %v2366 = vrot.slane %v2344, %v2365
        %v2368 = vunpack.c.l.s4 1966171168
        %v2369 = vunpack.c.0.s8 %v2368
        %v2370 = vlaneseq
        %v2371 = vshrl.u32 %v2370, 7
        %v2372 = vsub.s32 %v2369, %v2371
        %v2373 = vrot.slane %v2345, %v2372
        %v2374 = vcombine.high %v2352, %v2352
        %v2375 = vcombine.high %v2359, %v2359
        %v2376 = vcombine.high %v2366, %v2366
        %v2377 = vcombine.high %v2373, %v2373
        %v2378 = vcombine.high %v2326, %v2326
        %v2380 = vunpack.c.l.s4 1966171168
        %v2381 = vunpack.c.0.s8 %v2380
        %v2382 = vlaneseq
        %v2383 = vshrl.u32 %v2382, 7
        %v2384 = vsub.s32 %v2381, %v2383
        %v2385 = vrot.slane %v2326, %v2384
        %v2387 = vunpack.c.l.s4 1966171168
        %v2388 = vunpack.c.0.s8 %v2387
        %v2389 = vlaneseq
        %v2390 = vshrl.u32 %v2389, 7
        %v2391 = vsub.s32 %v2388, %v2390
        %v2392 = vrot.slane %v2378, %v2391
        %v2393 = vcombine.high %v2385, %v2385
        %v2394 = vcombine.high %v2392, %v2392
        %v2396 = vunpack.c.l.s4 1966171168
        %v2397 = vunpack.c.0.s8 %v2396
        %v2398 = vlaneseq
        %v2399 = vshrl.u32 %v2398, 7
        %v2400 = vsub.s32 %v2397, %v2399
        %v2401 = vrot.slane %v2385, %v2400
        %v2403 = vunpack.c.l.s4 1966171168
        %v2404 = vunpack.c.0.s8 %v2403
        %v2405 = vlaneseq
        %v2406 = vshrl.u32 %v2405, 7
        %v2407 = vsub.s32 %v2404, %v2406
        %v2408 = vrot.slane %v2392, %v2407
        %v2410 = vunpack.c.l.s4 1966171168
        %v2411 = vunpack.c.0.s8 %v2410
        %v2412 = vlaneseq
        %v2413 = vshrl.u32 %v2412, 7
        %v2414 = vsub.s32 %v2411, %v2413
        %v2415 = vrot.slane %v2393, %v2414
        %v2417 = vunpack.c.l.s4 1966171168
        %v2418 = vunpack.c.0.s8 %v2417
        %v2419 = vlaneseq
        %v2420 = vshrl.u32 %v2419, 7
        %v2421 = vsub.s32 %v2418, %v2420
        %v2422 = vrot.slane %v2394, %v2421
        %v2423 = vcombine.high %v2401, %v2401
        %v2424 = vcombine.high %v2408, %v2408
        %v2425 = vcombine.high %v2415, %v2415
        %v2426 = vcombine.high %v2422, %v2422
        %v2427 = vlaneseq
        %v2428 = vshrl.u32 %v2427, 7
        %v2429 = vsub.s32 0, %v2428
        %v2430 = vrot.slane %v2352, %v2429
        %v2431 = vlaneseq
        %v2432 = vshrl.u32 %v2431, 7
        %v2433 = vsub.s32 0, %v2432
        %v2434 = vrot.slane %v2366, %v2433
        %v2435 = vlaneseq
        %v2436 = vshrl.u32 %v2435, 7
        %v2437 = vsub.s32 0, %v2436
        %v2438 = vrot.slane %v2374, %v2437
        %v2439 = vlaneseq
        %v2440 = vshrl.u32 %v2439, 7
        %v2441 = vsub.s32 0, %v2440
        %v2442 = vrot.slane %v2376, %v2441
        %v2443 = vlaneseq
        %v2444 = vshrl.u32 %v2443, 7
        %v2445 = vsub.s32 0, %v2444
        %v2446 = vrot.slane %v2359, %v2445
        %v2447 = vlaneseq
        %v2448 = vshrl.u32 %v2447, 7
        %v2449 = vsub.s32 0, %v2448
        %v2450 = vrot.slane %v2373, %v2449
        %v2451 = vlaneseq
        %v2452 = vshrl.u32 %v2451, 7
        %v2453 = vsub.s32 0, %v2452
        %v2454 = vrot.slane %v2375, %v2453
        %v2455 = vlaneseq
        %v2456 = vshrl.u32 %v2455, 7
        %v2457 = vsub.s32 0, %v2456
        %v2458 = vrot.slane %v2377, %v2457
        %v2459 = vlaneseq
        %v2460 = vshrl.u32 %v2459, 7
        %v2461 = vsub.s32 0, %v2460
        %v2462 = vrot.slane %v2401, %v2461
        %v2463 = vlaneseq
        %v2464 = vshrl.u32 %v2463, 7
        %v2465 = vsub.s32 0, %v2464
        %v2466 = vrot.slane %v2415, %v2465
        %v2467 = vlaneseq
        %v2468 = vshrl.u32 %v2467, 7
        %v2469 = vsub.s32 0, %v2468
        %v2470 = vrot.slane %v2423, %v2469
        %v2471 = vlaneseq
        %v2472 = vshrl.u32 %v2471, 7
        %v2473 = vsub.s32 0, %v2472
        %v2474 = vrot.slane %v2425, %v2473
        %v2475 = vlaneseq
        %v2476 = vshrl.u32 %v2475, 7
        %v2477 = vsub.s32 0, %v2476
        %v2478 = vrot.slane %v2408, %v2477
        %v2479 = vlaneseq
        %v2480 = vshrl.u32 %v2479, 7
        %v2481 = vsub.s32 0, %v2480
        %v2482 = vrot.slane %v2422, %v2481
        %v2483 = vlaneseq
        %v2484 = vshrl.u32 %v2483, 7
        %v2485 = vsub.s32 0, %v2484
        %v2486 = vrot.slane %v2424, %v2485
        %v2487 = vlaneseq
        %v2488 = vshrl.u32 %v2487, 7
        %v2489 = vsub.s32 0, %v2488
        %v2490 = vrot.slane %v2426, %v2489
        %v2507 = vmul.f32 %v2430, %v2313
        %v2508 = vmul.f32 %v2430, %v2314
        %v2509 = vmul.f32 %v2434, %v2313
        %v2510 = vmul.f32 %v2434, %v2314
        %v2511 = vmul.f32 %v2438, %v2313
        %v2512 = vmul.f32 %v2438, %v2314
        %v2513 = vmul.f32 %v2442, %v2313
        %v2514 = vmul.f32 %v2442, %v2314
        %v2515 = vmul.f32 %v2446, %v2313
        %v2516 = vmul.f32 %v2446, %v2314
        %v2517 = vmul.f32 %v2450, %v2313
        %v2518 = vmul.f32 %v2450, %v2314
        %v2519 = vmul.f32 %v2454, %v2313
        %v2520 = vmul.f32 %v2454, %v2314
        %v2521 = vmul.f32 %v2458, %v2313
        %v2522 = vmul.f32 %v2458, %v2314
        %v2523 = vmul.f32 %v2462, %v2313
        %v2524 = vmul.f32 %v2462, %v2314
        %v2525 = vmul.f32 %v2466, %v2313
        %v2526 = vmul.f32 %v2466, %v2314
        %v2527 = vmul.f32 %v2470, %v2313
        %v2528 = vmul.f32 %v2470, %v2314
        %v2529 = vmul.f32 %v2474, %v2313
        %v2530 = vmul.f32 %v2474, %v2314
        %v2531 = vmul.f32 %v2478, %v2313
        %v2532 = vmul.f32 %v2478, %v2314
        %v2533 = vmul.f32 %v2482, %v2313
        %v2534 = vmul.f32 %v2482, %v2314
        %v2535 = vmul.f32 %v2486, %v2313
        %v2536 = vmul.f32 %v2486, %v2314
        %v2537 = vmul.f32 %v2490, %v2313
        %v2538 = vmul.f32 %v2490, %v2314
        %v2539 = vpack.c.bf16 %v2508, %v2507
        %v2540 = vpack.c.bf16 %v2510, %v2509
        %v2541 = vpack.c.bf16 %v2512, %v2511
        %v2542 = vpack.c.bf16 %v2514, %v2513
        %v2543 = vpack.c.bf16 %v2516, %v2515
        %v2544 = vpack.c.bf16 %v2518, %v2517
        %v2545 = vpack.c.bf16 %v2520, %v2519
        %v2546 = vpack.c.bf16 %v2522, %v2521
        %v2547 = vpack.c.bf16 %v2524, %v2523
        %v2548 = vpack.c.bf16 %v2526, %v2525
        %v2549 = vpack.c.bf16 %v2528, %v2527
        %v2550 = vpack.c.bf16 %v2530, %v2529
        %v2551 = vpack.c.bf16 %v2532, %v2531
        %v2552 = vpack.c.bf16 %v2534, %v2533
        %v2553 = vpack.c.bf16 %v2536, %v2535
        %v2554 = vpack.c.bf16 %v2538, %v2537
        %2555 = vmatprep.subr.bf16.mxu0 0
        %2556 = vmatpush1.bf16.msra.mxu0 %v2546
        %2557 = vmatprep.subr.bf16.mxu0 0
        %2558 = vmatpush1.bf16.msra.mxu0 %v2545
        %2559 = vmatprep.subr.bf16.mxu0 0
        %2560 = vmatpush1.bf16.msra.mxu0 %v2544
        %2561 = vmatprep.subr.bf16.mxu0 0
        %2562 = vmatpush1.bf16.msra.mxu0 %v2543
        %2563 = vmatprep.subr.bf16.mxu0 0
        %2564 = vmatpush1.bf16.msra.mxu0 %v2542
        %2565 = vmatprep.subr.bf16.mxu0 0
        %2566 = vmatpush1.bf16.msra.mxu0 %v2541
        %2567 = vmatprep.subr.bf16.mxu0 0
        %2568 = vmatpush1.bf16.msra.mxu0 %v2540
        %2569 = vmatprep.subr.bf16.mxu0 0
        %2570 = vmatpush1.bf16.msra.mxu0 %v2539
        %2571 = vmatprep.subr.bf16.mxu0 0
        %2572 = vmatpush2.bf16.msra.mxu0 %v2554
        %2573 = vmatprep.subr.bf16.mxu0 0
        %2574 = vmatpush2.bf16.msra.mxu0 %v2553
        %2575 = vmatprep.subr.bf16.mxu0 0
        %2576 = vmatpush2.bf16.msra.mxu0 %v2552
        %2577 = vmatprep.subr.bf16.mxu0 0
        %2578 = vmatpush2.bf16.msra.mxu0 %v2551
        %2579 = vmatprep.subr.bf16.mxu0 0
        %2580 = vmatpush2.bf16.msra.mxu0 %v2550
        %2581 = vmatprep.subr.bf16.mxu0 0
        %2582 = vmatpush2.bf16.msra.mxu0 %v2549
        %2583 = vmatprep.subr.bf16.mxu0 0
        %2584 = vmatpush2.bf16.msra.mxu0 %v2548
        %2585 = vmatprep.subr.bf16.mxu0 0
        %2586 = vmatpush2.bf16.msra.mxu0 %v2547
        %2587 = vmatprep.mubr.bf16.mxu0 %v1445
        %2588 = vmatmul.mubr.bf16.gmra.mxu0 %v1444
        %v2589 = vpop.f32.mrf.mxu0
        %v2590 = vadd.f32 0.0, %v2589
        %v2591 = vpop.f32.mrf.mxu0
        %v2592 = vpop.f32.mrf.mxu0
        %v2593 = vpop.f32.mrf.mxu0
        %2594 = vdwg.mxu0
        %2595 = vmatprep.subr.bf16.mxu0 0
        %2596 = vmatpush1.bf16.msra.mxu0 %v2546
        %2597 = vmatprep.subr.bf16.mxu0 0
        %2598 = vmatpush1.bf16.msra.mxu0 %v2545
        %2599 = vmatprep.subr.bf16.mxu0 0
        %2600 = vmatpush1.bf16.msra.mxu0 %v2544
        %2601 = vmatprep.subr.bf16.mxu0 0
        %2602 = vmatpush1.bf16.msra.mxu0 %v2543
        %2603 = vmatprep.subr.bf16.mxu0 0
        %2604 = vmatpush1.bf16.msra.mxu0 %v2542
        %2605 = vmatprep.subr.bf16.mxu0 0
        %2606 = vmatpush1.bf16.msra.mxu0 %v2541
        %2607 = vmatprep.subr.bf16.mxu0 0
        %2608 = vmatpush1.bf16.msra.mxu0 %v2540
        %2609 = vmatprep.subr.bf16.mxu0 0
        %2610 = vmatpush1.bf16.msra.mxu0 %v2539
        %2611 = vmatprep.subr.bf16.mxu0 0
        %2612 = vmatpush2.bf16.msra.mxu0 %v2554
        %2613 = vmatprep.subr.bf16.mxu0 0
        %2614 = vmatpush2.bf16.msra.mxu0 %v2553
        %2615 = vmatprep.subr.bf16.mxu0 0
        %2616 = vmatpush2.bf16.msra.mxu0 %v2552
        %2617 = vmatprep.subr.bf16.mxu0 0
        %2618 = vmatpush2.bf16.msra.mxu0 %v2551
        %2619 = vmatprep.subr.bf16.mxu0 0
        %2620 = vmatpush2.bf16.msra.mxu0 %v2550
        %2621 = vmatprep.subr.bf16.mxu0 0
        %2622 = vmatpush2.bf16.msra.mxu0 %v2549
        %2623 = vmatprep.subr.bf16.mxu0 0
        %2624 = vmatpush2.bf16.msra.mxu0 %v2548
        %2625 = vmatprep.subr.bf16.mxu0 0
        %2626 = vmatpush2.bf16.msra.mxu0 %v2547
        %2627 = vmatprep.mubr.bf16.mxu0 %v1453
        %2628 = vmatmul.mubr.bf16.gmra.mxu0 %v1452
        %v2629 = vpop.f32.mrf.mxu0
        %v2630 = vadd.f32 0.0, %v2629
        %v2631 = vpop.f32.mrf.mxu0
        %v2632 = vpop.f32.mrf.mxu0
        %v2633 = vadd.f32 0.0, %v2632
        %v2634 = vpop.f32.mrf.mxu0
        %2635 = vdwg.mxu0
        %2636 = vmatprep.subr.mxu0 0.0
        %2637 = vmatpush1.msra.mxu0 0.0
        %2638 = vmatprep.subr.mxu0 0.0
        %2639 = vmatpush1.msra.mxu0 0.0
        %2640 = vmatprep.subr.mxu0 0.0
        %2641 = vmatpush1.msra.mxu0 0.0
        %2642 = vmatprep.subr.mxu0 0.0
        %2643 = vmatpush1.msra.mxu0 0.0
        %2644 = vmatprep.subr.mxu0 0.0
        %2645 = vmatpush1.msra.mxu0 0.0
        %2646 = vmatprep.subr.mxu0 0.0
        %2647 = vmatpush1.msra.mxu0 0.0
        %2648 = vmatprep.subr.mxu0 0.0
        %2649 = vmatpush1.msra.mxu0 0.0
        %2650 = vmatprep.subr.mxu0 0.0
        %2651 = vmatpush1.msra.mxu0 0.0
        %2652 = vmatprep.subr.mxu0 0.0
        %2653 = vmatpush1.msra.mxu0 0.0
        %2654 = vmatprep.subr.mxu0 0.0
        %2655 = vmatpush1.msra.mxu0 0.0
        %2656 = vmatprep.subr.mxu0 0.0
        %2657 = vmatpush1.msra.mxu0 0.0
        %2658 = vmatprep.subr.mxu0 0.0
        %2659 = vmatpush1.msra.mxu0 0.0
        %2660 = vmatprep.subr.mxu0 0.0
        %2661 = vmatpush1.msra.mxu0 0.0
        %2662 = vmatprep.subr.mxu0 0.0
        %2663 = vmatpush1.msra.mxu0 0.0
        %2664 = vmatprep.subr.mxu0 0.0
        %2665 = vmatpush1.msra.mxu0 %v2633
        %2666 = vmatprep.subr.mxu0 0.0
        %2667 = vmatpush1.msra.mxu0 %v2630
        %2668 = vmatprep.subr.mxu0 0.0
        %2669 = vmatpush2.msra.mxu0 0.0
        %2670 = vmatprep.subr.mxu0 0.0
        %2671 = vmatpush2.msra.mxu0 0.0
        %2672 = vmatprep.subr.mxu0 0.0
        %2673 = vmatpush2.msra.mxu0 0.0
        %2674 = vmatprep.subr.mxu0 0.0
        %2675 = vmatpush2.msra.mxu0 0.0
        %2676 = vmatprep.subr.mxu0 0.0
        %2677 = vmatpush2.msra.mxu0 0.0
        %2678 = vmatprep.subr.mxu0 0.0
        %2679 = vmatpush2.msra.mxu0 0.0
        %2680 = vmatprep.subr.mxu0 0.0
        %2681 = vmatpush2.msra.mxu0 0.0
        %2682 = vmatprep.subr.mxu0 0.0
        %2683 = vmatpush2.msra.mxu0 0.0
        %2684 = vmatprep.subr.mxu0 0.0
        %2685 = vmatpush2.msra.mxu0 0.0
        %2686 = vmatprep.subr.mxu0 0.0
        %2687 = vmatpush2.msra.mxu0 0.0
        %2688 = vmatprep.subr.mxu0 0.0
        %2689 = vmatpush2.msra.mxu0 0.0
        %2690 = vmatprep.subr.mxu0 0.0
        %2691 = vmatpush2.msra.mxu0 0.0
        %2692 = vmatprep.subr.mxu0 0.0
        %2693 = vmatpush2.msra.mxu0 0.0
        %2694 = vmatprep.subr.mxu0 0.0
        %2695 = vmatpush2.msra.mxu0 0.0
        %2696 = vmatprep.subr.mxu0 0.0
        %2697 = vmatpush2.msra.mxu0 0.0
        %2698 = vmatprep.subr.mxu0 0.0
        %2699 = vmatpush2.msra.mxu0 0.0
        %2700 = vmatprep.mubr.f32.mxu0 0.0
        %2701 = vmatmul.mubr.f32.gmra.mxu0 %v2054
        %v2702 = vpop.f32.mrf.mxu0
        %v2703 = vadd.f32 0.0, %v2702
        %v2704 = vpop.f32.mrf.mxu0
        %2705 = vmatprep.mubr.f32.mxu0 0.0
        %2706 = vmatmul.mubr.f32.gmra.mxu0 %v2057
        %v2707 = vpop.f32.mrf.mxu0
        %v2708 = vadd.f32 0.0, %v2707
        %v2709 = vpop.f32.mrf.mxu0
        %2710 = vmatprep.mubr.f32.mxu0 0.0
        %2711 = vmatmul.mubr.f32.gmra.mxu0 %v2060
        %v2712 = vpop.f32.mrf.mxu0
        %v2713 = vadd.f32 0.0, %v2712
        %v2714 = vpop.f32.mrf.mxu0
        %2715 = vmatprep.mubr.f32.mxu0 0.0
        %2716 = vmatmul.mubr.f32.gmra.mxu0 %v2063
        %v2717 = vpop.f32.mrf.mxu0
        %v2718 = vadd.f32 0.0, %v2717
        %v2719 = vpop.f32.mrf.mxu0
        %2720 = vdwg.mxu0
        %2721 = vmatprep.subr.mxu0 0.0
        %2722 = vmatpush1.msra.mxu0 0.0
        %2723 = vmatprep.subr.mxu0 0.0
        %2724 = vmatpush1.msra.mxu0 0.0
        %2725 = vmatprep.subr.mxu0 0.0
        %2726 = vmatpush1.msra.mxu0 0.0
        %2727 = vmatprep.subr.mxu0 0.0
        %2728 = vmatpush1.msra.mxu0 0.0
        %2729 = vmatprep.subr.mxu0 0.0
        %2730 = vmatpush1.msra.mxu0 0.0
        %2731 = vmatprep.subr.mxu0 0.0
        %2732 = vmatpush1.msra.mxu0 0.0
        %2733 = vmatprep.subr.mxu0 0.0
        %2734 = vmatpush1.msra.mxu0 0.0
        %2735 = vmatprep.subr.mxu0 0.0
        %2736 = vmatpush1.msra.mxu0 0.0
        %2737 = vmatprep.subr.mxu0 0.0
        %2738 = vmatpush1.msra.mxu0 0.0
        %2739 = vmatprep.subr.mxu0 0.0
        %2740 = vmatpush1.msra.mxu0 0.0
        %2741 = vmatprep.subr.mxu0 0.0
        %2742 = vmatpush1.msra.mxu0 0.0
        %2743 = vmatprep.subr.mxu0 0.0
        %2744 = vmatpush1.msra.mxu0 0.0
        %2745 = vmatprep.subr.mxu0 0.0
        %2746 = vmatpush1.msra.mxu0 0.0
        %2747 = vmatprep.subr.mxu0 0.0
        %2748 = vmatpush1.msra.mxu0 0.0
        %2749 = vmatprep.subr.mxu0 0.0
        %2750 = vmatpush1.msra.mxu0 0.0
        %2751 = vmatprep.subr.mxu0 0.0
        %2752 = vmatpush1.msra.mxu0 %v2590
        %2753 = vmatprep.subr.mxu0 0.0
        %2754 = vmatpush2.msra.mxu0 0.0
        %2755 = vmatprep.subr.mxu0 0.0
        %2756 = vmatpush2.msra.mxu0 0.0
        %2757 = vmatprep.subr.mxu0 0.0
        %2758 = vmatpush2.msra.mxu0 0.0
        %2759 = vmatprep.subr.mxu0 0.0
        %2760 = vmatpush2.msra.mxu0 0.0
        %2761 = vmatprep.subr.mxu0 0.0
        %2762 = vmatpush2.msra.mxu0 0.0
        %2763 = vmatprep.subr.mxu0 0.0
        %2764 = vmatpush2.msra.mxu0 0.0
        %2765 = vmatprep.subr.mxu0 0.0
        %2766 = vmatpush2.msra.mxu0 0.0
        %2767 = vmatprep.subr.mxu0 0.0
        %2768 = vmatpush2.msra.mxu0 0.0
        %2769 = vmatprep.subr.mxu0 0.0
        %2770 = vmatpush2.msra.mxu0 0.0
        %2771 = vmatprep.subr.mxu0 0.0
        %2772 = vmatpush2.msra.mxu0 0.0
        %2773 = vmatprep.subr.mxu0 0.0
        %2774 = vmatpush2.msra.mxu0 0.0
        %2775 = vmatprep.subr.mxu0 0.0
        %2776 = vmatpush2.msra.mxu0 0.0
        %2777 = vmatprep.subr.mxu0 0.0
        %2778 = vmatpush2.msra.mxu0 0.0
        %2779 = vmatprep.subr.mxu0 0.0
        %2780 = vmatpush2.msra.mxu0 0.0
        %2781 = vmatprep.subr.mxu0 0.0
        %2782 = vmatpush2.msra.mxu0 0.0
        %2783 = vmatprep.subr.mxu0 0.0
        %2784 = vmatpush2.msra.mxu0 0.0
        %2785 = vmatprep.mubr.f32.mxu0 0.0
        %2786 = vmatmul.mubr.f32.gmra.mxu0 %v2151
        %v2787 = vpop.f32.mrf.mxu0
        %v2788 = vadd.f32 %v2703, %v2787
        %v2789 = vpop.f32.mrf.mxu0
        %2790 = vmatprep.mubr.f32.mxu0 0.0
        %2791 = vmatmul.mubr.f32.gmra.mxu0 %v2154
        %v2792 = vpop.f32.mrf.mxu0
        %v2793 = vadd.f32 %v2708, %v2792
        %v2794 = vpop.f32.mrf.mxu0
        %2795 = vmatprep.mubr.f32.mxu0 0.0
        %2796 = vmatmul.mubr.f32.gmra.mxu0 %v2157
        %v2797 = vpop.f32.mrf.mxu0
        %v2798 = vadd.f32 %v2713, %v2797
        %v2799 = vpop.f32.mrf.mxu0
        %2800 = vmatprep.mubr.f32.mxu0 0.0
        %2801 = vmatmul.mubr.f32.gmra.mxu0 %v2160
        %v2802 = vpop.f32.mrf.mxu0
        %v2803 = vadd.f32 %v2718, %v2802
        %v2804 = vpop.f32.mrf.mxu0
        %2805 = vdwg.mxu0
        %v2806 = vadd.f32 %v2788, %v1694
        %v2807 = vadd.f32 %v2793, %v1699
        %v2808 = vadd.f32 %v2798, %v1704
        %v2809 = vadd.f32 %v2803, %v1709
        %v2810 = vmax.f32 %v2806, 0.0
        %v2811 = vmax.f32 %v2807, 0.0
        %v2812 = vmax.f32 %v2808, 0.0
        %v2813 = vmax.f32 %v2809, 0.0
        %v2814 = vmul.f32 %v2262, %v2810
        %v2815 = vmul.f32 %v2267, %v2811
        %v2816 = vmul.f32 %v2272, %v2812
        %v2817 = vmul.f32 %v2277, %v2813
        %v2818 = vadd.f32 %v2814, %v2815
        %v2819 = vadd.f32 %v2818, %v2816
        %v2820 = vadd.f32 %v2819, %v2817
        %v2821 = vrot.slane %v2820, 4
        %v2822 = vadd.f32 %v2820, %v2821
        %v2823 = vrot.slane %v2822, 2
        %v2824 = vadd.f32 %v2822, %v2823
        %v2825 = vrot.slane %v2824, 1
        %v2826 = vadd.f32 %v2824, %v2825
        %v2827 = vadd.f32 %v2826, %v2301
        %v2828 = vlaneseq
        %v2829 = vshrl.u32 %v2828, 7
        %v2830 = vsub.s32 2, %v2829
        %v2831 = vrot.slane %v1577, %v2830
        %v2832 = vsub.f32 %v2831, %v1582
        %v2833 = vsub.f32 %v2831, %v1583
        %v2834 = vand.u32 2147483647, %v2832
        %v2835 = vand.u32 2147483647, %v2833
        %v2836 = vsub.f32 1.0, %v2834
        %v2837 = vsub.f32 1.0, %v2835
        %v2838 = vmax.f32 %v2836, 0.0
        %v2839 = vmax.f32 %v2837, 0.0
        %v2840 = vlaneseq
        %v2841 = vshrl.u32 %v2840, 7
        %v2842 = vsub.s32 2, %v2841
        %v2843 = vrot.slane %v1578, %v2842
        %v2844 = vsub.f32 %v2843, %v1582
        %v2845 = vsub.f32 %v2843, %v1583
        %v2846 = vand.u32 2147483647, %v2844
        %v2847 = vand.u32 2147483647, %v2845
        %v2848 = vsub.f32 1.0, %v2846
        %v2849 = vsub.f32 1.0, %v2847
        %v2850 = vmax.f32 %v2848, 0.0
        %v2851 = vmax.f32 %v2849, 0.0
        %v2854 = vcombine.high %v2850, %v2850
        %v2856 = vunpack.c.l.s4 1966171168
        %v2857 = vunpack.c.0.s8 %v2856
        %v2858 = vlaneseq
        %v2859 = vshrl.u32 %v2858, 7
        %v2860 = vsub.s32 %v2857, %v2859
        %v2861 = vrot.slane %v2850, %v2860
        %v2863 = vunpack.c.l.s4 1966171168
        %v2864 = vunpack.c.0.s8 %v2863
        %v2865 = vlaneseq
        %v2866 = vshrl.u32 %v2865, 7
        %v2867 = vsub.s32 %v2864, %v2866
        %v2868 = vrot.slane %v2854, %v2867
        %v2869 = vcombine.high %v2861, %v2861
        %v2870 = vcombine.high %v2868, %v2868
        %v2872 = vunpack.c.l.s4 1966171168
        %v2873 = vunpack.c.0.s8 %v2872
        %v2874 = vlaneseq
        %v2875 = vshrl.u32 %v2874, 7
        %v2876 = vsub.s32 %v2873, %v2875
        %v2877 = vrot.slane %v2861, %v2876
        %v2879 = vunpack.c.l.s4 1966171168
        %v2880 = vunpack.c.0.s8 %v2879
        %v2881 = vlaneseq
        %v2882 = vshrl.u32 %v2881, 7
        %v2883 = vsub.s32 %v2880, %v2882
        %v2884 = vrot.slane %v2868, %v2883
        %v2886 = vunpack.c.l.s4 1966171168
        %v2887 = vunpack.c.0.s8 %v2886
        %v2888 = vlaneseq
        %v2889 = vshrl.u32 %v2888, 7
        %v2890 = vsub.s32 %v2887, %v2889
        %v2891 = vrot.slane %v2869, %v2890
        %v2893 = vunpack.c.l.s4 1966171168
        %v2894 = vunpack.c.0.s8 %v2893
        %v2895 = vlaneseq
        %v2896 = vshrl.u32 %v2895, 7
        %v2897 = vsub.s32 %v2894, %v2896
        %v2898 = vrot.slane %v2870, %v2897
        %v2899 = vcombine.high %v2877, %v2877
        %v2900 = vcombine.high %v2884, %v2884
        %v2901 = vcombine.high %v2891, %v2891
        %v2902 = vcombine.high %v2898, %v2898
        %v2903 = vcombine.high %v2851, %v2851
        %v2905 = vunpack.c.l.s4 1966171168
        %v2906 = vunpack.c.0.s8 %v2905
        %v2907 = vlaneseq
        %v2908 = vshrl.u32 %v2907, 7
        %v2909 = vsub.s32 %v2906, %v2908
        %v2910 = vrot.slane %v2851, %v2909
        %v2912 = vunpack.c.l.s4 1966171168
        %v2913 = vunpack.c.0.s8 %v2912
        %v2914 = vlaneseq
        %v2915 = vshrl.u32 %v2914, 7
        %v2916 = vsub.s32 %v2913, %v2915
        %v2917 = vrot.slane %v2903, %v2916
        %v2918 = vcombine.high %v2910, %v2910
        %v2919 = vcombine.high %v2917, %v2917
        %v2921 = vunpack.c.l.s4 1966171168
        %v2922 = vunpack.c.0.s8 %v2921
        %v2923 = vlaneseq
        %v2924 = vshrl.u32 %v2923, 7
        %v2925 = vsub.s32 %v2922, %v2924
        %v2926 = vrot.slane %v2910, %v2925
        %v2928 = vunpack.c.l.s4 1966171168
        %v2929 = vunpack.c.0.s8 %v2928
        %v2930 = vlaneseq
        %v2931 = vshrl.u32 %v2930, 7
        %v2932 = vsub.s32 %v2929, %v2931
        %v2933 = vrot.slane %v2917, %v2932
        %v2935 = vunpack.c.l.s4 1966171168
        %v2936 = vunpack.c.0.s8 %v2935
        %v2937 = vlaneseq
        %v2938 = vshrl.u32 %v2937, 7
        %v2939 = vsub.s32 %v2936, %v2938
        %v2940 = vrot.slane %v2918, %v2939
        %v2942 = vunpack.c.l.s4 1966171168
        %v2943 = vunpack.c.0.s8 %v2942
        %v2944 = vlaneseq
        %v2945 = vshrl.u32 %v2944, 7
        %v2946 = vsub.s32 %v2943, %v2945
        %v2947 = vrot.slane %v2919, %v2946
        %v2948 = vcombine.high %v2926, %v2926
        %v2949 = vcombine.high %v2933, %v2933
        %v2950 = vcombine.high %v2940, %v2940
        %v2951 = vcombine.high %v2947, %v2947
        %v2952 = vlaneseq
        %v2953 = vshrl.u32 %v2952, 7
        %v2954 = vsub.s32 0, %v2953
        %v2955 = vrot.slane %v2877, %v2954
        %v2956 = vlaneseq
        %v2957 = vshrl.u32 %v2956, 7
        %v2958 = vsub.s32 0, %v2957
        %v2959 = vrot.slane %v2891, %v2958
        %v2960 = vlaneseq
        %v2961 = vshrl.u32 %v2960, 7
        %v2962 = vsub.s32 0, %v2961
        %v2963 = vrot.slane %v2899, %v2962
        %v2964 = vlaneseq
        %v2965 = vshrl.u32 %v2964, 7
        %v2966 = vsub.s32 0, %v2965
        %v2967 = vrot.slane %v2901, %v2966
        %v2968 = vlaneseq
        %v2969 = vshrl.u32 %v2968, 7
        %v2970 = vsub.s32 0, %v2969
        %v2971 = vrot.slane %v2884, %v2970
        %v2972 = vlaneseq
        %v2973 = vshrl.u32 %v2972, 7
        %v2974 = vsub.s32 0, %v2973
        %v2975 = vrot.slane %v2898, %v2974
        %v2976 = vlaneseq
        %v2977 = vshrl.u32 %v2976, 7
        %v2978 = vsub.s32 0, %v2977
        %v2979 = vrot.slane %v2900, %v2978
        %v2980 = vlaneseq
        %v2981 = vshrl.u32 %v2980, 7
        %v2982 = vsub.s32 0, %v2981
        %v2983 = vrot.slane %v2902, %v2982
        %v2984 = vlaneseq
        %v2985 = vshrl.u32 %v2984, 7
        %v2986 = vsub.s32 0, %v2985
        %v2987 = vrot.slane %v2926, %v2986
        %v2988 = vlaneseq
        %v2989 = vshrl.u32 %v2988, 7
        %v2990 = vsub.s32 0, %v2989
        %v2991 = vrot.slane %v2940, %v2990
        %v2992 = vlaneseq
        %v2993 = vshrl.u32 %v2992, 7
        %v2994 = vsub.s32 0, %v2993
        %v2995 = vrot.slane %v2948, %v2994
        %v2996 = vlaneseq
        %v2997 = vshrl.u32 %v2996, 7
        %v2998 = vsub.s32 0, %v2997
        %v2999 = vrot.slane %v2950, %v2998
        %v3000 = vlaneseq
        %v3001 = vshrl.u32 %v3000, 7
        %v3002 = vsub.s32 0, %v3001
        %v3003 = vrot.slane %v2933, %v3002
        %v3004 = vlaneseq
        %v3005 = vshrl.u32 %v3004, 7
        %v3006 = vsub.s32 0, %v3005
        %v3007 = vrot.slane %v2947, %v3006
        %v3008 = vlaneseq
        %v3009 = vshrl.u32 %v3008, 7
        %v3010 = vsub.s32 0, %v3009
        %v3011 = vrot.slane %v2949, %v3010
        %v3012 = vlaneseq
        %v3013 = vshrl.u32 %v3012, 7
        %v3014 = vsub.s32 0, %v3013
        %v3015 = vrot.slane %v2951, %v3014
        %v3032 = vmul.f32 %v2955, %v2838
        %v3033 = vmul.f32 %v2955, %v2839
        %v3034 = vmul.f32 %v2959, %v2838
        %v3035 = vmul.f32 %v2959, %v2839
        %v3036 = vmul.f32 %v2963, %v2838
        %v3037 = vmul.f32 %v2963, %v2839
        %v3038 = vmul.f32 %v2967, %v2838
        %v3039 = vmul.f32 %v2967, %v2839
        %v3040 = vmul.f32 %v2971, %v2838
        %v3041 = vmul.f32 %v2971, %v2839
        %v3042 = vmul.f32 %v2975, %v2838
        %v3043 = vmul.f32 %v2975, %v2839
        %v3044 = vmul.f32 %v2979, %v2838
        %v3045 = vmul.f32 %v2979, %v2839
        %v3046 = vmul.f32 %v2983, %v2838
        %v3047 = vmul.f32 %v2983, %v2839
        %v3048 = vmul.f32 %v2987, %v2838
        %v3049 = vmul.f32 %v2987, %v2839
        %v3050 = vmul.f32 %v2991, %v2838
        %v3051 = vmul.f32 %v2991, %v2839
        %v3052 = vmul.f32 %v2995, %v2838
        %v3053 = vmul.f32 %v2995, %v2839
        %v3054 = vmul.f32 %v2999, %v2838
        %v3055 = vmul.f32 %v2999, %v2839
        %v3056 = vmul.f32 %v3003, %v2838
        %v3057 = vmul.f32 %v3003, %v2839
        %v3058 = vmul.f32 %v3007, %v2838
        %v3059 = vmul.f32 %v3007, %v2839
        %v3060 = vmul.f32 %v3011, %v2838
        %v3061 = vmul.f32 %v3011, %v2839
        %v3062 = vmul.f32 %v3015, %v2838
        %v3063 = vmul.f32 %v3015, %v2839
        %v3064 = vpack.c.bf16 %v3033, %v3032
        %v3065 = vpack.c.bf16 %v3035, %v3034
        %v3066 = vpack.c.bf16 %v3037, %v3036
        %v3067 = vpack.c.bf16 %v3039, %v3038
        %v3068 = vpack.c.bf16 %v3041, %v3040
        %v3069 = vpack.c.bf16 %v3043, %v3042
        %v3070 = vpack.c.bf16 %v3045, %v3044
        %v3071 = vpack.c.bf16 %v3047, %v3046
        %v3072 = vpack.c.bf16 %v3049, %v3048
        %v3073 = vpack.c.bf16 %v3051, %v3050
        %v3074 = vpack.c.bf16 %v3053, %v3052
        %v3075 = vpack.c.bf16 %v3055, %v3054
        %v3076 = vpack.c.bf16 %v3057, %v3056
        %v3077 = vpack.c.bf16 %v3059, %v3058
        %v3078 = vpack.c.bf16 %v3061, %v3060
        %v3079 = vpack.c.bf16 %v3063, %v3062
        %3080 = vmatprep.subr.bf16.mxu0 0
        %3081 = vmatpush1.bf16.msra.mxu0 %v3071
        %3082 = vmatprep.subr.bf16.mxu0 0
        %3083 = vmatpush1.bf16.msra.mxu0 %v3070
        %3084 = vmatprep.subr.bf16.mxu0 0
        %3085 = vmatpush1.bf16.msra.mxu0 %v3069
        %3086 = vmatprep.subr.bf16.mxu0 0
        %3087 = vmatpush1.bf16.msra.mxu0 %v3068
        %3088 = vmatprep.subr.bf16.mxu0 0
        %3089 = vmatpush1.bf16.msra.mxu0 %v3067
        %3090 = vmatprep.subr.bf16.mxu0 0
        %3091 = vmatpush1.bf16.msra.mxu0 %v3066
        %3092 = vmatprep.subr.bf16.mxu0 0
        %3093 = vmatpush1.bf16.msra.mxu0 %v3065
        %3094 = vmatprep.subr.bf16.mxu0 0
        %3095 = vmatpush1.bf16.msra.mxu0 %v3064
        %3096 = vmatprep.subr.bf16.mxu0 0
        %3097 = vmatpush2.bf16.msra.mxu0 %v3079
        %3098 = vmatprep.subr.bf16.mxu0 0
        %3099 = vmatpush2.bf16.msra.mxu0 %v3078
        %3100 = vmatprep.subr.bf16.mxu0 0
        %3101 = vmatpush2.bf16.msra.mxu0 %v3077
        %3102 = vmatprep.subr.bf16.mxu0 0
        %3103 = vmatpush2.bf16.msra.mxu0 %v3076
        %3104 = vmatprep.subr.bf16.mxu0 0
        %3105 = vmatpush2.bf16.msra.mxu0 %v3075
        %3106 = vmatprep.subr.bf16.mxu0 0
        %3107 = vmatpush2.bf16.msra.mxu0 %v3074
        %3108 = vmatprep.subr.bf16.mxu0 0
        %3109 = vmatpush2.bf16.msra.mxu0 %v3073
        %3110 = vmatprep.subr.bf16.mxu0 0
        %3111 = vmatpush2.bf16.msra.mxu0 %v3072
        %3112 = vmatprep.mubr.bf16.mxu0 %v1447
        %3113 = vmatmul.mubr.bf16.gmra.mxu0 %v1446
        %v3114 = vpop.f32.mrf.mxu0
        %v3115 = vadd.f32 0.0, %v3114
        %v3116 = vpop.f32.mrf.mxu0
        %v3117 = vpop.f32.mrf.mxu0
        %v3118 = vpop.f32.mrf.mxu0
        %3119 = vdwg.mxu0
        %3120 = vmatprep.subr.bf16.mxu0 0
        %3121 = vmatpush1.bf16.msra.mxu0 %v3071
        %3122 = vmatprep.subr.bf16.mxu0 0
        %3123 = vmatpush1.bf16.msra.mxu0 %v3070
        %3124 = vmatprep.subr.bf16.mxu0 0
        %3125 = vmatpush1.bf16.msra.mxu0 %v3069
        %3126 = vmatprep.subr.bf16.mxu0 0
        %3127 = vmatpush1.bf16.msra.mxu0 %v3068
        %3128 = vmatprep.subr.bf16.mxu0 0
        %3129 = vmatpush1.bf16.msra.mxu0 %v3067
        %3130 = vmatprep.subr.bf16.mxu0 0
        %3131 = vmatpush1.bf16.msra.mxu0 %v3066
        %3132 = vmatprep.subr.bf16.mxu0 0
        %3133 = vmatpush1.bf16.msra.mxu0 %v3065
        %3134 = vmatprep.subr.bf16.mxu0 0
        %3135 = vmatpush1.bf16.msra.mxu0 %v3064
        %3136 = vmatprep.subr.bf16.mxu0 0
        %3137 = vmatpush2.bf16.msra.mxu0 %v3079
        %3138 = vmatprep.subr.bf16.mxu0 0
        %3139 = vmatpush2.bf16.msra.mxu0 %v3078
        %3140 = vmatprep.subr.bf16.mxu0 0
        %3141 = vmatpush2.bf16.msra.mxu0 %v3077
        %3142 = vmatprep.subr.bf16.mxu0 0
        %3143 = vmatpush2.bf16.msra.mxu0 %v3076
        %3144 = vmatprep.subr.bf16.mxu0 0
        %3145 = vmatpush2.bf16.msra.mxu0 %v3075
        %3146 = vmatprep.subr.bf16.mxu0 0
        %3147 = vmatpush2.bf16.msra.mxu0 %v3074
        %3148 = vmatprep.subr.bf16.mxu0 0
        %3149 = vmatpush2.bf16.msra.mxu0 %v3073
        %3150 = vmatprep.subr.bf16.mxu0 0
        %3151 = vmatpush2.bf16.msra.mxu0 %v3072
        %3152 = vmatprep.mubr.bf16.mxu0 %v1455
        %3153 = vmatmul.mubr.bf16.gmra.mxu0 %v1454
        %v3154 = vpop.f32.mrf.mxu0
        %v3155 = vadd.f32 0.0, %v3154
        %v3156 = vpop.f32.mrf.mxu0
        %v3157 = vpop.f32.mrf.mxu0
        %v3158 = vadd.f32 0.0, %v3157
        %v3159 = vpop.f32.mrf.mxu0
        %3160 = vdwg.mxu0
        %3161 = vmatprep.subr.mxu0 0.0
        %3162 = vmatpush1.msra.mxu0 0.0
        %3163 = vmatprep.subr.mxu0 0.0
        %3164 = vmatpush1.msra.mxu0 0.0
        %3165 = vmatprep.subr.mxu0 0.0
        %3166 = vmatpush1.msra.mxu0 0.0
        %3167 = vmatprep.subr.mxu0 0.0
        %3168 = vmatpush1.msra.mxu0 0.0
        %3169 = vmatprep.subr.mxu0 0.0
        %3170 = vmatpush1.msra.mxu0 0.0
        %3171 = vmatprep.subr.mxu0 0.0
        %3172 = vmatpush1.msra.mxu0 0.0
        %3173 = vmatprep.subr.mxu0 0.0
        %3174 = vmatpush1.msra.mxu0 0.0
        %3175 = vmatprep.subr.mxu0 0.0
        %3176 = vmatpush1.msra.mxu0 0.0
        %3177 = vmatprep.subr.mxu0 0.0
        %3178 = vmatpush1.msra.mxu0 0.0
        %3179 = vmatprep.subr.mxu0 0.0
        %3180 = vmatpush1.msra.mxu0 0.0
        %3181 = vmatprep.subr.mxu0 0.0
        %3182 = vmatpush1.msra.mxu0 0.0
        %3183 = vmatprep.subr.mxu0 0.0
        %3184 = vmatpush1.msra.mxu0 0.0
        %3185 = vmatprep.subr.mxu0 0.0
        %3186 = vmatpush1.msra.mxu0 0.0
        %3187 = vmatprep.subr.mxu0 0.0
        %3188 = vmatpush1.msra.mxu0 0.0
        %3189 = vmatprep.subr.mxu0 0.0
        %3190 = vmatpush1.msra.mxu0 %v3158
        %3191 = vmatprep.subr.mxu0 0.0
        %3192 = vmatpush1.msra.mxu0 %v3155
        %3193 = vmatprep.subr.mxu0 0.0
        %3194 = vmatpush2.msra.mxu0 0.0
        %3195 = vmatprep.subr.mxu0 0.0
        %3196 = vmatpush2.msra.mxu0 0.0
        %3197 = vmatprep.subr.mxu0 0.0
        %3198 = vmatpush2.msra.mxu0 0.0
        %3199 = vmatprep.subr.mxu0 0.0
        %3200 = vmatpush2.msra.mxu0 0.0
        %3201 = vmatprep.subr.mxu0 0.0
        %3202 = vmatpush2.msra.mxu0 0.0
        %3203 = vmatprep.subr.mxu0 0.0
        %3204 = vmatpush2.msra.mxu0 0.0
        %3205 = vmatprep.subr.mxu0 0.0
        %3206 = vmatpush2.msra.mxu0 0.0
        %3207 = vmatprep.subr.mxu0 0.0
        %3208 = vmatpush2.msra.mxu0 0.0
        %3209 = vmatprep.subr.mxu0 0.0
        %3210 = vmatpush2.msra.mxu0 0.0
        %3211 = vmatprep.subr.mxu0 0.0
        %3212 = vmatpush2.msra.mxu0 0.0
        %3213 = vmatprep.subr.mxu0 0.0
        %3214 = vmatpush2.msra.mxu0 0.0
        %3215 = vmatprep.subr.mxu0 0.0
        %3216 = vmatpush2.msra.mxu0 0.0
        %3217 = vmatprep.subr.mxu0 0.0
        %3218 = vmatpush2.msra.mxu0 0.0
        %3219 = vmatprep.subr.mxu0 0.0
        %3220 = vmatpush2.msra.mxu0 0.0
        %3221 = vmatprep.subr.mxu0 0.0
        %3222 = vmatpush2.msra.mxu0 0.0
        %3223 = vmatprep.subr.mxu0 0.0
        %3224 = vmatpush2.msra.mxu0 0.0
        %3225 = vmatprep.mubr.f32.mxu0 0.0
        %3226 = vmatmul.mubr.f32.gmra.mxu0 %v2054
        %v3227 = vpop.f32.mrf.mxu0
        %v3228 = vadd.f32 0.0, %v3227
        %v3229 = vpop.f32.mrf.mxu0
        %3230 = vmatprep.mubr.f32.mxu0 0.0
        %3231 = vmatmul.mubr.f32.gmra.mxu0 %v2057
        %v3232 = vpop.f32.mrf.mxu0
        %v3233 = vadd.f32 0.0, %v3232
        %v3234 = vpop.f32.mrf.mxu0
        %3235 = vmatprep.mubr.f32.mxu0 0.0
        %3236 = vmatmul.mubr.f32.gmra.mxu0 %v2060
        %v3237 = vpop.f32.mrf.mxu0
        %v3238 = vadd.f32 0.0, %v3237
        %v3239 = vpop.f32.mrf.mxu0
        %3240 = vmatprep.mubr.f32.mxu0 0.0
        %3241 = vmatmul.mubr.f32.gmra.mxu0 %v2063
        %v3242 = vpop.f32.mrf.mxu0
        %v3243 = vadd.f32 0.0, %v3242
        %v3244 = vpop.f32.mrf.mxu0
        %3245 = vdwg.mxu0
        %3246 = vmatprep.subr.mxu0 0.0
        %3247 = vmatpush1.msra.mxu0 0.0
        %3248 = vmatprep.subr.mxu0 0.0
        %3249 = vmatpush1.msra.mxu0 0.0
        %3250 = vmatprep.subr.mxu0 0.0
        %3251 = vmatpush1.msra.mxu0 0.0
        %3252 = vmatprep.subr.mxu0 0.0
        %3253 = vmatpush1.msra.mxu0 0.0
        %3254 = vmatprep.subr.mxu0 0.0
        %3255 = vmatpush1.msra.mxu0 0.0
        %3256 = vmatprep.subr.mxu0 0.0
        %3257 = vmatpush1.msra.mxu0 0.0
        %3258 = vmatprep.subr.mxu0 0.0
        %3259 = vmatpush1.msra.mxu0 0.0
        %3260 = vmatprep.subr.mxu0 0.0
        %3261 = vmatpush1.msra.mxu0 0.0
        %3262 = vmatprep.subr.mxu0 0.0
        %3263 = vmatpush1.msra.mxu0 0.0
        %3264 = vmatprep.subr.mxu0 0.0
        %3265 = vmatpush1.msra.mxu0 0.0
        %3266 = vmatprep.subr.mxu0 0.0
        %3267 = vmatpush1.msra.mxu0 0.0
        %3268 = vmatprep.subr.mxu0 0.0
        %3269 = vmatpush1.msra.mxu0 0.0
        %3270 = vmatprep.subr.mxu0 0.0
        %3271 = vmatpush1.msra.mxu0 0.0
        %3272 = vmatprep.subr.mxu0 0.0
        %3273 = vmatpush1.msra.mxu0 0.0
        %3274 = vmatprep.subr.mxu0 0.0
        %3275 = vmatpush1.msra.mxu0 0.0
        %3276 = vmatprep.subr.mxu0 0.0
        %3277 = vmatpush1.msra.mxu0 %v3115
        %3278 = vmatprep.subr.mxu0 0.0
        %3279 = vmatpush2.msra.mxu0 0.0
        %3280 = vmatprep.subr.mxu0 0.0
        %3281 = vmatpush2.msra.mxu0 0.0
        %3282 = vmatprep.subr.mxu0 0.0
        %3283 = vmatpush2.msra.mxu0 0.0
        %3284 = vmatprep.subr.mxu0 0.0
        %3285 = vmatpush2.msra.mxu0 0.0
        %3286 = vmatprep.subr.mxu0 0.0
        %3287 = vmatpush2.msra.mxu0 0.0
        %3288 = vmatprep.subr.mxu0 0.0
        %3289 = vmatpush2.msra.mxu0 0.0
        %3290 = vmatprep.subr.mxu0 0.0
        %3291 = vmatpush2.msra.mxu0 0.0
        %3292 = vmatprep.subr.mxu0 0.0
        %3293 = vmatpush2.msra.mxu0 0.0
        %3294 = vmatprep.subr.mxu0 0.0
        %3295 = vmatpush2.msra.mxu0 0.0
        %3296 = vmatprep.subr.mxu0 0.0
        %3297 = vmatpush2.msra.mxu0 0.0
        %3298 = vmatprep.subr.mxu0 0.0
        %3299 = vmatpush2.msra.mxu0 0.0
        %3300 = vmatprep.subr.mxu0 0.0
        %3301 = vmatpush2.msra.mxu0 0.0
        %3302 = vmatprep.subr.mxu0 0.0
        %3303 = vmatpush2.msra.mxu0 0.0
        %3304 = vmatprep.subr.mxu0 0.0
        %3305 = vmatpush2.msra.mxu0 0.0
        %3306 = vmatprep.subr.mxu0 0.0
        %3307 = vmatpush2.msra.mxu0 0.0
        %3308 = vmatprep.subr.mxu0 0.0
        %3309 = vmatpush2.msra.mxu0 0.0
        %3310 = vmatprep.mubr.f32.mxu0 0.0
        %3311 = vmatmul.mubr.f32.gmra.mxu0 %v2151
        %v3312 = vpop.f32.mrf.mxu0
        %v3313 = vadd.f32 %v3228, %v3312
        %v3314 = vpop.f32.mrf.mxu0
        %3315 = vmatprep.mubr.f32.mxu0 0.0
        %3316 = vmatmul.mubr.f32.gmra.mxu0 %v2154
        %v3317 = vpop.f32.mrf.mxu0
        %v3318 = vadd.f32 %v3233, %v3317
        %v3319 = vpop.f32.mrf.mxu0
        %3320 = vmatprep.mubr.f32.mxu0 0.0
        %3321 = vmatmul.mubr.f32.gmra.mxu0 %v2157
        %v3322 = vpop.f32.mrf.mxu0
        %v3323 = vadd.f32 %v3238, %v3322
        %v3324 = vpop.f32.mrf.mxu0
        %3325 = vmatprep.mubr.f32.mxu0 0.0
        %3326 = vmatmul.mubr.f32.gmra.mxu0 %v2160
        %v3327 = vpop.f32.mrf.mxu0
        %v3328 = vadd.f32 %v3243, %v3327
        %v3329 = vpop.f32.mrf.mxu0
        %3330 = vdwg.mxu0
        %v3331 = vadd.f32 %v3313, %v1694
        %v3332 = vadd.f32 %v3318, %v1699
        %v3333 = vadd.f32 %v3323, %v1704
        %v3334 = vadd.f32 %v3328, %v1709
        %v3335 = vmax.f32 %v3331, 0.0
        %v3336 = vmax.f32 %v3332, 0.0
        %v3337 = vmax.f32 %v3333, 0.0
        %v3338 = vmax.f32 %v3334, 0.0
        %v3339 = vmul.f32 %v2262, %v3335
        %v3340 = vmul.f32 %v2267, %v3336
        %v3341 = vmul.f32 %v2272, %v3337
        %v3342 = vmul.f32 %v2277, %v3338
        %v3343 = vadd.f32 %v3339, %v3340
        %v3344 = vadd.f32 %v3343, %v3341
        %v3345 = vadd.f32 %v3344, %v3342
        %v3346 = vrot.slane %v3345, 4
        %v3347 = vadd.f32 %v3345, %v3346
        %v3348 = vrot.slane %v3347, 2
        %v3349 = vadd.f32 %v3347, %v3348
        %v3350 = vrot.slane %v3349, 1
        %v3351 = vadd.f32 %v3349, %v3350
        %v3352 = vadd.f32 %v3351, %v2301
        %v3353 = vlaneseq
        %v3354 = vshrl.u32 %v3353, 7
        %v3355 = vsub.s32 3, %v3354
        %v3356 = vrot.slane %v1577, %v3355
        %v3357 = vsub.f32 %v3356, %v1582
        %v3358 = vsub.f32 %v3356, %v1583
        %v3359 = vand.u32 2147483647, %v3357
        %v3360 = vand.u32 2147483647, %v3358
        %v3361 = vsub.f32 1.0, %v3359
        %v3362 = vsub.f32 1.0, %v3360
        %v3363 = vmax.f32 %v3361, 0.0
        %v3364 = vmax.f32 %v3362, 0.0
        %v3365 = vlaneseq
        %v3366 = vshrl.u32 %v3365, 7
        %v3367 = vsub.s32 3, %v3366
        %v3368 = vrot.slane %v1578, %v3367
        %v3369 = vsub.f32 %v3368, %v1582
        %v3370 = vsub.f32 %v3368, %v1583
        %v3371 = vand.u32 2147483647, %v3369
        %v3372 = vand.u32 2147483647, %v3370
        %v3373 = vsub.f32 1.0, %v3371
        %v3374 = vsub.f32 1.0, %v3372
        %v3375 = vmax.f32 %v3373, 0.0
        %v3376 = vmax.f32 %v3374, 0.0
        %v3379 = vcombine.high %v3375, %v3375
        %v3381 = vunpack.c.l.s4 1966171168
        %v3382 = vunpack.c.0.s8 %v3381
        %v3383 = vlaneseq
        %v3384 = vshrl.u32 %v3383, 7
        %v3385 = vsub.s32 %v3382, %v3384
        %v3386 = vrot.slane %v3375, %v3385
        %v3388 = vunpack.c.l.s4 1966171168
        %v3389 = vunpack.c.0.s8 %v3388
        %v3390 = vlaneseq
        %v3391 = vshrl.u32 %v3390, 7
        %v3392 = vsub.s32 %v3389, %v3391
        %v3393 = vrot.slane %v3379, %v3392
        %v3394 = vcombine.high %v3386, %v3386
        %v3395 = vcombine.high %v3393, %v3393
        %v3397 = vunpack.c.l.s4 1966171168
        %v3398 = vunpack.c.0.s8 %v3397
        %v3399 = vlaneseq
        %v3400 = vshrl.u32 %v3399, 7
        %v3401 = vsub.s32 %v3398, %v3400
        %v3402 = vrot.slane %v3386, %v3401
        %v3404 = vunpack.c.l.s4 1966171168
        %v3405 = vunpack.c.0.s8 %v3404
        %v3406 = vlaneseq
        %v3407 = vshrl.u32 %v3406, 7
        %v3408 = vsub.s32 %v3405, %v3407
        %v3409 = vrot.slane %v3393, %v3408
        %v3411 = vunpack.c.l.s4 1966171168
        %v3412 = vunpack.c.0.s8 %v3411
        %v3413 = vlaneseq
        %v3414 = vshrl.u32 %v3413, 7
        %v3415 = vsub.s32 %v3412, %v3414
        %v3416 = vrot.slane %v3394, %v3415
        %v3418 = vunpack.c.l.s4 1966171168
        %v3419 = vunpack.c.0.s8 %v3418
        %v3420 = vlaneseq
        %v3421 = vshrl.u32 %v3420, 7
        %v3422 = vsub.s32 %v3419, %v3421
        %v3423 = vrot.slane %v3395, %v3422
        %v3424 = vcombine.high %v3402, %v3402
        %v3425 = vcombine.high %v3409, %v3409
        %v3426 = vcombine.high %v3416, %v3416
        %v3427 = vcombine.high %v3423, %v3423
        %v3428 = vcombine.high %v3376, %v3376
        %v3430 = vunpack.c.l.s4 1966171168
        %v3431 = vunpack.c.0.s8 %v3430
        %v3432 = vlaneseq
        %v3433 = vshrl.u32 %v3432, 7
        %v3434 = vsub.s32 %v3431, %v3433
        %v3435 = vrot.slane %v3376, %v3434
        %v3437 = vunpack.c.l.s4 1966171168
        %v3438 = vunpack.c.0.s8 %v3437
        %v3439 = vlaneseq
        %v3440 = vshrl.u32 %v3439, 7
        %v3441 = vsub.s32 %v3438, %v3440
        %v3442 = vrot.slane %v3428, %v3441
        %v3443 = vcombine.high %v3435, %v3435
        %v3444 = vcombine.high %v3442, %v3442
        %v3446 = vunpack.c.l.s4 1966171168
        %v3447 = vunpack.c.0.s8 %v3446
        %v3448 = vlaneseq
        %v3449 = vshrl.u32 %v3448, 7
        %v3450 = vsub.s32 %v3447, %v3449
        %v3451 = vrot.slane %v3435, %v3450
        %v3453 = vunpack.c.l.s4 1966171168
        %v3454 = vunpack.c.0.s8 %v3453
        %v3455 = vlaneseq
        %v3456 = vshrl.u32 %v3455, 7
        %v3457 = vsub.s32 %v3454, %v3456
        %v3458 = vrot.slane %v3442, %v3457
        %v3460 = vunpack.c.l.s4 1966171168
        %v3461 = vunpack.c.0.s8 %v3460
        %v3462 = vlaneseq
        %v3463 = vshrl.u32 %v3462, 7
        %v3464 = vsub.s32 %v3461, %v3463
        %v3465 = vrot.slane %v3443, %v3464
        %v3467 = vunpack.c.l.s4 1966171168
        %v3468 = vunpack.c.0.s8 %v3467
        %v3469 = vlaneseq
        %v3470 = vshrl.u32 %v3469, 7
        %v3471 = vsub.s32 %v3468, %v3470
        %v3472 = vrot.slane %v3444, %v3471
        %v3473 = vcombine.high %v3451, %v3451
        %v3474 = vcombine.high %v3458, %v3458
        %v3475 = vcombine.high %v3465, %v3465
        %v3476 = vcombine.high %v3472, %v3472
        %v3477 = vlaneseq
        %v3478 = vshrl.u32 %v3477, 7
        %v3479 = vsub.s32 0, %v3478
        %v3480 = vrot.slane %v3402, %v3479
        %v3481 = vlaneseq
        %v3482 = vshrl.u32 %v3481, 7
        %v3483 = vsub.s32 0, %v3482
        %v3484 = vrot.slane %v3416, %v3483
        %v3485 = vlaneseq
        %v3486 = vshrl.u32 %v3485, 7
        %v3487 = vsub.s32 0, %v3486
        %v3488 = vrot.slane %v3424, %v3487
        %v3489 = vlaneseq
        %v3490 = vshrl.u32 %v3489, 7
        %v3491 = vsub.s32 0, %v3490
        %v3492 = vrot.slane %v3426, %v3491
        %v3493 = vlaneseq
        %v3494 = vshrl.u32 %v3493, 7
        %v3495 = vsub.s32 0, %v3494
        %v3496 = vrot.slane %v3409, %v3495
        %v3497 = vlaneseq
        %v3498 = vshrl.u32 %v3497, 7
        %v3499 = vsub.s32 0, %v3498
        %v3500 = vrot.slane %v3423, %v3499
        %v3501 = vlaneseq
        %v3502 = vshrl.u32 %v3501, 7
        %v3503 = vsub.s32 0, %v3502
        %v3504 = vrot.slane %v3425, %v3503
        %v3505 = vlaneseq
        %v3506 = vshrl.u32 %v3505, 7
        %v3507 = vsub.s32 0, %v3506
        %v3508 = vrot.slane %v3427, %v3507
        %v3509 = vlaneseq
        %v3510 = vshrl.u32 %v3509, 7
        %v3511 = vsub.s32 0, %v3510
        %v3512 = vrot.slane %v3451, %v3511
        %v3513 = vlaneseq
        %v3514 = vshrl.u32 %v3513, 7
        %v3515 = vsub.s32 0, %v3514
        %v3516 = vrot.slane %v3465, %v3515
        %v3517 = vlaneseq
        %v3518 = vshrl.u32 %v3517, 7
        %v3519 = vsub.s32 0, %v3518
        %v3520 = vrot.slane %v3473, %v3519
        %v3521 = vlaneseq
        %v3522 = vshrl.u32 %v3521, 7
        %v3523 = vsub.s32 0, %v3522
        %v3524 = vrot.slane %v3475, %v3523
        %v3525 = vlaneseq
        %v3526 = vshrl.u32 %v3525, 7
        %v3527 = vsub.s32 0, %v3526
        %v3528 = vrot.slane %v3458, %v3527
        %v3529 = vlaneseq
        %v3530 = vshrl.u32 %v3529, 7
        %v3531 = vsub.s32 0, %v3530
        %v3532 = vrot.slane %v3472, %v3531
        %v3533 = vlaneseq
        %v3534 = vshrl.u32 %v3533, 7
        %v3535 = vsub.s32 0, %v3534
        %v3536 = vrot.slane %v3474, %v3535
        %v3537 = vlaneseq
        %v3538 = vshrl.u32 %v3537, 7
        %v3539 = vsub.s32 0, %v3538
        %v3540 = vrot.slane %v3476, %v3539
        %v3557 = vmul.f32 %v3480, %v3363
        %v3558 = vmul.f32 %v3480, %v3364
        %v3559 = vmul.f32 %v3484, %v3363
        %v3560 = vmul.f32 %v3484, %v3364
        %v3561 = vmul.f32 %v3488, %v3363
        %v3562 = vmul.f32 %v3488, %v3364
        %v3563 = vmul.f32 %v3492, %v3363
        %v3564 = vmul.f32 %v3492, %v3364
        %v3565 = vmul.f32 %v3496, %v3363
        %v3566 = vmul.f32 %v3496, %v3364
        %v3567 = vmul.f32 %v3500, %v3363
        %v3568 = vmul.f32 %v3500, %v3364
        %v3569 = vmul.f32 %v3504, %v3363
        %v3570 = vmul.f32 %v3504, %v3364
        %v3571 = vmul.f32 %v3508, %v3363
        %v3572 = vmul.f32 %v3508, %v3364
        %v3573 = vmul.f32 %v3512, %v3363
        %v3574 = vmul.f32 %v3512, %v3364
        %v3575 = vmul.f32 %v3516, %v3363
        %v3576 = vmul.f32 %v3516, %v3364
        %v3577 = vmul.f32 %v3520, %v3363
        %v3578 = vmul.f32 %v3520, %v3364
        %v3579 = vmul.f32 %v3524, %v3363
        %v3580 = vmul.f32 %v3524, %v3364
        %v3581 = vmul.f32 %v3528, %v3363
        %v3582 = vmul.f32 %v3528, %v3364
        %v3583 = vmul.f32 %v3532, %v3363
        %v3584 = vmul.f32 %v3532, %v3364
        %v3585 = vmul.f32 %v3536, %v3363
        %v3586 = vmul.f32 %v3536, %v3364
        %v3587 = vmul.f32 %v3540, %v3363
        %v3588 = vmul.f32 %v3540, %v3364
        %v3589 = vpack.c.bf16 %v3558, %v3557
        %v3590 = vpack.c.bf16 %v3560, %v3559
        %v3591 = vpack.c.bf16 %v3562, %v3561
        %v3592 = vpack.c.bf16 %v3564, %v3563
        %v3593 = vpack.c.bf16 %v3566, %v3565
        %v3594 = vpack.c.bf16 %v3568, %v3567
        %v3595 = vpack.c.bf16 %v3570, %v3569
        %v3596 = vpack.c.bf16 %v3572, %v3571
        %v3597 = vpack.c.bf16 %v3574, %v3573
        %v3598 = vpack.c.bf16 %v3576, %v3575
        %v3599 = vpack.c.bf16 %v3578, %v3577
        %v3600 = vpack.c.bf16 %v3580, %v3579
        %v3601 = vpack.c.bf16 %v3582, %v3581
        %v3602 = vpack.c.bf16 %v3584, %v3583
        %v3603 = vpack.c.bf16 %v3586, %v3585
        %v3604 = vpack.c.bf16 %v3588, %v3587
        %3605 = vmatprep.subr.bf16.mxu0 0
        %3606 = vmatpush1.bf16.msra.mxu0 %v3596
        %3607 = vmatprep.subr.bf16.mxu0 0
        %3608 = vmatpush1.bf16.msra.mxu0 %v3595
        %3609 = vmatprep.subr.bf16.mxu0 0
        %3610 = vmatpush1.bf16.msra.mxu0 %v3594
        %3611 = vmatprep.subr.bf16.mxu0 0
        %3612 = vmatpush1.bf16.msra.mxu0 %v3593
        %3613 = vmatprep.subr.bf16.mxu0 0
        %3614 = vmatpush1.bf16.msra.mxu0 %v3592
        %3615 = vmatprep.subr.bf16.mxu0 0
        %3616 = vmatpush1.bf16.msra.mxu0 %v3591
        %3617 = vmatprep.subr.bf16.mxu0 0
        %3618 = vmatpush1.bf16.msra.mxu0 %v3590
        %3619 = vmatprep.subr.bf16.mxu0 0
        %3620 = vmatpush1.bf16.msra.mxu0 %v3589
        %3621 = vmatprep.subr.bf16.mxu0 0
        %3622 = vmatpush2.bf16.msra.mxu0 %v3604
        %3623 = vmatprep.subr.bf16.mxu0 0
        %3624 = vmatpush2.bf16.msra.mxu0 %v3603
        %3625 = vmatprep.subr.bf16.mxu0 0
        %3626 = vmatpush2.bf16.msra.mxu0 %v3602
        %3627 = vmatprep.subr.bf16.mxu0 0
        %3628 = vmatpush2.bf16.msra.mxu0 %v3601
        %3629 = vmatprep.subr.bf16.mxu0 0
        %3630 = vmatpush2.bf16.msra.mxu0 %v3600
        %3631 = vmatprep.subr.bf16.mxu0 0
        %3632 = vmatpush2.bf16.msra.mxu0 %v3599
        %3633 = vmatprep.subr.bf16.mxu0 0
        %3634 = vmatpush2.bf16.msra.mxu0 %v3598
        %3635 = vmatprep.subr.bf16.mxu0 0
        %3636 = vmatpush2.bf16.msra.mxu0 %v3597
        %3637 = vmatprep.mubr.bf16.mxu0 %v1449
        %3638 = vmatmul.mubr.bf16.gmra.mxu0 %v1448
        %v3639 = vpop.f32.mrf.mxu0
        %v3640 = vadd.f32 0.0, %v3639
        %v3641 = vpop.f32.mrf.mxu0
        %v3642 = vpop.f32.mrf.mxu0
        %v3643 = vpop.f32.mrf.mxu0
        %3644 = vdwg.mxu0
        %3645 = vmatprep.subr.bf16.mxu0 0
        %3646 = vmatpush1.bf16.msra.mxu0 %v3596
        %3647 = vmatprep.subr.bf16.mxu0 0
        %3648 = vmatpush1.bf16.msra.mxu0 %v3595
        %3649 = vmatprep.subr.bf16.mxu0 0
        %3650 = vmatpush1.bf16.msra.mxu0 %v3594
        %3651 = vmatprep.subr.bf16.mxu0 0
        %3652 = vmatpush1.bf16.msra.mxu0 %v3593
        %3653 = vmatprep.subr.bf16.mxu0 0
        %3654 = vmatpush1.bf16.msra.mxu0 %v3592
        %3655 = vmatprep.subr.bf16.mxu0 0
        %3656 = vmatpush1.bf16.msra.mxu0 %v3591
        %3657 = vmatprep.subr.bf16.mxu0 0
        %3658 = vmatpush1.bf16.msra.mxu0 %v3590
        %3659 = vmatprep.subr.bf16.mxu0 0
        %3660 = vmatpush1.bf16.msra.mxu0 %v3589
        %3661 = vmatprep.subr.bf16.mxu0 0
        %3662 = vmatpush2.bf16.msra.mxu0 %v3604
        %3663 = vmatprep.subr.bf16.mxu0 0
        %3664 = vmatpush2.bf16.msra.mxu0 %v3603
        %3665 = vmatprep.subr.bf16.mxu0 0
        %3666 = vmatpush2.bf16.msra.mxu0 %v3602
        %3667 = vmatprep.subr.bf16.mxu0 0
        %3668 = vmatpush2.bf16.msra.mxu0 %v3601
        %3669 = vmatprep.subr.bf16.mxu0 0
        %3670 = vmatpush2.bf16.msra.mxu0 %v3600
        %3671 = vmatprep.subr.bf16.mxu0 0
        %3672 = vmatpush2.bf16.msra.mxu0 %v3599
        %3673 = vmatprep.subr.bf16.mxu0 0
        %3674 = vmatpush2.bf16.msra.mxu0 %v3598
        %3675 = vmatprep.subr.bf16.mxu0 0
        %3676 = vmatpush2.bf16.msra.mxu0 %v3597
        %3677 = vmatprep.mubr.bf16.mxu0 %v1457
        %3678 = vmatmul.mubr.bf16.gmra.mxu0 %v1456
        %v3679 = vpop.f32.mrf.mxu0
        %v3680 = vadd.f32 0.0, %v3679
        %v3681 = vpop.f32.mrf.mxu0
        %v3682 = vpop.f32.mrf.mxu0
        %v3683 = vadd.f32 0.0, %v3682
        %v3684 = vpop.f32.mrf.mxu0
        %3685 = vdwg.mxu0
        %3686 = vmatprep.subr.mxu0 0.0
        %3687 = vmatpush1.msra.mxu0 0.0
        %3688 = vmatprep.subr.mxu0 0.0
        %3689 = vmatpush1.msra.mxu0 0.0
        %3690 = vmatprep.subr.mxu0 0.0
        %3691 = vmatpush1.msra.mxu0 0.0
        %3692 = vmatprep.subr.mxu0 0.0
        %3693 = vmatpush1.msra.mxu0 0.0
        %3694 = vmatprep.subr.mxu0 0.0
        %3695 = vmatpush1.msra.mxu0 0.0
        %3696 = vmatprep.subr.mxu0 0.0
        %3697 = vmatpush1.msra.mxu0 0.0
        %3698 = vmatprep.subr.mxu0 0.0
        %3699 = vmatpush1.msra.mxu0 0.0
        %3700 = vmatprep.subr.mxu0 0.0
        %3701 = vmatpush1.msra.mxu0 0.0
        %3702 = vmatprep.subr.mxu0 0.0
        %3703 = vmatpush1.msra.mxu0 0.0
        %3704 = vmatprep.subr.mxu0 0.0
        %3705 = vmatpush1.msra.mxu0 0.0
        %3706 = vmatprep.subr.mxu0 0.0
        %3707 = vmatpush1.msra.mxu0 0.0
        %3708 = vmatprep.subr.mxu0 0.0
        %3709 = vmatpush1.msra.mxu0 0.0
        %3710 = vmatprep.subr.mxu0 0.0
        %3711 = vmatpush1.msra.mxu0 0.0
        %3712 = vmatprep.subr.mxu0 0.0
        %3713 = vmatpush1.msra.mxu0 0.0
        %3714 = vmatprep.subr.mxu0 0.0
        %3715 = vmatpush1.msra.mxu0 %v3683
        %3716 = vmatprep.subr.mxu0 0.0
        %3717 = vmatpush1.msra.mxu0 %v3680
        %3718 = vmatprep.subr.mxu0 0.0
        %3719 = vmatpush2.msra.mxu0 0.0
        %3720 = vmatprep.subr.mxu0 0.0
        %3721 = vmatpush2.msra.mxu0 0.0
        %3722 = vmatprep.subr.mxu0 0.0
        %3723 = vmatpush2.msra.mxu0 0.0
        %3724 = vmatprep.subr.mxu0 0.0
        %3725 = vmatpush2.msra.mxu0 0.0
        %3726 = vmatprep.subr.mxu0 0.0
        %3727 = vmatpush2.msra.mxu0 0.0
        %3728 = vmatprep.subr.mxu0 0.0
        %3729 = vmatpush2.msra.mxu0 0.0
        %3730 = vmatprep.subr.mxu0 0.0
        %3731 = vmatpush2.msra.mxu0 0.0
        %3732 = vmatprep.subr.mxu0 0.0
        %3733 = vmatpush2.msra.mxu0 0.0
        %3734 = vmatprep.subr.mxu0 0.0
        %3735 = vmatpush2.msra.mxu0 0.0
        %3736 = vmatprep.subr.mxu0 0.0
        %3737 = vmatpush2.msra.mxu0 0.0
        %3738 = vmatprep.subr.mxu0 0.0
        %3739 = vmatpush2.msra.mxu0 0.0
        %3740 = vmatprep.subr.mxu0 0.0
        %3741 = vmatpush2.msra.mxu0 0.0
        %3742 = vmatprep.subr.mxu0 0.0
        %3743 = vmatpush2.msra.mxu0 0.0
        %3744 = vmatprep.subr.mxu0 0.0
        %3745 = vmatpush2.msra.mxu0 0.0
        %3746 = vmatprep.subr.mxu0 0.0
        %3747 = vmatpush2.msra.mxu0 0.0
        %3748 = vmatprep.subr.mxu0 0.0
        %3749 = vmatpush2.msra.mxu0 0.0
        %3750 = vmatprep.mubr.f32.mxu0 0.0
        %3751 = vmatmul.mubr.f32.gmra.mxu0 %v2054
        %v3752 = vpop.f32.mrf.mxu0
        %v3753 = vadd.f32 0.0, %v3752
        %v3754 = vpop.f32.mrf.mxu0
        %3755 = vmatprep.mubr.f32.mxu0 0.0
        %3756 = vmatmul.mubr.f32.gmra.mxu0 %v2057
        %v3757 = vpop.f32.mrf.mxu0
        %v3758 = vadd.f32 0.0, %v3757
        %v3759 = vpop.f32.mrf.mxu0
        %3760 = vmatprep.mubr.f32.mxu0 0.0
        %3761 = vmatmul.mubr.f32.gmra.mxu0 %v2060
        %v3762 = vpop.f32.mrf.mxu0
        %v3763 = vadd.f32 0.0, %v3762
        %v3764 = vpop.f32.mrf.mxu0
        %3765 = vmatprep.mubr.f32.mxu0 0.0
        %3766 = vmatmul.mubr.f32.gmra.mxu0 %v2063
        %v3767 = vpop.f32.mrf.mxu0
        %v3768 = vadd.f32 0.0, %v3767
        %v3769 = vpop.f32.mrf.mxu0
        %3770 = vdwg.mxu0
        %3771 = vmatprep.subr.mxu0 0.0
        %3772 = vmatpush1.msra.mxu0 0.0
        %3773 = vmatprep.subr.mxu0 0.0
        %3774 = vmatpush1.msra.mxu0 0.0
        %3775 = vmatprep.subr.mxu0 0.0
        %3776 = vmatpush1.msra.mxu0 0.0
        %3777 = vmatprep.subr.mxu0 0.0
        %3778 = vmatpush1.msra.mxu0 0.0
        %3779 = vmatprep.subr.mxu0 0.0
        %3780 = vmatpush1.msra.mxu0 0.0
        %3781 = vmatprep.subr.mxu0 0.0
        %3782 = vmatpush1.msra.mxu0 0.0
        %3783 = vmatprep.subr.mxu0 0.0
        %3784 = vmatpush1.msra.mxu0 0.0
        %3785 = vmatprep.subr.mxu0 0.0
        %3786 = vmatpush1.msra.mxu0 0.0
        %3787 = vmatprep.subr.mxu0 0.0
        %3788 = vmatpush1.msra.mxu0 0.0
        %3789 = vmatprep.subr.mxu0 0.0
        %3790 = vmatpush1.msra.mxu0 0.0
        %3791 = vmatprep.subr.mxu0 0.0
        %3792 = vmatpush1.msra.mxu0 0.0
        %3793 = vmatprep.subr.mxu0 0.0
        %3794 = vmatpush1.msra.mxu0 0.0
        %3795 = vmatprep.subr.mxu0 0.0
        %3796 = vmatpush1.msra.mxu0 0.0
        %3797 = vmatprep.subr.mxu0 0.0
        %3798 = vmatpush1.msra.mxu0 0.0
        %3799 = vmatprep.subr.mxu0 0.0
        %3800 = vmatpush1.msra.mxu0 0.0
        %3801 = vmatprep.subr.mxu0 0.0
        %3802 = vmatpush1.msra.mxu0 %v3640
        %3803 = vmatprep.subr.mxu0 0.0
        %3804 = vmatpush2.msra.mxu0 0.0
        %3805 = vmatprep.subr.mxu0 0.0
        %3806 = vmatpush2.msra.mxu0 0.0
        %3807 = vmatprep.subr.mxu0 0.0
        %3808 = vmatpush2.msra.mxu0 0.0
        %3809 = vmatprep.subr.mxu0 0.0
        %3810 = vmatpush2.msra.mxu0 0.0
        %3811 = vmatprep.subr.mxu0 0.0
        %3812 = vmatpush2.msra.mxu0 0.0
        %3813 = vmatprep.subr.mxu0 0.0
        %3814 = vmatpush2.msra.mxu0 0.0
        %3815 = vmatprep.subr.mxu0 0.0
        %3816 = vmatpush2.msra.mxu0 0.0
        %3817 = vmatprep.subr.mxu0 0.0
        %3818 = vmatpush2.msra.mxu0 0.0
        %3819 = vmatprep.subr.mxu0 0.0
        %3820 = vmatpush2.msra.mxu0 0.0
        %3821 = vmatprep.subr.mxu0 0.0
        %3822 = vmatpush2.msra.mxu0 0.0
        %3823 = vmatprep.subr.mxu0 0.0
        %3824 = vmatpush2.msra.mxu0 0.0
        %3825 = vmatprep.subr.mxu0 0.0
        %3826 = vmatpush2.msra.mxu0 0.0
        %3827 = vmatprep.subr.mxu0 0.0
        %3828 = vmatpush2.msra.mxu0 0.0
        %3829 = vmatprep.subr.mxu0 0.0
        %3830 = vmatpush2.msra.mxu0 0.0
        %3831 = vmatprep.subr.mxu0 0.0
        %3832 = vmatpush2.msra.mxu0 0.0
        %3833 = vmatprep.subr.mxu0 0.0
        %3834 = vmatpush2.msra.mxu0 0.0
        %3835 = vmatprep.mubr.f32.mxu0 0.0
        %3836 = vmatmul.mubr.f32.gmra.mxu0 %v2151
        %v3837 = vpop.f32.mrf.mxu0
        %v3838 = vadd.f32 %v3753, %v3837
        %v3839 = vpop.f32.mrf.mxu0
        %3840 = vmatprep.mubr.f32.mxu0 0.0
        %3841 = vmatmul.mubr.f32.gmra.mxu0 %v2154
        %v3842 = vpop.f32.mrf.mxu0
        %v3843 = vadd.f32 %v3758, %v3842
        %v3844 = vpop.f32.mrf.mxu0
        %3845 = vmatprep.mubr.f32.mxu0 0.0
        %3846 = vmatmul.mubr.f32.gmra.mxu0 %v2157
        %v3847 = vpop.f32.mrf.mxu0
        %v3848 = vadd.f32 %v3763, %v3847
        %v3849 = vpop.f32.mrf.mxu0
        %3850 = vmatprep.mubr.f32.mxu0 0.0
        %3851 = vmatmul.mubr.f32.gmra.mxu0 %v2160
        %v3852 = vpop.f32.mrf.mxu0
        %v3853 = vadd.f32 %v3768, %v3852
        %v3854 = vpop.f32.mrf.mxu0
        %3855 = vdwg.mxu0
        %v3856 = vadd.f32 %v3838, %v1694
        %v3857 = vadd.f32 %v3843, %v1699
        %v3858 = vadd.f32 %v3848, %v1704
        %v3859 = vadd.f32 %v3853, %v1709
        %v3860 = vmax.f32 %v3856, 0.0
        %v3861 = vmax.f32 %v3857, 0.0
        %v3862 = vmax.f32 %v3858, 0.0
        %v3863 = vmax.f32 %v3859, 0.0
        %v3864 = vmul.f32 %v2262, %v3860
        %v3865 = vmul.f32 %v2267, %v3861
        %v3866 = vmul.f32 %v2272, %v3862
        %v3867 = vmul.f32 %v2277, %v3863
        %v3868 = vadd.f32 %v3864, %v3865
        %v3869 = vadd.f32 %v3868, %v3866
        %v3870 = vadd.f32 %v3869, %v3867
        %v3871 = vrot.slane %v3870, 4
        %v3872 = vadd.f32 %v3870, %v3871
        %v3873 = vrot.slane %v3872, 2
        %v3874 = vadd.f32 %v3872, %v3873
        %v3875 = vrot.slane %v3874, 1
        %v3876 = vadd.f32 %v3874, %v3875
        %v3877 = vadd.f32 %v3876, %v2301
        %v3878 = vmax.f32 %v2302, %v2827
        %v3879 = vmax.f32 %v3878, %v3352
        %v3880 = vmax.f32 %v3879, %v3877
        %v3881 = vsub.f32 %v2302, %v3880
        %v3882 = vmul.f32 %v3881, 1.442695
        %v3883 = vpow.pop %v3882
        %v3884 = vsub.f32 %v2827, %v3880
        %v3885 = vmul.f32 %v3884, 1.442695
        %v3886 = vpow.pop %v3885
        %v3887 = vsub.f32 %v3352, %v3880
        %v3888 = vmul.f32 %v3887, 1.442695
        %v3889 = vpow.pop %v3888
        %v3890 = vsub.f32 %v3877, %v3880
        %v3891 = vmul.f32 %v3890, 1.442695
        %v3892 = vpow.pop %v3891
        %v3893 = vadd.f32 %v3883, %v3886
        %v3894 = vadd.f32 %v3893, %v3889
        %v3895 = vadd.f32 %v3894, %v3892
        %v3896 = vrcp.pop %v3895
        %v3897 = vmul.f32 1.0, %v3896
        %v3898 = vmul.f32 %v3883, %v3897
        %v3899 = vmul.f32 %v1999, %v3898
        %v3900 = vmul.f32 %v3886, %v3897
        %v3901 = vmul.f32 %v2590, %v3900
        %v3902 = vadd.f32 %v3899, %v3901
        %v3903 = vmul.f32 %v3889, %v3897
        %v3904 = vmul.f32 %v3115, %v3903
        %v3905 = vadd.f32 %v3902, %v3904
        %v3906 = vmul.f32 %v3892, %v3897
        %v3907 = vmul.f32 %v3640, %v3906
        %v3908 = vadd.f32 %v3905, %v3907
        %3909 = vst [vmem:[%s786] sm:$0x7] %v3908
        %v3910 = vld [vmem:[%s16] sm:$0xff]
        %v3911 = vld [vmem:[%s16 + $0x8] sm:$0xff]
        %v3912 = vld [vmem:[%s16 + $0x10] sm:$0xff]
        %v3913 = vld [vmem:[%s16 + $0x18] sm:$0xff]
        %v3914 = vld [vmem:[%s17] sm:$0xff]
        %v3915 = vld [vmem:[%s17 + $0x8] sm:$0xff]
        %v3916 = vld [vmem:[%s17 + $0x10] sm:$0xff]
        %v3917 = vld [vmem:[%s17 + $0x18] sm:$0xff]
        %3919 = vset.pattern.permute.xlu0 0
        %3920 = vperm.xlu0 %3919, %v3914
        %v3921 = vpop.permute.xlu0 %3920
        %3924 = vset.pattern.permute.xlu0 0
        %3925 = vperm.xlu0 %3924, %v3915
        %v3926 = vpop.permute.xlu0 %3925
        %3929 = vset.pattern.permute.xlu0 0
        %3930 = vperm.xlu0 %3929, %v3916
        %v3931 = vpop.permute.xlu0 %3930
        %3934 = vset.pattern.permute.xlu0 0
        %3935 = vperm.xlu0 %3934, %v3917
        %v3936 = vpop.permute.xlu0 %3935
        %v3939 = vsel %vm1614, %v3910, 0
        %v3942 = vsel %vm1614, %v3911, 0
        %v3945 = vsel %vm1614, %v3912, 0
        %v3948 = vsel %vm1614, %v3913, 0
        %3950 = vmatprep.subr.mxu0 0.0
        %3951 = vmatpush1.msra.mxu0 0.0
        %3952 = vmatprep.subr.mxu0 0.0
        %3953 = vmatpush1.msra.mxu0 0.0
        %3954 = vmatprep.subr.mxu0 0.0
        %3955 = vmatpush1.msra.mxu0 0.0
        %3956 = vmatprep.subr.mxu0 0.0
        %3957 = vmatpush1.msra.mxu0 0.0
        %3958 = vmatprep.subr.mxu0 0.0
        %3959 = vmatpush1.msra.mxu0 0.0
        %3960 = vmatprep.subr.mxu0 0.0
        %3961 = vmatpush1.msra.mxu0 0.0
        %3962 = vmatprep.subr.mxu0 0.0
        %3963 = vmatpush1.msra.mxu0 0.0
        %3964 = vmatprep.subr.mxu0 0.0
        %3965 = vmatpush1.msra.mxu0 0.0
        %3966 = vmatprep.subr.mxu0 0.0
        %3967 = vmatpush1.msra.mxu0 0.0
        %3968 = vmatprep.subr.mxu0 0.0
        %3969 = vmatpush1.msra.mxu0 0.0
        %3970 = vmatprep.subr.mxu0 0.0
        %3971 = vmatpush1.msra.mxu0 0.0
        %3972 = vmatprep.subr.mxu0 0.0
        %3973 = vmatpush1.msra.mxu0 0.0
        %3974 = vmatprep.subr.mxu0 0.0
        %3975 = vmatpush1.msra.mxu0 0.0
        %3976 = vmatprep.subr.mxu0 0.0
        %3977 = vmatpush1.msra.mxu0 0.0
        %3978 = vmatprep.subr.mxu0 0.0
        %3979 = vmatpush1.msra.mxu0 %v1585
        %3980 = vmatprep.subr.mxu0 0.0
        %3981 = vmatpush1.msra.mxu0 %v1584
        %3982 = vmatprep.subr.mxu0 0.0
        %3983 = vmatpush2.msra.mxu0 0.0
        %3984 = vmatprep.subr.mxu0 0.0
        %3985 = vmatpush2.msra.mxu0 0.0
        %3986 = vmatprep.subr.mxu0 0.0
        %3987 = vmatpush2.msra.mxu0 0.0
        %3988 = vmatprep.subr.mxu0 0.0
        %3989 = vmatpush2.msra.mxu0 0.0
        %3990 = vmatprep.subr.mxu0 0.0
        %3991 = vmatpush2.msra.mxu0 0.0
        %3992 = vmatprep.subr.mxu0 0.0
        %3993 = vmatpush2.msra.mxu0 0.0
        %3994 = vmatprep.subr.mxu0 0.0
        %3995 = vmatpush2.msra.mxu0 0.0
        %3996 = vmatprep.subr.mxu0 0.0
        %3997 = vmatpush2.msra.mxu0 0.0
        %3998 = vmatprep.subr.mxu0 0.0
        %3999 = vmatpush2.msra.mxu0 0.0
        %4000 = vmatprep.subr.mxu0 0.0
        %4001 = vmatpush2.msra.mxu0 0.0
        %4002 = vmatprep.subr.mxu0 0.0
        %4003 = vmatpush2.msra.mxu0 0.0
        %4004 = vmatprep.subr.mxu0 0.0
        %4005 = vmatpush2.msra.mxu0 0.0
        %4006 = vmatprep.subr.mxu0 0.0
        %4007 = vmatpush2.msra.mxu0 0.0
        %4008 = vmatprep.subr.mxu0 0.0
        %4009 = vmatpush2.msra.mxu0 0.0
        %4010 = vmatprep.subr.mxu0 0.0
        %4011 = vmatpush2.msra.mxu0 0.0
        %4012 = vmatprep.subr.mxu0 0.0
        %4013 = vmatpush2.msra.mxu0 0.0
        %4014 = vmatprep.mubr.f32.mxu0 0.0
        %4015 = vmatmul.mubr.f32.gmra.mxu0 %v3939
        %v4016 = vpop.f32.mrf.mxu0
        %v4017 = vadd.f32 %v3921, %v4016
        %v4018 = vpop.f32.mrf.mxu0
        %4019 = vmatprep.mubr.f32.mxu0 0.0
        %4020 = vmatmul.mubr.f32.gmra.mxu0 %v3942
        %v4021 = vpop.f32.mrf.mxu0
        %v4022 = vadd.f32 %v3926, %v4021
        %v4023 = vpop.f32.mrf.mxu0
        %4024 = vmatprep.mubr.f32.mxu0 0.0
        %4025 = vmatmul.mubr.f32.gmra.mxu0 %v3945
        %v4026 = vpop.f32.mrf.mxu0
        %v4027 = vadd.f32 %v3931, %v4026
        %v4028 = vpop.f32.mrf.mxu0
        %4029 = vmatprep.mubr.f32.mxu0 0.0
        %4030 = vmatmul.mubr.f32.gmra.mxu0 %v3948
        %v4031 = vpop.f32.mrf.mxu0
        %v4032 = vadd.f32 %v3936, %v4031
        %v4033 = vpop.f32.mrf.mxu0
        %4034 = vdwg.mxu0
        %v4035 = vmax.f32 %v4017, 0.0
        %v4036 = vmax.f32 %v4022, 0.0
        %v4037 = vmax.f32 %v4027, 0.0
        %v4038 = vmax.f32 %v4032, 0.0
        %v4039 = vld [vmem:[%s18] sm:$0xff]
        %v4040 = vld [vmem:[%s18 + $0x8] sm:$0xff]
        %v4041 = vld [vmem:[%s18 + $0x10] sm:$0xff]
        %v4042 = vld [vmem:[%s18 + $0x18] sm:$0xff]
        %v4043 = vld [vmem:[%s18 + $0x20] sm:$0xff]
        %v4044 = vld [vmem:[%s18 + $0x28] sm:$0xff]
        %v4045 = vld [vmem:[%s19] sm:$0xff]
        %v4046 = vld [vmem:[%s19 + $0x8] sm:$0xff]
        %v4047 = vld [vmem:[%s19 + $0x10] sm:$0xff]
        %v4048 = vld [vmem:[%s19 + $0x18] sm:$0xff]
        %v4049 = vld [vmem:[%s19 + $0x20] sm:$0xff]
        %v4050 = vld [vmem:[%s19 + $0x28] sm:$0xff]
        %4052 = vset.pattern.permute.xlu0 0
        %4053 = vperm.xlu0 %4052, %v4045
        %v4054 = vpop.permute.xlu0 %4053
        %4057 = vset.pattern.permute.xlu0 0
        %4058 = vperm.xlu0 %4057, %v4046
        %v4059 = vpop.permute.xlu0 %4058
        %4062 = vset.pattern.permute.xlu0 0
        %4063 = vperm.xlu0 %4062, %v4047
        %v4064 = vpop.permute.xlu0 %4063
        %4067 = vset.pattern.permute.xlu0 0
        %4068 = vperm.xlu0 %4067, %v4048
        %v4069 = vpop.permute.xlu0 %4068
        %4072 = vset.pattern.permute.xlu0 0
        %4073 = vperm.xlu0 %4072, %v4049
        %v4074 = vpop.permute.xlu0 %4073
        %4077 = vset.pattern.permute.xlu0 0
        %4078 = vperm.xlu0 %4077, %v4050
        %v4079 = vpop.permute.xlu0 %4078
        %vm4081 = vcmask 261120
        %v4083 = vsel %vm4081, %v4039, 0
        %v4086 = vsel %vm4081, %v4040, 0
        %v4089 = vsel %vm4081, %v4041, 0
        %v4092 = vsel %vm4081, %v4042, 0
        %v4095 = vsel %vm4081, %v4043, 0
        %v4098 = vsel %vm4081, %v4044, 0
        %4100 = vmatprep.subr.mxu0 0.0
        %4101 = vmatpush1.msra.mxu0 0.0
        %4102 = vmatprep.subr.mxu0 0.0
        %4103 = vmatpush1.msra.mxu0 0.0
        %4104 = vmatprep.subr.mxu0 0.0
        %4105 = vmatpush1.msra.mxu0 0.0
        %4106 = vmatprep.subr.mxu0 0.0
        %4107 = vmatpush1.msra.mxu0 0.0
        %4108 = vmatprep.subr.mxu0 0.0
        %4109 = vmatpush1.msra.mxu0 0.0
        %4110 = vmatprep.subr.mxu0 0.0
        %4111 = vmatpush1.msra.mxu0 0.0
        %4112 = vmatprep.subr.mxu0 0.0
        %4113 = vmatpush1.msra.mxu0 0.0
        %4114 = vmatprep.subr.mxu0 0.0
        %4115 = vmatpush1.msra.mxu0 0.0
        %4116 = vmatprep.subr.mxu0 0.0
        %4117 = vmatpush1.msra.mxu0 0.0
        %4118 = vmatprep.subr.mxu0 0.0
        %4119 = vmatpush1.msra.mxu0 0.0
        %4120 = vmatprep.subr.mxu0 0.0
        %4121 = vmatpush1.msra.mxu0 0.0
        %4122 = vmatprep.subr.mxu0 0.0
        %4123 = vmatpush1.msra.mxu0 0.0
        %4124 = vmatprep.subr.mxu0 0.0
        %4125 = vmatpush1.msra.mxu0 %v4038
        %4126 = vmatprep.subr.mxu0 0.0
        %4127 = vmatpush1.msra.mxu0 %v4037
        %4128 = vmatprep.subr.mxu0 0.0
        %4129 = vmatpush1.msra.mxu0 %v4036
        %4130 = vmatprep.subr.mxu0 0.0
        %4131 = vmatpush1.msra.mxu0 %v4035
        %4132 = vmatprep.subr.mxu0 0.0
        %4133 = vmatpush2.msra.mxu0 0.0
        %4134 = vmatprep.subr.mxu0 0.0
        %4135 = vmatpush2.msra.mxu0 0.0
        %4136 = vmatprep.subr.mxu0 0.0
        %4137 = vmatpush2.msra.mxu0 0.0
        %4138 = vmatprep.subr.mxu0 0.0
        %4139 = vmatpush2.msra.mxu0 0.0
        %4140 = vmatprep.subr.mxu0 0.0
        %4141 = vmatpush2.msra.mxu0 0.0
        %4142 = vmatprep.subr.mxu0 0.0
        %4143 = vmatpush2.msra.mxu0 0.0
        %4144 = vmatprep.subr.mxu0 0.0
        %4145 = vmatpush2.msra.mxu0 0.0
        %4146 = vmatprep.subr.mxu0 0.0
        %4147 = vmatpush2.msra.mxu0 0.0
        %4148 = vmatprep.subr.mxu0 0.0
        %4149 = vmatpush2.msra.mxu0 0.0
        %4150 = vmatprep.subr.mxu0 0.0
        %4151 = vmatpush2.msra.mxu0 0.0
        %4152 = vmatprep.subr.mxu0 0.0
        %4153 = vmatpush2.msra.mxu0 0.0
        %4154 = vmatprep.subr.mxu0 0.0
        %4155 = vmatpush2.msra.mxu0 0.0
        %4156 = vmatprep.subr.mxu0 0.0
        %4157 = vmatpush2.msra.mxu0 0.0
        %4158 = vmatprep.subr.mxu0 0.0
        %4159 = vmatpush2.msra.mxu0 0.0
        %4160 = vmatprep.subr.mxu0 0.0
        %4161 = vmatpush2.msra.mxu0 0.0
        %4162 = vmatprep.subr.mxu0 0.0
        %4163 = vmatpush2.msra.mxu0 0.0
        %4164 = vmatprep.mubr.f32.mxu0 0.0
        %4165 = vmatmul.mubr.f32.gmra.mxu0 %v4083
        %v4166 = vpop.f32.mrf.mxu0
        %v4167 = vadd.f32 %v4054, %v4166
        %v4168 = vpop.f32.mrf.mxu0
        %4169 = vmatprep.mubr.f32.mxu0 0.0
        %4170 = vmatmul.mubr.f32.gmra.mxu0 %v4086
        %v4171 = vpop.f32.mrf.mxu0
        %v4172 = vadd.f32 %v4059, %v4171
        %v4173 = vpop.f32.mrf.mxu0
        %4174 = vmatprep.mubr.f32.mxu0 0.0
        %4175 = vmatmul.mubr.f32.gmra.mxu0 %v4089
        %v4176 = vpop.f32.mrf.mxu0
        %v4177 = vadd.f32 %v4064, %v4176
        %v4178 = vpop.f32.mrf.mxu0
        %4179 = vmatprep.mubr.f32.mxu0 0.0
        %4180 = vmatmul.mubr.f32.gmra.mxu0 %v4092
        %v4181 = vpop.f32.mrf.mxu0
        %v4182 = vadd.f32 %v4069, %v4181
        %v4183 = vpop.f32.mrf.mxu0
        %4184 = vmatprep.mubr.f32.mxu0 0.0
        %4185 = vmatmul.mubr.f32.gmra.mxu0 %v4095
        %v4186 = vpop.f32.mrf.mxu0
        %v4187 = vadd.f32 %v4074, %v4186
        %v4188 = vpop.f32.mrf.mxu0
        %4189 = vmatprep.mubr.f32.mxu0 0.0
        %4190 = vmatmul.mubr.f32.gmra.mxu0 %v4098
        %v4191 = vpop.f32.mrf.mxu0
        %v4192 = vadd.f32 %v4079, %v4191
        %v4193 = vpop.f32.mrf.mxu0
        %4194 = vdwg.mxu0
        %v4195 = vld [vmem:[%s801] sm:$0x1]
        %v4196 = vld [vmem:[%s801 + $0x1] sm:$0x1]
        %v4197 = vld [vmem:[%s801 + $0x2] sm:$0x1]
        %v4198 = vmul.f32 %v4195, %v4195
        %v4199 = vmul.f32 %v4196, %v4196
        %v4200 = vmul.f32 %v4197, %v4197
        %v4201 = vmul.f32 %v4196, -0.48860252
        %v4202 = vmul.f32 %v4197, 0.48860252
        %v4203 = vmul.f32 %v4195, -0.48860252
        %v4204 = vmul.f32 %v4195, 1.0925485
        %v4205 = vmul.f32 %v4204, %v4196
        %v4206 = vmul.f32 %v4196, -1.0925485
        %v4207 = vmul.f32 %v4206, %v4197
        %v4208 = vmul.f32 %v4200, 2.0
        %v4209 = vsub.f32 %v4208, %v4198
        %v4210 = vsub.f32 %v4209, %v4199
        %v4211 = vmul.f32 %v4210, 0.31539157
        %v4212 = vmul.f32 %v4195, -1.0925485
        %v4213 = vmul.f32 %v4212, %v4197
        %v4214 = vsub.f32 %v4198, %v4199
        %v4215 = vmul.f32 %v4214, 0.54627424
        %v4217 = vrot.slane %v4201, 7
        %v4220 = vrot.slane %v4202, 6
        %v4223 = vrot.slane %v4203, 5
        %v4226 = vrot.slane %v4205, 4
        %v4229 = vrot.slane %v4207, 3
        %v4232 = vrot.slane %v4211, 2
        %v4235 = vrot.slane %v4213, 1
        %vm4237 = vcmask 1040384
        %v4238 = vsel %vm4237, 0.2820948, %v4217
        %vm4239 = vcmask 1041408
        %v4240 = vsel %vm4239, %v4238, %v4220
        %v4241 = vsel %vm1490, %v4240, %v4223
        %vm4242 = vcmask 1043456
        %v4243 = vsel %vm4242, %v4241, %v4226
        %vm4244 = vcmask 1044480
        %v4245 = vsel %vm4244, %v4243, %v4229
        %vm4246 = vcmask 1045504
        %v4247 = vsel %vm4246, %v4245, %v4232
        %vm4248 = vcmask 1046528
        %v4249 = vsel %vm4248, %v4247, %v4235
        %v4250 = vsel %vm4237, %v4215, 0.0
        %v4251 = vld [vmem:[%s20] sm:$0x7]
        %v4252 = vmul.f32 %v4167, %v4249
        %v4253 = vmul.f32 %v4172, %v4250
        %v4254 = vmul.f32 %v4177, %v4249
        %v4255 = vmul.f32 %v4182, %v4250
        %v4256 = vmul.f32 %v4187, %v4249
        %v4257 = vmul.f32 %v4192, %v4250
        %vm4258 = vcmask 392192
        %v4260 = vsel %vm4258, %v4251, 0
        %4262 = vmatprep.subr.mxu0 0.0
        %4263 = vmatpush1.msra.mxu0 0.0
        %4264 = vmatprep.subr.mxu0 0.0
        %4265 = vmatpush1.msra.mxu0 0.0
        %4266 = vmatprep.subr.mxu0 0.0
        %4267 = vmatpush1.msra.mxu0 0.0
        %4268 = vmatprep.subr.mxu0 0.0
        %4269 = vmatpush1.msra.mxu0 0.0
        %4270 = vmatprep.subr.mxu0 0.0
        %4271 = vmatpush1.msra.mxu0 0.0
        %4272 = vmatprep.subr.mxu0 0.0
        %4273 = vmatpush1.msra.mxu0 0.0
        %4274 = vmatprep.subr.mxu0 0.0
        %4275 = vmatpush1.msra.mxu0 0.0
        %4276 = vmatprep.subr.mxu0 0.0
        %4277 = vmatpush1.msra.mxu0 0.0
        %4278 = vmatprep.subr.mxu0 0.0
        %4279 = vmatpush1.msra.mxu0 0.0
        %4280 = vmatprep.subr.mxu0 0.0
        %4281 = vmatpush1.msra.mxu0 0.0
        %4282 = vmatprep.subr.mxu0 0.0
        %4283 = vmatpush1.msra.mxu0 %v4257
        %4284 = vmatprep.subr.mxu0 0.0
        %4285 = vmatpush1.msra.mxu0 %v4256
        %4286 = vmatprep.subr.mxu0 0.0
        %4287 = vmatpush1.msra.mxu0 %v4255
        %4288 = vmatprep.subr.mxu0 0.0
        %4289 = vmatpush1.msra.mxu0 %v4254
        %4290 = vmatprep.subr.mxu0 0.0
        %4291 = vmatpush1.msra.mxu0 %v4253
        %4292 = vmatprep.subr.mxu0 0.0
        %4293 = vmatpush1.msra.mxu0 %v4252
        %4294 = vmatprep.subr.mxu0 0.0
        %4295 = vmatpush2.msra.mxu0 0.0
        %4296 = vmatprep.subr.mxu0 0.0
        %4297 = vmatpush2.msra.mxu0 0.0
        %4298 = vmatprep.subr.mxu0 0.0
        %4299 = vmatpush2.msra.mxu0 0.0
        %4300 = vmatprep.subr.mxu0 0.0
        %4301 = vmatpush2.msra.mxu0 0.0
        %4302 = vmatprep.subr.mxu0 0.0
        %4303 = vmatpush2.msra.mxu0 0.0
        %4304 = vmatprep.subr.mxu0 0.0
        %4305 = vmatpush2.msra.mxu0 0.0
        %4306 = vmatprep.subr.mxu0 0.0
        %4307 = vmatpush2.msra.mxu0 0.0
        %4308 = vmatprep.subr.mxu0 0.0
        %4309 = vmatpush2.msra.mxu0 0.0
        %4310 = vmatprep.subr.mxu0 0.0
        %4311 = vmatpush2.msra.mxu0 0.0
        %4312 = vmatprep.subr.mxu0 0.0
        %4313 = vmatpush2.msra.mxu0 0.0
        %4314 = vmatprep.subr.mxu0 0.0
        %4315 = vmatpush2.msra.mxu0 0.0
        %4316 = vmatprep.subr.mxu0 0.0
        %4317 = vmatpush2.msra.mxu0 0.0
        %4318 = vmatprep.subr.mxu0 0.0
        %4319 = vmatpush2.msra.mxu0 0.0
        %4320 = vmatprep.subr.mxu0 0.0
        %4321 = vmatpush2.msra.mxu0 0.0
        %4322 = vmatprep.subr.mxu0 0.0
        %4323 = vmatpush2.msra.mxu0 0.0
        %4324 = vmatprep.subr.mxu0 0.0
        %4325 = vmatpush2.msra.mxu0 0.0
        %4326 = vmatprep.mubr.f32.mxu0 0.0
        %4327 = vmatmul.mubr.f32.gmra.mxu0 %v4260
        %v4328 = vpop.f32.mrf.mxu0
        %v4329 = vadd.f32 0.0, %v4328
        %v4330 = vpop.f32.mrf.mxu0
        %4331 = vdwg.mxu0
        %v4332 = vtanh.pop %v4329
        %v4333 = vmul.f32 %v4332, 0.25
        %v4334 = vmax.f32 %v4333, 0.0
        %4335 = vst [vmem:[%s793] sm:$0x7] %v4334
        %v4336 = vadd.f32 %v3908, %v4334
        %v4337 = vmax.f32 %v4336, 0.0
        %v4338 = vmin.f32 %v4337, 1.0
        %4339 = vst [vmem:[%s779] sm:$0x7] %v4338
        %s4340 = sand.u32 %s507, 1
        %s4341 = scalar_lea.sflag [#allocation5], %s4340
        %s4342 = sand.u32 %s507, 1
        %s4343 = smul.addr %s4342, 4
        %s4344 = scalar_lea.vmem [#allocation4], %s4343
        %s4345 = sand.u32 %s43, 1
        %s4346 = scalar_lea.sflag [#allocation7], %s4345
        %s4347 = sand.u32 %s533, 1
        %s4348 = smul.addr %s4347, 4
        %s4349 = scalar_lea.vmem [#allocation6], %s4348
        %s4350 = sand.u32 %s43, 1
        %s4351 = scalar_lea.sflag [#allocation7], %s4350
        %s4352 = sand.u32 %s559, 1
        %s4353 = smul.addr %s4352, 4
        %s4354 = scalar_lea.vmem [#allocation8], %s4353
        // Predicated region
        $region143: #{ibrnet_forward.1} parent=137 // pred_check
          %p4355 = pneg %p517
        $region144: #{ibrnet_forward.1} parent=137 // pred_check_branch
          %4357 = sbr.rel (%p4355) target = $region146
        $region145: #{ibrnet_forward.1} parent=137 // pred_region
          %s4359 = ssub.s32 64, 64
          %4360 = vsyncadd %s4341, %s4359
          %s4361 = smul.addr %s43, 64
          %s4362 = scalar_lea.hbm %s21, %s4361
          %s4364 = sshll.u32 %s4344, 4
          %s4365 = int_to_ptr.vmem [resolvable:$true] %s4364
          %4367 = dma.vmem_to_hbm [thread:$0]  %s4365, 64, %s4362, %s4341
        $region146: #{ibrnet_forward.1} parent=137 // pred_fallthru
          _
        // Predicated region
        $region147: #{ibrnet_forward.1} parent=137 // pred_check
          %p4368 = pneg %p543
        $region148: #{ibrnet_forward.1} parent=137 // pred_check_branch
          %4370 = sbr.rel (%p4368) target = $region150
        $region149: #{ibrnet_forward.1} parent=137 // pred_region
          %s4372 = ssub.s32 64, 64
          %4373 = vsyncadd %s4346, %s4372
          %s4374 = smul.addr %s43, 64
          %s4375 = scalar_lea.hbm %s22, %s4374
          %s4377 = sshll.u32 %s4349, 4
          %s4378 = int_to_ptr.vmem [resolvable:$true] %s4377
          %4380 = dma.vmem_to_hbm [thread:$0]  %s4378, 64, %s4375, %s4346
        $region150: #{ibrnet_forward.1} parent=137 // pred_fallthru
          _
        // Predicated region
        $region151: #{ibrnet_forward.1} parent=137 // pred_check
          %p4381 = pneg %p569
        $region152: #{ibrnet_forward.1} parent=137 // pred_check_branch
          %4383 = sbr.rel (%p4381) target = $region154
        $region153: #{ibrnet_forward.1} parent=137 // pred_region
          %s4385 = ssub.s32 64, 64
          %4386 = vsyncadd %s4351, %s4385
          %s4387 = smul.addr %s43, 64
          %s4388 = scalar_lea.hbm %s23, %s4387
          %s4390 = sshll.u32 %s4354, 4
          %s4391 = int_to_ptr.vmem [resolvable:$true] %s4390
          %4393 = dma.vmem_to_hbm [thread:$0]  %s4391, 64, %s4388, %s4351
        $region154: #{ibrnet_forward.1} parent=137 // pred_fallthru
          _
      $region138: #{ibrnet_forward.1} parent=5 // pred_fallthru
        _
      %p4394 = scmp.le.s32.totalorder 2, %s38
      // Predicated region
      $region155: #{ibrnet_forward.1} parent=5 // pred_check
        %p4395 = pneg %p4394
      $region156: #{ibrnet_forward.1} parent=5 // pred_check_branch
        %4397 = sbr.rel (%p4395) target = $region158
      $region157: #{ibrnet_forward.1} parent=5 // pred_region
        %s4398 = ssub.s32 %s38, 2
        // Predicated region
        $region159: #{ibrnet_forward.1} parent=157 // pred_check
          %p4399 = pneg %p523
        $region160: #{ibrnet_forward.1} parent=157 // pred_check_branch
          %4401 = sbr.rel (%p4399) target = $region162
        $region161: #{ibrnet_forward.1} parent=157 // pred_region
          %s4402 = sand.u32 %s508, 1
          %s4403 = scalar_lea.sflag [#allocation5], %s4402
          %s4404 = sand.u32 %s508, 1
          %s4405 = smul.addr %s4404, 4
          %s4406 = scalar_lea.vmem [#allocation4], %s4405
          %4407 = dma.done %s4403, 64
        $region162: #{ibrnet_forward.1} parent=157 // pred_fallthru
          _
        // Predicated region
        $region163: #{ibrnet_forward.1} parent=157 // pred_check
          %p4408 = pneg %p549
        $region164: #{ibrnet_forward.1} parent=157 // pred_check_branch
          %4410 = sbr.rel (%p4408) target = $region166
        $region165: #{ibrnet_forward.1} parent=157 // pred_region
          %s4411 = sand.u32 %s44, 1
          %s4412 = scalar_lea.sflag [#allocation7], %s4411
          %s4413 = sand.u32 %s534, 1
          %s4414 = smul.addr %s4413, 4
          %s4415 = scalar_lea.vmem [#allocation6], %s4414
          %4416 = dma.done %s4412, 64
        $region166: #{ibrnet_forward.1} parent=157 // pred_fallthru
          _
        // Predicated region
        $region167: #{ibrnet_forward.1} parent=157 // pred_check
          %p4417 = pneg %p575
        $region168: #{ibrnet_forward.1} parent=157 // pred_check_branch
          %4419 = sbr.rel (%p4417) target = $region170
        $region169: #{ibrnet_forward.1} parent=157 // pred_region
          %s4420 = sand.u32 %s44, 1
          %s4421 = scalar_lea.sflag [#allocation7], %s4420
          %s4422 = sand.u32 %s560, 1
          %s4423 = smul.addr %s4422, 4
          %s4424 = scalar_lea.vmem [#allocation8], %s4423
          %4425 = dma.done %s4421, 64
        $region170: #{ibrnet_forward.1} parent=157 // pred_fallthru
          _
      $region158: #{ibrnet_forward.1} parent=5 // pred_fallthru
        _
    $region6: #{ibrnet_forward.1} parent=1 // loop_footer
      %s42 = sadd.s32 1, %s38
    $region7: #{ibrnet_forward.1} parent=1 // loop_footer_branch
      %37 = sbr.rel target = $region3
    $region8: #{ibrnet_forward.1} parent=1 // loop_exit
      _
    %4426 = vsyncpa [#allocation5], 1
    %s4427 = scalar_lea.sflag [#allocation5], 1
    %4428 = vsyncpa %s4427, 1
    %4429 = vsyncpa [#allocation7], 1
    %s4430 = scalar_lea.sflag [#allocation7], 1
    %4431 = vsyncpa %s4430, 1

</llo_original>
